<compile_context>
chip_gen: v7x
topology: tpu7x:2x2x1
jax: 0.10.0
libtpu: 0.0.40
codegen_flags: <defaults>
</compile_context>

<pallas_src>
import functools

import jax
import jax.numpy as jnp
from jax import lax
from jax.experimental import pallas as pl
from jax.experimental.pallas import tpu as pltpu

LANE = 128      # lane width: gate blocks / feature dims padded to this
SUBLANE = 8     # f32 sublane tile: batch padded to this


def _round_up(x, m):
    return (x + m - 1) // m * m


# -----------------------------------------------------------------------------
# Fused kernel: all GRU layers + Linear head + log_softmax(dim=0)
# -----------------------------------------------------------------------------
def rnnet_kernel(x_ref, wih_ref, whh_ref, bgi_ref, bhn_ref, lw_ref, lb_ref,
                 o_ref, gi_ref, y_ref, *, b_real):
    """
    x_ref  : (S, Bp, HP)      f32  layer-0 input (features zero-padded to HP)
    wih_ref: (NL, HP, 3*HP)   bf16 input->hidden weights, gate g in lane block g
    whh_ref: (NL, HP, 3*HP)   bf16 hidden->hidden weights, same layout
    bgi_ref: (NL, 1, 3*HP)    f32  b_ih with b_hh pre-folded into the r,z blocks
    bhn_ref: (NL, 1, HP)      f32  b_hn (must stay inside r * (h@W_hn + b_hn))
    lw_ref : (HP, LP)         bf16 Linear weight (padded)
    lb_ref : (1, LP)          f32  Linear bias   (padded)
    o_ref  : (Bp, LP)         f32  log-probs (log_softmax over dim 0 = batch)
    gi_ref : (S, Bp, 3*HP)    f32  VMEM scratch: hoisted input projection
    y_ref  : (S, Bp, HP)      f32  VMEM scratch: previous layer's output sequence
    """
    S, Bp, HP = x_ref.shape
    NL = wih_ref.shape[0]

    def run_layer(src, layer, store_seq):
        # ---- hoisted input projection: one (S*Bp, HP) @ (HP, 3HP) MXU matmul ----
        flat = src.reshape(S * Bp, HP).astype(jnp.bfloat16)
        gi = jnp.dot(flat, wih_ref[layer], preferred_element_type=jnp.float32)
        gi = gi + bgi_ref[layer]                     # (1, 3HP) broadcast, once
        gi_ref[...] = gi.reshape(S, Bp, 3 * HP)

        whh_l = whh_ref[layer]                                   # (HP, 3HP) bf16
        bhn_b = jnp.broadcast_to(bhn_ref[layer], (Bp, HP))       # hoisted bcast

        def step(t, h):
            gi_t = gi_ref[t]                         # (Bp, 3HP) lane-aligned gates
            gh = jnp.dot(h.astype(jnp.bfloat16), whh_l,
                         preferred_element_type=jnp.float32)      # (Bp, 3HP)
            r = jax.nn.sigmoid(gi_t[:, :HP] + gh[:, :HP])
            z = jax.nn.sigmoid(gi_t[:, HP:2 * HP] + gh[:, HP:2 * HP])
            n = jnp.tanh(gi_t[:, 2 * HP:] + r * (gh[:, 2 * HP:] + bhn_b))
            h_new = (1.0 - z) * n + z * h
            if store_seq:                            # last layer only needs h_last
                y_ref[t] = h_new                     # full (8, 128) lane-dense store
            return h_new

        h0 = jnp.zeros((Bp, HP), jnp.float32)        # matches torch.zeros h0
        return lax.fori_loop(0, S, step, h0, unroll=True)

    h_last = run_layer(x_ref[...], 0, store_seq=NL > 1)
    for layer in range(1, NL):
        # Safe to overwrite y_ref while it is this layer's source: the full input
        # projection is materialized into gi_ref before the recurrence starts.
        h_last = run_layer(y_ref[...], layer, store_seq=layer < NL - 1)

    # ---- head: Linear(H -> L) then log_softmax over dim 0 (batch), as in torch --
    logits = jnp.dot(h_last.astype(jnp.bfloat16), lw_ref[...],
                     preferred_element_type=jnp.float32) + lb_ref[...]   # (Bp, LP)
    row = lax.broadcasted_iota(jnp.int32, logits.shape, 0)
    masked = jnp.where(row < b_real, logits, -jnp.inf)   # exclude padded batch rows
    m = jnp.max(masked, axis=0, keepdims=True)
    lse = jnp.log(jnp.sum(jnp.exp(masked - m), axis=0, keepdims=True)) + m
    o_ref[...] = logits - lse


# -----------------------------------------------------------------------------
# Wrapper
# -----------------------------------------------------------------------------
_VMEM = pl.BlockSpec(memory_space=pltpu.MemorySpace.VMEM)


def rnnet_forward(x, packed, dims, num_label):
    """x: (seq, batch, input_size) f32 -> (batch, num_label) log-probs (dim=0)."""
    S, B, D = x.shape
    HP, LP = dims["HP"], dims["LP"]
    Bp = _round_up(max(B, SUBLANE), SUBLANE)

    x_p = jnp.zeros((S, Bp, HP), jnp.float32).at[:, :B, :D].set(x)

    out_p = pl.pallas_call(
        functools.partial(rnnet_kernel, b_real=B),
        out_shape=jax.ShapeDtypeStruct((Bp, LP), jnp.float32),
        in_specs=[_VMEM] * 7,
        out_specs=_VMEM,
        scratch_shapes=[
            pltpu.VMEM((S, Bp, 3 * HP), jnp.float32),   # hoisted input projection
            pltpu.VMEM((S, Bp, HP), jnp.float32),       # inter-layer sequence
        ],
    )(x_p, packed["wih"], packed["whh"], packed["bgi"], packed["bhn"],
      packed["lw"], packed["lb"])
    return out_p[:B, :num_label]


# -----------------------------------------------------------------------------
# Parameters: logical (PyTorch-like, transposed) init + padded/packed layout
# -----------------------------------------------------------------------------
def init_params(key, input_size, hidden_size, num_layers, num_label):
    """Logical layout: W_ih (d_in, 3H), W_hh (H, 3H), biases (3H,), gate order
    (r|z|n); Linear weight (H, L), bias (L,)."""
    params = {"gru_layers": []}
    bound = 1.0 / (hidden_size ** 0.5)
    for layer in range(num_layers):
        d_in = input_size if layer == 0 else hidden_size
        key, k1, k2, k3, k4 = jax.random.split(key, 5)
        w_ih = jax.random.uniform(k1, (d_in, 3 * hidden_size), jnp.float32, -bound, bound)
        w_hh = jax.random.uniform(k2, (hidden_size, 3 * hidden_size), jnp.float32, -bound, bound)
        b_ih = jax.random.uniform(k3, (3 * hidden_size,), jnp.float32, -bound, bound)
        b_hh = jax.random.uniform(k4, (3 * hidden_size,), jnp.float32, -bound, bound)
        params["gru_layers"].append((w_ih, w_hh, b_ih, b_hh))
    key, k5, k6 = jax.random.split(key, 3)
    params["lin_w"] = jax.random.uniform(k5, (hidden_size, num_label), jnp.float32, -bound, bound)
    params["lin_b"] = jax.random.uniform(k6, (num_label,), jnp.float32, -bound, bound)
    return params


def _pack_gate_w(w, HP):
    d_in, three_h = w.shape
    H = three_h // 3
    w3 = w.reshape(d_in, 3, H)
    w3 = jnp.pad(w3, ((0, HP - d_in), (0, 0), (0, HP - H)))
    return w3.reshape(HP, 3 * HP)


def _pack_gate_b(b, HP):
    H = b.shape[0] // 3
    b3 = b.reshape(3, H)
    b3 = jnp.pad(b3, ((0, 0), (0, HP - H)))
    return b3.reshape(3 * HP)


def pack_params(raw, hidden_size, num_label):
    """Pad to the lane-aligned, gate-blocked layout, stack per layer, cast weights
    to bf16 (biases stay f32)."""
    H = hidden_size
    HP = _round_up(max(H, LANE), LANE)
    LP = _round_up(max(num_label, LANE), LANE)

    wih, whh, bgi, bhn = [], [], [], []
    for (w_ih, w_hh, b_ih, b_hh) in raw["gru_layers"]:
        assert w_ih.shape[0] <= HP, "input_size must fit inside the padded lane width"
        wih.append(_pack_gate_w(w_ih, HP))
        whh.append(_pack_gate_w(w_hh, HP))
        # Fold b_hh into b_ih for the r and z gates; keep b_hn separate because it
        # lives inside r * (h @ W_hn + b_hn).
        b_fold = b_ih.at[:2 * H].add(b_hh[:2 * H])
        bgi.append(_pack_gate_b(b_fold, HP))
        bhn.append(jnp.pad(b_hh[2 * H:], (0, HP - H)))

    packed = {
        "wih": jnp.stack(wih).astype(jnp.bfloat16),
        "whh": jnp.stack(whh).astype(jnp.bfloat16),
        "bgi": jnp.stack(bgi)[:, None, :],
        "bhn": jnp.stack(bhn)[:, None, :],
        "lw": jnp.pad(raw["lin_w"], ((0, HP - H), (0, LP - num_label))).astype(jnp.bfloat16),
        "lb": jnp.pad(raw["lin_b"], (0, LP - num_label))[None, :],
    }
    return packed, {"HP": HP, "LP": LP}


# -----------------------------------------------------------------------------
# Pure-JAX reference (same bf16-operand / f32-accumulate matmul numerics)
# -----------------------------------------------------------------------------
def rnnet_reference(x, raw):
    def gru_layer(xs, w_ih, w_hh, b_ih, b_hh):
        S, B, _ = xs.shape
        H = w_hh.shape[0]
        wih16, whh16 = w_ih.astype(jnp.bfloat16), w_hh.astype(jnp.bfloat16)
        h = jnp.zeros((B, H), jnp.float32)
        ys = []
        for t in range(S):
            gi = jnp.dot(xs[t].astype(jnp.bfloat16), wih16,
                         preferred_element_type=jnp.float32) + b_ih
            gh = jnp.dot(h.astype(jnp.bfloat16), whh16,
                         preferred_element_type=jnp.float32) + b_hh
            r = jax.nn.sigmoid(gi[:, :H] + gh[:, :H])
            z = jax.nn.sigmoid(gi[:, H:2 * H] + gh[:, H:2 * H])
            n = jnp.tanh(gi[:, 2 * H:] + r * gh[:, 2 * H:])
            h = (1.0 - z) * n + z * h
            ys.append(h)
        return jnp.stack(ys)

    out = x
    for (w_ih, w_hh, b_ih, b_hh) in raw["gru_layers"]:
        out = gru_layer(out, w_ih, w_hh, b_ih, b_hh)
    logits = jnp.dot(out[-1].astype(jnp.bfloat16),
                     raw["lin_w"].astype(jnp.bfloat16),
                     preferred_element_type=jnp.float32) + raw["lin_b"]
    return jax.nn.log_softmax(logits, axis=0)   # dim=0, as in the PyTorch module


# -----------------------------------------------------------------------------
if __name__ == "__main__":
    SEQ = 8          # sequence length
    BATCH = 2        # batch size
    INPUT = 16       # input_layer (fastText embedding dim stand-in)
    HIDDEN = 32      # hidden_size
    NUM_LAYERS = 2   # num_layers
    NUM_LABEL = 5    # data['class'].nunique() stand-in

    key = jax.random.PRNGKey(0)
    key, kx = jax.random.split(key)
    x = jax.random.normal(kx, (SEQ, BATCH, INPUT), jnp.float32)

    raw = init_params(key, INPUT, HIDDEN, NUM_LAYERS, NUM_LABEL)
    packed, dims = pack_params(raw, HIDDEN, NUM_LABEL)

    out = rnnet_forward(x, packed, dims, NUM_LABEL)
    jax.block_until_ready(out)

    assert out.shape == (BATCH, NUM_LABEL)
    ref = rnnet_reference(x, raw)
    assert bool(jnp.allclose(out, ref, atol=1e-2, rtol=1e-2)), "kernel/reference mismatch"
    print("KERNEL_OK")
</pallas_src>

<mosaic_0001>
module attributes {stable_mosaic.version = 11 : i64} {
  func.func @rnnet_kernel(%arg0: memref<8x8x128xf32, #tpu.memory_space<vmem>>, %arg1: memref<2x128x384xbf16, #tpu.memory_space<vmem>>, %arg2: memref<2x128x384xbf16, #tpu.memory_space<vmem>>, %arg3: memref<2x1x384xf32, #tpu.memory_space<vmem>>, %arg4: memref<2x1x128xf32, #tpu.memory_space<vmem>>, %arg5: memref<128x128xbf16, #tpu.memory_space<vmem>>, %arg6: memref<1x128xf32, #tpu.memory_space<vmem>>, %arg7: memref<8x128xf32, #tpu.memory_space<vmem>>, %arg8: memref<8x8x384xf32, #tpu.memory_space<vmem>>, %arg9: memref<8x8x128xf32, #tpu.memory_space<vmem>>) attributes {dimension_semantics = [], scalar_prefetch = 0 : i64, scratch_operands = 2 : i64, tpu.core_type = #tpu.core_type<tc>} {
    %c0 = arith.constant 0 : index
    %c0_0 = arith.constant 0 : index
    %c0_1 = arith.constant 0 : index
    %0 = vector.load %arg0[%c0, %c0_0, %c0_1] : memref<8x8x128xf32, #tpu.memory_space<vmem>>, vector<8x8x128xf32>
    %1 = vector.shape_cast %0 : vector<8x8x128xf32> to vector<64x128xf32>
    %2 = arith.truncf %1 : vector<64x128xf32> to vector<64x128xbf16>
    %c0_2 = arith.constant 0 : index
    %c0_3 = arith.constant 0 : index
    %c0_4 = arith.constant 0 : index
    %3 = vector.load %arg1[%c0_2, %c0_3, %c0_4] : memref<2x128x384xbf16, #tpu.memory_space<vmem>>, vector<1x128x384xbf16>
    %4 = vector.shape_cast %3 : vector<1x128x384xbf16> to vector<128x384xbf16>
    %cst = arith.constant dense<0.000000e+00> : vector<64x384xf32>
    %5 = tpu.matmul %2, %4, %cst {dimension_numbers = #tpu.dot_dimension_numbers<[1], [0], [0], [1], [0, 0, 1, 1], [], []>} : vector<64x128xbf16>, vector<128x384xbf16>, vector<64x384xf32> -> vector<64x384xf32>
    %c0_5 = arith.constant 0 : index
    %c0_6 = arith.constant 0 : index
    %c0_7 = arith.constant 0 : index
    %6 = vector.load %arg3[%c0_5, %c0_6, %c0_7] : memref<2x1x384xf32, #tpu.memory_space<vmem>>, vector<1x1x384xf32>
    %7 = vector.shape_cast %6 : vector<1x1x384xf32> to vector<1x384xf32>
    %8 = vector.broadcast %7 : vector<1x384xf32> to vector<64x384xf32>
    %9 = arith.addf %5, %8 : vector<64x384xf32>
    %10 = vector.shape_cast %9 : vector<64x384xf32> to vector<8x8x384xf32>
    %c0_8 = arith.constant 0 : index
    %c0_9 = arith.constant 0 : index
    %c0_10 = arith.constant 0 : index
    %11 = vector.load %arg8[%c0_8, %c0_9, %c0_10] : memref<8x8x384xf32, #tpu.memory_space<vmem>>, vector<8x8x384xf32>
    tpu.vector_store %arg8[%c0_8, %c0_9, %c0_10], %10 {strides = array<i32>} : memref<8x8x384xf32, #tpu.memory_space<vmem>>, vector<8x8x384xf32>,
    %c0_11 = arith.constant 0 : index
    %c0_12 = arith.constant 0 : index
    %c0_13 = arith.constant 0 : index
    %12 = vector.load %arg2[%c0_11, %c0_12, %c0_13] : memref<2x128x384xbf16, #tpu.memory_space<vmem>>, vector<1x128x384xbf16>
    %13 = vector.shape_cast %12 : vector<1x128x384xbf16> to vector<128x384xbf16>
    %c0_14 = arith.constant 0 : index
    %c0_15 = arith.constant 0 : index
    %c0_16 = arith.constant 0 : index
    %14 = vector.load %arg4[%c0_14, %c0_15, %c0_16] : memref<2x1x128xf32, #tpu.memory_space<vmem>>, vector<1x1x128xf32>
    %15 = vector.shape_cast %14 : vector<1x1x128xf32> to vector<1x128xf32>
    %16 = vector.shape_cast %15 : vector<1x128xf32> to vector<1x128xf32>
    %17 = vector.broadcast %16 : vector<1x128xf32> to vector<8x128xf32>
    %cst_17 = arith.constant 0.000000e+00 : f32
    %18 = vector.broadcast %cst_17 : f32 to vector<8x128xf32>
    %c0_i32 = arith.constant 0 : i32
    %19 = arith.index_cast %c0_i32 : i32 to index
    %c0_18 = arith.constant 0 : index
    %c0_19 = arith.constant 0 : index
    %20 = vector.load %arg8[%19, %c0_18, %c0_19] : memref<8x8x384xf32, #tpu.memory_space<vmem>>, vector<1x8x384xf32>
    %21 = vector.shape_cast %20 : vector<1x8x384xf32> to vector<8x384xf32>
    %22 = arith.truncf %18 : vector<8x128xf32> to vector<8x128xbf16>
    %cst_20 = arith.constant dense<0.000000e+00> : vector<8x384xf32>
    %23 = tpu.matmul %22, %13, %cst_20 {dimension_numbers = #tpu.dot_dimension_numbers<[1], [0], [0], [1], [0, 0, 1, 1], [], []>} : vector<8x128xbf16>, vector<128x384xbf16>, vector<8x384xf32> -> vector<8x384xf32>
    %24 = vector.extract_strided_slice %21 {offsets = [0, 0], sizes = [8, 128], strides = [1, 1]} : vector<8x384xf32> to vector<8x128xf32>
    %25 = vector.extract_strided_slice %23 {offsets = [0, 0], sizes = [8, 128], strides = [1, 1]} : vector<8x384xf32> to vector<8x128xf32>
    %26 = arith.addf %24, %25 : vector<8x128xf32>
    %27 = arith.negf %26 : vector<8x128xf32>
    %28 = math.exp %27 : vector<8x128xf32>
    %cst_21 = arith.constant 1.000000e+00 : f32
    %29 = vector.broadcast %cst_21 : f32 to vector<8x128xf32>
    %30 = arith.addf %29, %28 : vector<8x128xf32>
    %31 = arith.divf %29, %30 : vector<8x128xf32>
    %32 = vector.extract_strided_slice %21 {offsets = [0, 128], sizes = [8, 128], strides = [1, 1]} : vector<8x384xf32> to vector<8x128xf32>
    %33 = vector.extract_strided_slice %23 {offsets = [0, 128], sizes = [8, 128], strides = [1, 1]} : vector<8x384xf32> to vector<8x128xf32>
    %34 = arith.addf %32, %33 : vector<8x128xf32>
    %35 = arith.negf %34 : vector<8x128xf32>
    %36 = math.exp %35 : vector<8x128xf32>
    %cst_22 = arith.constant 1.000000e+00 : f32
    %37 = vector.broadcast %cst_22 : f32 to vector<8x128xf32>
    %38 = arith.addf %37, %36 : vector<8x128xf32>
    %39 = arith.divf %37, %38 : vector<8x128xf32>
    %40 = vector.extract_strided_slice %21 {offsets = [0, 256], sizes = [8, 128], strides = [1, 1]} : vector<8x384xf32> to vector<8x128xf32>
    %41 = vector.extract_strided_slice %23 {offsets = [0, 256], sizes = [8, 128], strides = [1, 1]} : vector<8x384xf32> to vector<8x128xf32>
    %42 = arith.addf %41, %17 : vector<8x128xf32>
    %43 = arith.mulf %31, %42 : vector<8x128xf32>
    %44 = arith.addf %40, %43 : vector<8x128xf32>
    %45 = math.tanh %44 : vector<8x128xf32>
    %cst_23 = arith.constant 1.000000e+00 : f32
    %46 = vector.broadcast %cst_23 : f32 to vector<8x128xf32>
    %47 = arith.subf %46, %39 : vector<8x128xf32>
    %48 = arith.mulf %47, %45 : vector<8x128xf32>
    %49 = arith.mulf %39, %18 : vector<8x128xf32>
    %50 = arith.addf %48, %49 : vector<8x128xf32>
    %51 = arith.index_cast %c0_i32 : i32 to index
    %c0_24 = arith.constant 0 : index
    %c0_25 = arith.constant 0 : index
    %52 = vector.load %arg9[%51, %c0_24, %c0_25] : memref<8x8x128xf32, #tpu.memory_space<vmem>>, vector<1x8x128xf32>
    %53 = vector.shape_cast %52 : vector<1x8x128xf32> to vector<8x128xf32>
    %54 = vector.shape_cast %50 : vector<8x128xf32> to vector<1x8x128xf32>
    tpu.vector_store %arg9[%51, %c0_24, %c0_25], %54 {strides = array<i32>} : memref<8x8x128xf32, #tpu.memory_space<vmem>>, vector<1x8x128xf32>,
    %c1_i32 = arith.constant 1 : i32
    %55 = arith.index_cast %c1_i32 : i32 to index
    %c0_26 = arith.constant 0 : index
    %c0_27 = arith.constant 0 : index
    %56 = vector.load %arg8[%55, %c0_26, %c0_27] : memref<8x8x384xf32, #tpu.memory_space<vmem>>, vector<1x8x384xf32>
    %57 = vector.shape_cast %56 : vector<1x8x384xf32> to vector<8x384xf32>
    %58 = arith.truncf %50 : vector<8x128xf32> to vector<8x128xbf16>
    %cst_28 = arith.constant dense<0.000000e+00> : vector<8x384xf32>
    %59 = tpu.matmul %58, %13, %cst_28 {dimension_numbers = #tpu.dot_dimension_numbers<[1], [0], [0], [1], [0, 0, 1, 1], [], []>} : vector<8x128xbf16>, vector<128x384xbf16>, vector<8x384xf32> -> vector<8x384xf32>
    %60 = vector.extract_strided_slice %57 {offsets = [0, 0], sizes = [8, 128], strides = [1, 1]} : vector<8x384xf32> to vector<8x128xf32>
    %61 = vector.extract_strided_slice %59 {offsets = [0, 0], sizes = [8, 128], strides = [1, 1]} : vector<8x384xf32> to vector<8x128xf32>
    %62 = arith.addf %60, %61 : vector<8x128xf32>
    %63 = arith.negf %62 : vector<8x128xf32>
    %64 = math.exp %63 : vector<8x128xf32>
    %cst_29 = arith.constant 1.000000e+00 : f32
    %65 = vector.broadcast %cst_29 : f32 to vector<8x128xf32>
    %66 = arith.addf %65, %64 : vector<8x128xf32>
    %67 = arith.divf %65, %66 : vector<8x128xf32>
    %68 = vector.extract_strided_slice %57 {offsets = [0, 128], sizes = [8, 128], strides = [1, 1]} : vector<8x384xf32> to vector<8x128xf32>
    %69 = vector.extract_strided_slice %59 {offsets = [0, 128], sizes = [8, 128], strides = [1, 1]} : vector<8x384xf32> to vector<8x128xf32>
    %70 = arith.addf %68, %69 : vector<8x128xf32>
    %71 = arith.negf %70 : vector<8x128xf32>
    %72 = math.exp %71 : vector<8x128xf32>
    %cst_30 = arith.constant 1.000000e+00 : f32
    %73 = vector.broadcast %cst_30 : f32 to vector<8x128xf32>
    %74 = arith.addf %73, %72 : vector<8x128xf32>
    %75 = arith.divf %73, %74 : vector<8x128xf32>
    %76 = vector.extract_strided_slice %57 {offsets = [0, 256], sizes = [8, 128], strides = [1, 1]} : vector<8x384xf32> to vector<8x128xf32>
    %77 = vector.extract_strided_slice %59 {offsets = [0, 256], sizes = [8, 128], strides = [1, 1]} : vector<8x384xf32> to vector<8x128xf32>
    %78 = arith.addf %77, %17 : vector<8x128xf32>
    %79 = arith.mulf %67, %78 : vector<8x128xf32>
    %80 = arith.addf %76, %79 : vector<8x128xf32>
    %81 = math.tanh %80 : vector<8x128xf32>
    %cst_31 = arith.constant 1.000000e+00 : f32
    %82 = vector.broadcast %cst_31 : f32 to vector<8x128xf32>
    %83 = arith.subf %82, %75 : vector<8x128xf32>
    %84 = arith.mulf %83, %81 : vector<8x128xf32>
    %85 = arith.mulf %75, %50 : vector<8x128xf32>
    %86 = arith.addf %84, %85 : vector<8x128xf32>
    %87 = arith.index_cast %c1_i32 : i32 to index
    %c0_32 = arith.constant 0 : index
    %c0_33 = arith.constant 0 : index
    %88 = vector.load %arg9[%87, %c0_32, %c0_33] : memref<8x8x128xf32, #tpu.memory_space<vmem>>, vector<1x8x128xf32>
    %89 = vector.shape_cast %88 : vector<1x8x128xf32> to vector<8x128xf32>
    %90 = vector.shape_cast %86 : vector<8x128xf32> to vector<1x8x128xf32>
    tpu.vector_store %arg9[%87, %c0_32, %c0_33], %90 {strides = array<i32>} : memref<8x8x128xf32, #tpu.memory_space<vmem>>, vector<1x8x128xf32>,
    %c2_i32 = arith.constant 2 : i32
    %91 = arith.index_cast %c2_i32 : i32 to index
    %c0_34 = arith.constant 0 : index
    %c0_35 = arith.constant 0 : index
    %92 = vector.load %arg8[%91, %c0_34, %c0_35] : memref<8x8x384xf32, #tpu.memory_space<vmem>>, vector<1x8x384xf32>
    %93 = vector.shape_cast %92 : vector<1x8x384xf32> to vector<8x384xf32>
    %94 = arith.truncf %86 : vector<8x128xf32> to vector<8x128xbf16>
    %cst_36 = arith.constant dense<0.000000e+00> : vector<8x384xf32>
    %95 = tpu.matmul %94, %13, %cst_36 {dimension_numbers = #tpu.dot_dimension_numbers<[1], [0], [0], [1], [0, 0, 1, 1], [], []>} : vector<8x128xbf16>, vector<128x384xbf16>, vector<8x384xf32> -> vector<8x384xf32>
    %96 = vector.extract_strided_slice %93 {offsets = [0, 0], sizes = [8, 128], strides = [1, 1]} : vector<8x384xf32> to vector<8x128xf32>
    %97 = vector.extract_strided_slice %95 {offsets = [0, 0], sizes = [8, 128], strides = [1, 1]} : vector<8x384xf32> to vector<8x128xf32>
    %98 = arith.addf %96, %97 : vector<8x128xf32>
    %99 = arith.negf %98 : vector<8x128xf32>
    %100 = math.exp %99 : vector<8x128xf32>
    %cst_37 = arith.constant 1.000000e+00 : f32
    %101 = vector.broadcast %cst_37 : f32 to vector<8x128xf32>
    %102 = arith.addf %101, %100 : vector<8x128xf32>
    %103 = arith.divf %101, %102 : vector<8x128xf32>
    %104 = vector.extract_strided_slice %93 {offsets = [0, 128], sizes = [8, 128], strides = [1, 1]} : vector<8x384xf32> to vector<8x128xf32>
    %105 = vector.extract_strided_slice %95 {offsets = [0, 128], sizes = [8, 128], strides = [1, 1]} : vector<8x384xf32> to vector<8x128xf32>
    %106 = arith.addf %104, %105 : vector<8x128xf32>
    %107 = arith.negf %106 : vector<8x128xf32>
    %108 = math.exp %107 : vector<8x128xf32>
    %cst_38 = arith.constant 1.000000e+00 : f32
    %109 = vector.broadcast %cst_38 : f32 to vector<8x128xf32>
    %110 = arith.addf %109, %108 : vector<8x128xf32>
    %111 = arith.divf %109, %110 : vector<8x128xf32>
    %112 = vector.extract_strided_slice %93 {offsets = [0, 256], sizes = [8, 128], strides = [1, 1]} : vector<8x384xf32> to vector<8x128xf32>
    %113 = vector.extract_strided_slice %95 {offsets = [0, 256], sizes = [8, 128], strides = [1, 1]} : vector<8x384xf32> to vector<8x128xf32>
    %114 = arith.addf %113, %17 : vector<8x128xf32>
    %115 = arith.mulf %103, %114 : vector<8x128xf32>
    %116 = arith.addf %112, %115 : vector<8x128xf32>
    %117 = math.tanh %116 : vector<8x128xf32>
    %cst_39 = arith.constant 1.000000e+00 : f32
    %118 = vector.broadcast %cst_39 : f32 to vector<8x128xf32>
    %119 = arith.subf %118, %111 : vector<8x128xf32>
    %120 = arith.mulf %119, %117 : vector<8x128xf32>
    %121 = arith.mulf %111, %86 : vector<8x128xf32>
    %122 = arith.addf %120, %121 : vector<8x128xf32>
    %123 = arith.index_cast %c2_i32 : i32 to index
    %c0_40 = arith.constant 0 : index
    %c0_41 = arith.constant 0 : index
    %124 = vector.load %arg9[%123, %c0_40, %c0_41] : memref<8x8x128xf32, #tpu.memory_space<vmem>>, vector<1x8x128xf32>
    %125 = vector.shape_cast %124 : vector<1x8x128xf32> to vector<8x128xf32>
    %126 = vector.shape_cast %122 : vector<8x128xf32> to vector<1x8x128xf32>
    tpu.vector_store %arg9[%123, %c0_40, %c0_41], %126 {strides = array<i32>} : memref<8x8x128xf32, #tpu.memory_space<vmem>>, vector<1x8x128xf32>,
    %c3_i32 = arith.constant 3 : i32
    %127 = arith.index_cast %c3_i32 : i32 to index
    %c0_42 = arith.constant 0 : index
    %c0_43 = arith.constant 0 : index
    %128 = vector.load %arg8[%127, %c0_42, %c0_43] : memref<8x8x384xf32, #tpu.memory_space<vmem>>, vector<1x8x384xf32>
    %129 = vector.shape_cast %128 : vector<1x8x384xf32> to vector<8x384xf32>
    %130 = arith.truncf %122 : vector<8x128xf32> to vector<8x128xbf16>
    %cst_44 = arith.constant dense<0.000000e+00> : vector<8x384xf32>
    %131 = tpu.matmul %130, %13, %cst_44 {dimension_numbers = #tpu.dot_dimension_numbers<[1], [0], [0], [1], [0, 0, 1, 1], [], []>} : vector<8x128xbf16>, vector<128x384xbf16>, vector<8x384xf32> -> vector<8x384xf32>
    %132 = vector.extract_strided_slice %129 {offsets = [0, 0], sizes = [8, 128], strides = [1, 1]} : vector<8x384xf32> to vector<8x128xf32>
    %133 = vector.extract_strided_slice %131 {offsets = [0, 0], sizes = [8, 128], strides = [1, 1]} : vector<8x384xf32> to vector<8x128xf32>
    %134 = arith.addf %132, %133 : vector<8x128xf32>
    %135 = arith.negf %134 : vector<8x128xf32>
    %136 = math.exp %135 : vector<8x128xf32>
    %cst_45 = arith.constant 1.000000e+00 : f32
    %137 = vector.broadcast %cst_45 : f32 to vector<8x128xf32>
    %138 = arith.addf %137, %136 : vector<8x128xf32>
    %139 = arith.divf %137, %138 : vector<8x128xf32>
    %140 = vector.extract_strided_slice %129 {offsets = [0, 128], sizes = [8, 128], strides = [1, 1]} : vector<8x384xf32> to vector<8x128xf32>
    %141 = vector.extract_strided_slice %131 {offsets = [0, 128], sizes = [8, 128], strides = [1, 1]} : vector<8x384xf32> to vector<8x128xf32>
    %142 = arith.addf %140, %141 : vector<8x128xf32>
    %143 = arith.negf %142 : vector<8x128xf32>
    %144 = math.exp %143 : vector<8x128xf32>
    %cst_46 = arith.constant 1.000000e+00 : f32
    %145 = vector.broadcast %cst_46 : f32 to vector<8x128xf32>
    %146 = arith.addf %145, %144 : vector<8x128xf32>
    %147 = arith.divf %145, %146 : vector<8x128xf32>
    %148 = vector.extract_strided_slice %129 {offsets = [0, 256], sizes = [8, 128], strides = [1, 1]} : vector<8x384xf32> to vector<8x128xf32>
    %149 = vector.extract_strided_slice %131 {offsets = [0, 256], sizes = [8, 128], strides = [1, 1]} : vector<8x384xf32> to vector<8x128xf32>
    %150 = arith.addf %149, %17 : vector<8x128xf32>
    %151 = arith.mulf %139, %150 : vector<8x128xf32>
    %152 = arith.addf %148, %151 : vector<8x128xf32>
    %153 = math.tanh %152 : vector<8x128xf32>
    %cst_47 = arith.constant 1.000000e+00 : f32
    %154 = vector.broadcast %cst_47 : f32 to vector<8x128xf32>
    %155 = arith.subf %154, %147 : vector<8x128xf32>
    %156 = arith.mulf %155, %153 : vector<8x128xf32>
    %157 = arith.mulf %147, %122 : vector<8x128xf32>
    %158 = arith.addf %156, %157 : vector<8x128xf32>
    %159 = arith.index_cast %c3_i32 : i32 to index
    %c0_48 = arith.constant 0 : index
    %c0_49 = arith.constant 0 : index
    %160 = vector.load %arg9[%159, %c0_48, %c0_49] : memref<8x8x128xf32, #tpu.memory_space<vmem>>, vector<1x8x128xf32>
    %161 = vector.shape_cast %160 : vector<1x8x128xf32> to vector<8x128xf32>
    %162 = vector.shape_cast %158 : vector<8x128xf32> to vector<1x8x128xf32>
    tpu.vector_store %arg9[%159, %c0_48, %c0_49], %162 {strides = array<i32>} : memref<8x8x128xf32, #tpu.memory_space<vmem>>, vector<1x8x128xf32>,
    %c4_i32 = arith.constant 4 : i32
    %163 = arith.index_cast %c4_i32 : i32 to index
    %c0_50 = arith.constant 0 : index
    %c0_51 = arith.constant 0 : index
    %164 = vector.load %arg8[%163, %c0_50, %c0_51] : memref<8x8x384xf32, #tpu.memory_space<vmem>>, vector<1x8x384xf32>
    %165 = vector.shape_cast %164 : vector<1x8x384xf32> to vector<8x384xf32>
    %166 = arith.truncf %158 : vector<8x128xf32> to vector<8x128xbf16>
    %cst_52 = arith.constant dense<0.000000e+00> : vector<8x384xf32>
    %167 = tpu.matmul %166, %13, %cst_52 {dimension_numbers = #tpu.dot_dimension_numbers<[1], [0], [0], [1], [0, 0, 1, 1], [], []>} : vector<8x128xbf16>, vector<128x384xbf16>, vector<8x384xf32> -> vector<8x384xf32>
    %168 = vector.extract_strided_slice %165 {offsets = [0, 0], sizes = [8, 128], strides = [1, 1]} : vector<8x384xf32> to vector<8x128xf32>
    %169 = vector.extract_strided_slice %167 {offsets = [0, 0], sizes = [8, 128], strides = [1, 1]} : vector<8x384xf32> to vector<8x128xf32>
    %170 = arith.addf %168, %169 : vector<8x128xf32>
    %171 = arith.negf %170 : vector<8x128xf32>
    %172 = math.exp %171 : vector<8x128xf32>
    %cst_53 = arith.constant 1.000000e+00 : f32
    %173 = vector.broadcast %cst_53 : f32 to vector<8x128xf32>
    %174 = arith.addf %173, %172 : vector<8x128xf32>
    %175 = arith.divf %173, %174 : vector<8x128xf32>
    %176 = vector.extract_strided_slice %165 {offsets = [0, 128], sizes = [8, 128], strides = [1, 1]} : vector<8x384xf32> to vector<8x128xf32>
    %177 = vector.extract_strided_slice %167 {offsets = [0, 128], sizes = [8, 128], strides = [1, 1]} : vector<8x384xf32> to vector<8x128xf32>
    %178 = arith.addf %176, %177 : vector<8x128xf32>
    %179 = arith.negf %178 : vector<8x128xf32>
    %180 = math.exp %179 : vector<8x128xf32>
    %cst_54 = arith.constant 1.000000e+00 : f32
    %181 = vector.broadcast %cst_54 : f32 to vector<8x128xf32>
    %182 = arith.addf %181, %180 : vector<8x128xf32>
    %183 = arith.divf %181, %182 : vector<8x128xf32>
    %184 = vector.extract_strided_slice %165 {offsets = [0, 256], sizes = [8, 128], strides = [1, 1]} : vector<8x384xf32> to vector<8x128xf32>
    %185 = vector.extract_strided_slice %167 {offsets = [0, 256], sizes = [8, 128], strides = [1, 1]} : vector<8x384xf32> to vector<8x128xf32>
    %186 = arith.addf %185, %17 : vector<8x128xf32>
    %187 = arith.mulf %175, %186 : vector<8x128xf32>
    %188 = arith.addf %184, %187 : vector<8x128xf32>
    %189 = math.tanh %188 : vector<8x128xf32>
    %cst_55 = arith.constant 1.000000e+00 : f32
    %190 = vector.broadcast %cst_55 : f32 to vector<8x128xf32>
    %191 = arith.subf %190, %183 : vector<8x128xf32>
    %192 = arith.mulf %191, %189 : vector<8x128xf32>
    %193 = arith.mulf %183, %158 : vector<8x128xf32>
    %194 = arith.addf %192, %193 : vector<8x128xf32>
    %195 = arith.index_cast %c4_i32 : i32 to index
    %c0_56 = arith.constant 0 : index
    %c0_57 = arith.constant 0 : index
    %196 = vector.load %arg9[%195, %c0_56, %c0_57] : memref<8x8x128xf32, #tpu.memory_space<vmem>>, vector<1x8x128xf32>
    %197 = vector.shape_cast %196 : vector<1x8x128xf32> to vector<8x128xf32>
    %198 = vector.shape_cast %194 : vector<8x128xf32> to vector<1x8x128xf32>
    tpu.vector_store %arg9[%195, %c0_56, %c0_57], %198 {strides = array<i32>} : memref<8x8x128xf32, #tpu.memory_space<vmem>>, vector<1x8x128xf32>,
    %c5_i32 = arith.constant 5 : i32
    %199 = arith.index_cast %c5_i32 : i32 to index
    %c0_58 = arith.constant 0 : index
    %c0_59 = arith.constant 0 : index
    %200 = vector.load %arg8[%199, %c0_58, %c0_59] : memref<8x8x384xf32, #tpu.memory_space<vmem>>, vector<1x8x384xf32>
    %201 = vector.shape_cast %200 : vector<1x8x384xf32> to vector<8x384xf32>
    %202 = arith.truncf %194 : vector<8x128xf32> to vector<8x128xbf16>
    %cst_60 = arith.constant dense<0.000000e+00> : vector<8x384xf32>
    %203 = tpu.matmul %202, %13, %cst_60 {dimension_numbers = #tpu.dot_dimension_numbers<[1], [0], [0], [1], [0, 0, 1, 1], [], []>} : vector<8x128xbf16>, vector<128x384xbf16>, vector<8x384xf32> -> vector<8x384xf32>
    %204 = vector.extract_strided_slice %201 {offsets = [0, 0], sizes = [8, 128], strides = [1, 1]} : vector<8x384xf32> to vector<8x128xf32>
    %205 = vector.extract_strided_slice %203 {offsets = [0, 0], sizes = [8, 128], strides = [1, 1]} : vector<8x384xf32> to vector<8x128xf32>
    %206 = arith.addf %204, %205 : vector<8x128xf32>
    %207 = arith.negf %206 : vector<8x128xf32>
    %208 = math.exp %207 : vector<8x128xf32>
    %cst_61 = arith.constant 1.000000e+00 : f32
    %209 = vector.broadcast %cst_61 : f32 to vector<8x128xf32>
    %210 = arith.addf %209, %208 : vector<8x128xf32>
    %211 = arith.divf %209, %210 : vector<8x128xf32>
    %212 = vector.extract_strided_slice %201 {offsets = [0, 128], sizes = [8, 128], strides = [1, 1]} : vector<8x384xf32> to vector<8x128xf32>
    %213 = vector.extract_strided_slice %203 {offsets = [0, 128], sizes = [8, 128], strides = [1, 1]} : vector<8x384xf32> to vector<8x128xf32>
    %214 = arith.addf %212, %213 : vector<8x128xf32>
    %215 = arith.negf %214 : vector<8x128xf32>
    %216 = math.exp %215 : vector<8x128xf32>
    %cst_62 = arith.constant 1.000000e+00 : f32
    %217 = vector.broadcast %cst_62 : f32 to vector<8x128xf32>
    %218 = arith.addf %217, %216 : vector<8x128xf32>
    %219 = arith.divf %217, %218 : vector<8x128xf32>
    %220 = vector.extract_strided_slice %201 {offsets = [0, 256], sizes = [8, 128], strides = [1, 1]} : vector<8x384xf32> to vector<8x128xf32>
    %221 = vector.extract_strided_slice %203 {offsets = [0, 256], sizes = [8, 128], strides = [1, 1]} : vector<8x384xf32> to vector<8x128xf32>
    %222 = arith.addf %221, %17 : vector<8x128xf32>
    %223 = arith.mulf %211, %222 : vector<8x128xf32>
    %224 = arith.addf %220, %223 : vector<8x128xf32>
    %225 = math.tanh %224 : vector<8x128xf32>
    %cst_63 = arith.constant 1.000000e+00 : f32
    %226 = vector.broadcast %cst_63 : f32 to vector<8x128xf32>
    %227 = arith.subf %226, %219 : vector<8x128xf32>
    %228 = arith.mulf %227, %225 : vector<8x128xf32>
    %229 = arith.mulf %219, %194 : vector<8x128xf32>
    %230 = arith.addf %228, %229 : vector<8x128xf32>
    %231 = arith.index_cast %c5_i32 : i32 to index
    %c0_64 = arith.constant 0 : index
    %c0_65 = arith.constant 0 : index
    %232 = vector.load %arg9[%231, %c0_64, %c0_65] : memref<8x8x128xf32, #tpu.memory_space<vmem>>, vector<1x8x128xf32>
    %233 = vector.shape_cast %232 : vector<1x8x128xf32> to vector<8x128xf32>
    %234 = vector.shape_cast %230 : vector<8x128xf32> to vector<1x8x128xf32>
    tpu.vector_store %arg9[%231, %c0_64, %c0_65], %234 {strides = array<i32>} : memref<8x8x128xf32, #tpu.memory_space<vmem>>, vector<1x8x128xf32>,
    %c6_i32 = arith.constant 6 : i32
    %235 = arith.index_cast %c6_i32 : i32 to index
    %c0_66 = arith.constant 0 : index
    %c0_67 = arith.constant 0 : index
    %236 = vector.load %arg8[%235, %c0_66, %c0_67] : memref<8x8x384xf32, #tpu.memory_space<vmem>>, vector<1x8x384xf32>
    %237 = vector.shape_cast %236 : vector<1x8x384xf32> to vector<8x384xf32>
    %238 = arith.truncf %230 : vector<8x128xf32> to vector<8x128xbf16>
    %cst_68 = arith.constant dense<0.000000e+00> : vector<8x384xf32>
    %239 = tpu.matmul %238, %13, %cst_68 {dimension_numbers = #tpu.dot_dimension_numbers<[1], [0], [0], [1], [0, 0, 1, 1], [], []>} : vector<8x128xbf16>, vector<128x384xbf16>, vector<8x384xf32> -> vector<8x384xf32>
    %240 = vector.extract_strided_slice %237 {offsets = [0, 0], sizes = [8, 128], strides = [1, 1]} : vector<8x384xf32> to vector<8x128xf32>
    %241 = vector.extract_strided_slice %239 {offsets = [0, 0], sizes = [8, 128], strides = [1, 1]} : vector<8x384xf32> to vector<8x128xf32>
    %242 = arith.addf %240, %241 : vector<8x128xf32>
    %243 = arith.negf %242 : vector<8x128xf32>
    %244 = math.exp %243 : vector<8x128xf32>
    %cst_69 = arith.constant 1.000000e+00 : f32
    %245 = vector.broadcast %cst_69 : f32 to vector<8x128xf32>
    %246 = arith.addf %245, %244 : vector<8x128xf32>
    %247 = arith.divf %245, %246 : vector<8x128xf32>
    %248 = vector.extract_strided_slice %237 {offsets = [0, 128], sizes = [8, 128], strides = [1, 1]} : vector<8x384xf32> to vector<8x128xf32>
    %249 = vector.extract_strided_slice %239 {offsets = [0, 128], sizes = [8, 128], strides = [1, 1]} : vector<8x384xf32> to vector<8x128xf32>
    %250 = arith.addf %248, %249 : vector<8x128xf32>
    %251 = arith.negf %250 : vector<8x128xf32>
    %252 = math.exp %251 : vector<8x128xf32>
    %cst_70 = arith.constant 1.000000e+00 : f32
    %253 = vector.broadcast %cst_70 : f32 to vector<8x128xf32>
    %254 = arith.addf %253, %252 : vector<8x128xf32>
    %255 = arith.divf %253, %254 : vector<8x128xf32>
    %256 = vector.extract_strided_slice %237 {offsets = [0, 256], sizes = [8, 128], strides = [1, 1]} : vector<8x384xf32> to vector<8x128xf32>
    %257 = vector.extract_strided_slice %239 {offsets = [0, 256], sizes = [8, 128], strides = [1, 1]} : vector<8x384xf32> to vector<8x128xf32>
    %258 = arith.addf %257, %17 : vector<8x128xf32>
    %259 = arith.mulf %247, %258 : vector<8x128xf32>
    %260 = arith.addf %256, %259 : vector<8x128xf32>
    %261 = math.tanh %260 : vector<8x128xf32>
    %cst_71 = arith.constant 1.000000e+00 : f32
    %262 = vector.broadcast %cst_71 : f32 to vector<8x128xf32>
    %263 = arith.subf %262, %255 : vector<8x128xf32>
    %264 = arith.mulf %263, %261 : vector<8x128xf32>
    %265 = arith.mulf %255, %230 : vector<8x128xf32>
    %266 = arith.addf %264, %265 : vector<8x128xf32>
    %267 = arith.index_cast %c6_i32 : i32 to index
    %c0_72 = arith.constant 0 : index
    %c0_73 = arith.constant 0 : index
    %268 = vector.load %arg9[%267, %c0_72, %c0_73] : memref<8x8x128xf32, #tpu.memory_space<vmem>>, vector<1x8x128xf32>
    %269 = vector.shape_cast %268 : vector<1x8x128xf32> to vector<8x128xf32>
    %270 = vector.shape_cast %266 : vector<8x128xf32> to vector<1x8x128xf32>
    tpu.vector_store %arg9[%267, %c0_72, %c0_73], %270 {strides = array<i32>} : memref<8x8x128xf32, #tpu.memory_space<vmem>>, vector<1x8x128xf32>,
    %c7_i32 = arith.constant 7 : i32
    %271 = arith.index_cast %c7_i32 : i32 to index
    %c0_74 = arith.constant 0 : index
    %c0_75 = arith.constant 0 : index
    %272 = vector.load %arg8[%271, %c0_74, %c0_75] : memref<8x8x384xf32, #tpu.memory_space<vmem>>, vector<1x8x384xf32>
    %273 = vector.shape_cast %272 : vector<1x8x384xf32> to vector<8x384xf32>
    %274 = arith.truncf %266 : vector<8x128xf32> to vector<8x128xbf16>
    %cst_76 = arith.constant dense<0.000000e+00> : vector<8x384xf32>
    %275 = tpu.matmul %274, %13, %cst_76 {dimension_numbers = #tpu.dot_dimension_numbers<[1], [0], [0], [1], [0, 0, 1, 1], [], []>} : vector<8x128xbf16>, vector<128x384xbf16>, vector<8x384xf32> -> vector<8x384xf32>
    %276 = vector.extract_strided_slice %273 {offsets = [0, 0], sizes = [8, 128], strides = [1, 1]} : vector<8x384xf32> to vector<8x128xf32>
    %277 = vector.extract_strided_slice %275 {offsets = [0, 0], sizes = [8, 128], strides = [1, 1]} : vector<8x384xf32> to vector<8x128xf32>
    %278 = arith.addf %276, %277 : vector<8x128xf32>
    %279 = arith.negf %278 : vector<8x128xf32>
    %280 = math.exp %279 : vector<8x128xf32>
    %cst_77 = arith.constant 1.000000e+00 : f32
    %281 = vector.broadcast %cst_77 : f32 to vector<8x128xf32>
    %282 = arith.addf %281, %280 : vector<8x128xf32>
    %283 = arith.divf %281, %282 : vector<8x128xf32>
    %284 = vector.extract_strided_slice %273 {offsets = [0, 128], sizes = [8, 128], strides = [1, 1]} : vector<8x384xf32> to vector<8x128xf32>
    %285 = vector.extract_strided_slice %275 {offsets = [0, 128], sizes = [8, 128], strides = [1, 1]} : vector<8x384xf32> to vector<8x128xf32>
    %286 = arith.addf %284, %285 : vector<8x128xf32>
    %287 = arith.negf %286 : vector<8x128xf32>
    %288 = math.exp %287 : vector<8x128xf32>
    %cst_78 = arith.constant 1.000000e+00 : f32
    %289 = vector.broadcast %cst_78 : f32 to vector<8x128xf32>
    %290 = arith.addf %289, %288 : vector<8x128xf32>
    %291 = arith.divf %289, %290 : vector<8x128xf32>
    %292 = vector.extract_strided_slice %273 {offsets = [0, 256], sizes = [8, 128], strides = [1, 1]} : vector<8x384xf32> to vector<8x128xf32>
    %293 = vector.extract_strided_slice %275 {offsets = [0, 256], sizes = [8, 128], strides = [1, 1]} : vector<8x384xf32> to vector<8x128xf32>
    %294 = arith.addf %293, %17 : vector<8x128xf32>
    %295 = arith.mulf %283, %294 : vector<8x128xf32>
    %296 = arith.addf %292, %295 : vector<8x128xf32>
    %297 = math.tanh %296 : vector<8x128xf32>
    %cst_79 = arith.constant 1.000000e+00 : f32
    %298 = vector.broadcast %cst_79 : f32 to vector<8x128xf32>
    %299 = arith.subf %298, %291 : vector<8x128xf32>
    %300 = arith.mulf %299, %297 : vector<8x128xf32>
    %301 = arith.mulf %291, %266 : vector<8x128xf32>
    %302 = arith.addf %300, %301 : vector<8x128xf32>
    %303 = arith.index_cast %c7_i32 : i32 to index
    %c0_80 = arith.constant 0 : index
    %c0_81 = arith.constant 0 : index
    %304 = vector.load %arg9[%303, %c0_80, %c0_81] : memref<8x8x128xf32, #tpu.memory_space<vmem>>, vector<1x8x128xf32>
    %305 = vector.shape_cast %304 : vector<1x8x128xf32> to vector<8x128xf32>
    %306 = vector.shape_cast %302 : vector<8x128xf32> to vector<1x8x128xf32>
    tpu.vector_store %arg9[%303, %c0_80, %c0_81], %306 {strides = array<i32>} : memref<8x8x128xf32, #tpu.memory_space<vmem>>, vector<1x8x128xf32>,
    %c8_i32 = arith.constant 8 : i32
    %c0_82 = arith.constant 0 : index
    %c0_83 = arith.constant 0 : index
    %c0_84 = arith.constant 0 : index
    %307 = vector.load %arg9[%c0_82, %c0_83, %c0_84] : memref<8x8x128xf32, #tpu.memory_space<vmem>>, vector<8x8x128xf32>
    %308 = vector.shape_cast %307 : vector<8x8x128xf32> to vector<64x128xf32>
    %309 = arith.truncf %308 : vector<64x128xf32> to vector<64x128xbf16>
    %c1 = arith.constant 1 : index
    %c0_85 = arith.constant 0 : index
    %c0_86 = arith.constant 0 : index
    %310 = vector.load %arg1[%c1, %c0_85, %c0_86] : memref<2x128x384xbf16, #tpu.memory_space<vmem>>, vector<1x128x384xbf16>
    %311 = vector.shape_cast %310 : vector<1x128x384xbf16> to vector<128x384xbf16>
    %cst_87 = arith.constant dense<0.000000e+00> : vector<64x384xf32>
    %312 = tpu.matmul %309, %311, %cst_87 {dimension_numbers = #tpu.dot_dimension_numbers<[1], [0], [0], [1], [0, 0, 1, 1], [], []>} : vector<64x128xbf16>, vector<128x384xbf16>, vector<64x384xf32> -> vector<64x384xf32>
    %c1_88 = arith.constant 1 : index
    %c0_89 = arith.constant 0 : index
    %c0_90 = arith.constant 0 : index
    %313 = vector.load %arg3[%c1_88, %c0_89, %c0_90] : memref<2x1x384xf32, #tpu.memory_space<vmem>>, vector<1x1x384xf32>
    %314 = vector.shape_cast %313 : vector<1x1x384xf32> to vector<1x384xf32>
    %315 = vector.broadcast %314 : vector<1x384xf32> to vector<64x384xf32>
    %316 = arith.addf %312, %315 : vector<64x384xf32>
    %317 = vector.shape_cast %316 : vector<64x384xf32> to vector<8x8x384xf32>
    %c0_91 = arith.constant 0 : index
    %c0_92 = arith.constant 0 : index
    %c0_93 = arith.constant 0 : index
    %318 = vector.load %arg8[%c0_91, %c0_92, %c0_93] : memref<8x8x384xf32, #tpu.memory_space<vmem>>, vector<8x8x384xf32>
    tpu.vector_store %arg8[%c0_91, %c0_92, %c0_93], %317 {strides = array<i32>} : memref<8x8x384xf32, #tpu.memory_space<vmem>>, vector<8x8x384xf32>,
    %c1_94 = arith.constant 1 : index
    %c0_95 = arith.constant 0 : index
    %c0_96 = arith.constant 0 : index
    %319 = vector.load %arg2[%c1_94, %c0_95, %c0_96] : memref<2x128x384xbf16, #tpu.memory_space<vmem>>, vector<1x128x384xbf16>
    %320 = vector.shape_cast %319 : vector<1x128x384xbf16> to vector<128x384xbf16>
    %c1_97 = arith.constant 1 : index
    %c0_98 = arith.constant 0 : index
    %c0_99 = arith.constant 0 : index
    %321 = vector.load %arg4[%c1_97, %c0_98, %c0_99] : memref<2x1x128xf32, #tpu.memory_space<vmem>>, vector<1x1x128xf32>
    %322 = vector.shape_cast %321 : vector<1x1x128xf32> to vector<1x128xf32>
    %323 = vector.shape_cast %322 : vector<1x128xf32> to vector<1x128xf32>
    %324 = vector.broadcast %323 : vector<1x128xf32> to vector<8x128xf32>
    %cst_100 = arith.constant 0.000000e+00 : f32
    %325 = vector.broadcast %cst_100 : f32 to vector<8x128xf32>
    %c0_i32_101 = arith.constant 0 : i32
    %326 = arith.index_cast %c0_i32_101 : i32 to index
    %c0_102 = arith.constant 0 : index
    %c0_103 = arith.constant 0 : index
    %327 = vector.load %arg8[%326, %c0_102, %c0_103] : memref<8x8x384xf32, #tpu.memory_space<vmem>>, vector<1x8x384xf32>
    %328 = vector.shape_cast %327 : vector<1x8x384xf32> to vector<8x384xf32>
    %329 = arith.truncf %325 : vector<8x128xf32> to vector<8x128xbf16>
    %cst_104 = arith.constant dense<0.000000e+00> : vector<8x384xf32>
    %330 = tpu.matmul %329, %320, %cst_104 {dimension_numbers = #tpu.dot_dimension_numbers<[1], [0], [0], [1], [0, 0, 1, 1], [], []>} : vector<8x128xbf16>, vector<128x384xbf16>, vector<8x384xf32> -> vector<8x384xf32>
    %331 = vector.extract_strided_slice %328 {offsets = [0, 0], sizes = [8, 128], strides = [1, 1]} : vector<8x384xf32> to vector<8x128xf32>
    %332 = vector.extract_strided_slice %330 {offsets = [0, 0], sizes = [8, 128], strides = [1, 1]} : vector<8x384xf32> to vector<8x128xf32>
    %333 = arith.addf %331, %332 : vector<8x128xf32>
    %334 = arith.negf %333 : vector<8x128xf32>
    %335 = math.exp %334 : vector<8x128xf32>
    %cst_105 = arith.constant 1.000000e+00 : f32
    %336 = vector.broadcast %cst_105 : f32 to vector<8x128xf32>
    %337 = arith.addf %336, %335 : vector<8x128xf32>
    %338 = arith.divf %336, %337 : vector<8x128xf32>
    %339 = vector.extract_strided_slice %328 {offsets = [0, 128], sizes = [8, 128], strides = [1, 1]} : vector<8x384xf32> to vector<8x128xf32>
    %340 = vector.extract_strided_slice %330 {offsets = [0, 128], sizes = [8, 128], strides = [1, 1]} : vector<8x384xf32> to vector<8x128xf32>
    %341 = arith.addf %339, %340 : vector<8x128xf32>
    %342 = arith.negf %341 : vector<8x128xf32>
    %343 = math.exp %342 : vector<8x128xf32>
    %cst_106 = arith.constant 1.000000e+00 : f32
    %344 = vector.broadcast %cst_106 : f32 to vector<8x128xf32>
    %345 = arith.addf %344, %343 : vector<8x128xf32>
    %346 = arith.divf %344, %345 : vector<8x128xf32>
    %347 = vector.extract_strided_slice %328 {offsets = [0, 256], sizes = [8, 128], strides = [1, 1]} : vector<8x384xf32> to vector<8x128xf32>
    %348 = vector.extract_strided_slice %330 {offsets = [0, 256], sizes = [8, 128], strides = [1, 1]} : vector<8x384xf32> to vector<8x128xf32>
    %349 = arith.addf %348, %324 : vector<8x128xf32>
    %350 = arith.mulf %338, %349 : vector<8x128xf32>
    %351 = arith.addf %347, %350 : vector<8x128xf32>
    %352 = math.tanh %351 : vector<8x128xf32>
    %cst_107 = arith.constant 1.000000e+00 : f32
    %353 = vector.broadcast %cst_107 : f32 to vector<8x128xf32>
    %354 = arith.subf %353, %346 : vector<8x128xf32>
    %355 = arith.mulf %354, %352 : vector<8x128xf32>
    %356 = arith.mulf %346, %325 : vector<8x128xf32>
    %357 = arith.addf %355, %356 : vector<8x128xf32>
    %c1_i32_108 = arith.constant 1 : i32
    %358 = arith.index_cast %c1_i32_108 : i32 to index
    %c0_109 = arith.constant 0 : index
    %c0_110 = arith.constant 0 : index
    %359 = vector.load %arg8[%358, %c0_109, %c0_110] : memref<8x8x384xf32, #tpu.memory_space<vmem>>, vector<1x8x384xf32>
    %360 = vector.shape_cast %359 : vector<1x8x384xf32> to vector<8x384xf32>
    %361 = arith.truncf %357 : vector<8x128xf32> to vector<8x128xbf16>
    %cst_111 = arith.constant dense<0.000000e+00> : vector<8x384xf32>
    %362 = tpu.matmul %361, %320, %cst_111 {dimension_numbers = #tpu.dot_dimension_numbers<[1], [0], [0], [1], [0, 0, 1, 1], [], []>} : vector<8x128xbf16>, vector<128x384xbf16>, vector<8x384xf32> -> vector<8x384xf32>
    %363 = vector.extract_strided_slice %360 {offsets = [0, 0], sizes = [8, 128], strides = [1, 1]} : vector<8x384xf32> to vector<8x128xf32>
    %364 = vector.extract_strided_slice %362 {offsets = [0, 0], sizes = [8, 128], strides = [1, 1]} : vector<8x384xf32> to vector<8x128xf32>
    %365 = arith.addf %363, %364 : vector<8x128xf32>
    %366 = arith.negf %365 : vector<8x128xf32>
    %367 = math.exp %366 : vector<8x128xf32>
    %cst_112 = arith.constant 1.000000e+00 : f32
    %368 = vector.broadcast %cst_112 : f32 to vector<8x128xf32>
    %369 = arith.addf %368, %367 : vector<8x128xf32>
    %370 = arith.divf %368, %369 : vector<8x128xf32>
    %371 = vector.extract_strided_slice %360 {offsets = [0, 128], sizes = [8, 128], strides = [1, 1]} : vector<8x384xf32> to vector<8x128xf32>
    %372 = vector.extract_strided_slice %362 {offsets = [0, 128], sizes = [8, 128], strides = [1, 1]} : vector<8x384xf32> to vector<8x128xf32>
    %373 = arith.addf %371, %372 : vector<8x128xf32>
    %374 = arith.negf %373 : vector<8x128xf32>
    %375 = math.exp %374 : vector<8x128xf32>
    %cst_113 = arith.constant 1.000000e+00 : f32
    %376 = vector.broadcast %cst_113 : f32 to vector<8x128xf32>
    %377 = arith.addf %376, %375 : vector<8x128xf32>
    %378 = arith.divf %376, %377 : vector<8x128xf32>
    %379 = vector.extract_strided_slice %360 {offsets = [0, 256], sizes = [8, 128], strides = [1, 1]} : vector<8x384xf32> to vector<8x128xf32>
    %380 = vector.extract_strided_slice %362 {offsets = [0, 256], sizes = [8, 128], strides = [1, 1]} : vector<8x384xf32> to vector<8x128xf32>
    %381 = arith.addf %380, %324 : vector<8x128xf32>
    %382 = arith.mulf %370, %381 : vector<8x128xf32>
    %383 = arith.addf %379, %382 : vector<8x128xf32>
    %384 = math.tanh %383 : vector<8x128xf32>
    %cst_114 = arith.constant 1.000000e+00 : f32
    %385 = vector.broadcast %cst_114 : f32 to vector<8x128xf32>
    %386 = arith.subf %385, %378 : vector<8x128xf32>
    %387 = arith.mulf %386, %384 : vector<8x128xf32>
    %388 = arith.mulf %378, %357 : vector<8x128xf32>
    %389 = arith.addf %387, %388 : vector<8x128xf32>
    %c2_i32_115 = arith.constant 2 : i32
    %390 = arith.index_cast %c2_i32_115 : i32 to index
    %c0_116 = arith.constant 0 : index
    %c0_117 = arith.constant 0 : index
    %391 = vector.load %arg8[%390, %c0_116, %c0_117] : memref<8x8x384xf32, #tpu.memory_space<vmem>>, vector<1x8x384xf32>
    %392 = vector.shape_cast %391 : vector<1x8x384xf32> to vector<8x384xf32>
    %393 = arith.truncf %389 : vector<8x128xf32> to vector<8x128xbf16>
    %cst_118 = arith.constant dense<0.000000e+00> : vector<8x384xf32>
    %394 = tpu.matmul %393, %320, %cst_118 {dimension_numbers = #tpu.dot_dimension_numbers<[1], [0], [0], [1], [0, 0, 1, 1], [], []>} : vector<8x128xbf16>, vector<128x384xbf16>, vector<8x384xf32> -> vector<8x384xf32>
    %395 = vector.extract_strided_slice %392 {offsets = [0, 0], sizes = [8, 128], strides = [1, 1]} : vector<8x384xf32> to vector<8x128xf32>
    %396 = vector.extract_strided_slice %394 {offsets = [0, 0], sizes = [8, 128], strides = [1, 1]} : vector<8x384xf32> to vector<8x128xf32>
    %397 = arith.addf %395, %396 : vector<8x128xf32>
    %398 = arith.negf %397 : vector<8x128xf32>
    %399 = math.exp %398 : vector<8x128xf32>
    %cst_119 = arith.constant 1.000000e+00 : f32
    %400 = vector.broadcast %cst_119 : f32 to vector<8x128xf32>
    %401 = arith.addf %400, %399 : vector<8x128xf32>
    %402 = arith.divf %400, %401 : vector<8x128xf32>
    %403 = vector.extract_strided_slice %392 {offsets = [0, 128], sizes = [8, 128], strides = [1, 1]} : vector<8x384xf32> to vector<8x128xf32>
    %404 = vector.extract_strided_slice %394 {offsets = [0, 128], sizes = [8, 128], strides = [1, 1]} : vector<8x384xf32> to vector<8x128xf32>
    %405 = arith.addf %403, %404 : vector<8x128xf32>
    %406 = arith.negf %405 : vector<8x128xf32>
    %407 = math.exp %406 : vector<8x128xf32>
    %cst_120 = arith.constant 1.000000e+00 : f32
    %408 = vector.broadcast %cst_120 : f32 to vector<8x128xf32>
    %409 = arith.addf %408, %407 : vector<8x128xf32>
    %410 = arith.divf %408, %409 : vector<8x128xf32>
    %411 = vector.extract_strided_slice %392 {offsets = [0, 256], sizes = [8, 128], strides = [1, 1]} : vector<8x384xf32> to vector<8x128xf32>
    %412 = vector.extract_strided_slice %394 {offsets = [0, 256], sizes = [8, 128], strides = [1, 1]} : vector<8x384xf32> to vector<8x128xf32>
    %413 = arith.addf %412, %324 : vector<8x128xf32>
    %414 = arith.mulf %402, %413 : vector<8x128xf32>
    %415 = arith.addf %411, %414 : vector<8x128xf32>
    %416 = math.tanh %415 : vector<8x128xf32>
    %cst_121 = arith.constant 1.000000e+00 : f32
    %417 = vector.broadcast %cst_121 : f32 to vector<8x128xf32>
    %418 = arith.subf %417, %410 : vector<8x128xf32>
    %419 = arith.mulf %418, %416 : vector<8x128xf32>
    %420 = arith.mulf %410, %389 : vector<8x128xf32>
    %421 = arith.addf %419, %420 : vector<8x128xf32>
    %c3_i32_122 = arith.constant 3 : i32
    %422 = arith.index_cast %c3_i32_122 : i32 to index
    %c0_123 = arith.constant 0 : index
    %c0_124 = arith.constant 0 : index
    %423 = vector.load %arg8[%422, %c0_123, %c0_124] : memref<8x8x384xf32, #tpu.memory_space<vmem>>, vector<1x8x384xf32>
    %424 = vector.shape_cast %423 : vector<1x8x384xf32> to vector<8x384xf32>
    %425 = arith.truncf %421 : vector<8x128xf32> to vector<8x128xbf16>
    %cst_125 = arith.constant dense<0.000000e+00> : vector<8x384xf32>
    %426 = tpu.matmul %425, %320, %cst_125 {dimension_numbers = #tpu.dot_dimension_numbers<[1], [0], [0], [1], [0, 0, 1, 1], [], []>} : vector<8x128xbf16>, vector<128x384xbf16>, vector<8x384xf32> -> vector<8x384xf32>
    %427 = vector.extract_strided_slice %424 {offsets = [0, 0], sizes = [8, 128], strides = [1, 1]} : vector<8x384xf32> to vector<8x128xf32>
    %428 = vector.extract_strided_slice %426 {offsets = [0, 0], sizes = [8, 128], strides = [1, 1]} : vector<8x384xf32> to vector<8x128xf32>
    %429 = arith.addf %427, %428 : vector<8x128xf32>
    %430 = arith.negf %429 : vector<8x128xf32>
    %431 = math.exp %430 : vector<8x128xf32>
    %cst_126 = arith.constant 1.000000e+00 : f32
    %432 = vector.broadcast %cst_126 : f32 to vector<8x128xf32>
    %433 = arith.addf %432, %431 : vector<8x128xf32>
    %434 = arith.divf %432, %433 : vector<8x128xf32>
    %435 = vector.extract_strided_slice %424 {offsets = [0, 128], sizes = [8, 128], strides = [1, 1]} : vector<8x384xf32> to vector<8x128xf32>
    %436 = vector.extract_strided_slice %426 {offsets = [0, 128], sizes = [8, 128], strides = [1, 1]} : vector<8x384xf32> to vector<8x128xf32>
    %437 = arith.addf %435, %436 : vector<8x128xf32>
    %438 = arith.negf %437 : vector<8x128xf32>
    %439 = math.exp %438 : vector<8x128xf32>
    %cst_127 = arith.constant 1.000000e+00 : f32
    %440 = vector.broadcast %cst_127 : f32 to vector<8x128xf32>
    %441 = arith.addf %440, %439 : vector<8x128xf32>
    %442 = arith.divf %440, %441 : vector<8x128xf32>
    %443 = vector.extract_strided_slice %424 {offsets = [0, 256], sizes = [8, 128], strides = [1, 1]} : vector<8x384xf32> to vector<8x128xf32>
    %444 = vector.extract_strided_slice %426 {offsets = [0, 256], sizes = [8, 128], strides = [1, 1]} : vector<8x384xf32> to vector<8x128xf32>
    %445 = arith.addf %444, %324 : vector<8x128xf32>
    %446 = arith.mulf %434, %445 : vector<8x128xf32>
    %447 = arith.addf %443, %446 : vector<8x128xf32>
    %448 = math.tanh %447 : vector<8x128xf32>
    %cst_128 = arith.constant 1.000000e+00 : f32
    %449 = vector.broadcast %cst_128 : f32 to vector<8x128xf32>
    %450 = arith.subf %449, %442 : vector<8x128xf32>
    %451 = arith.mulf %450, %448 : vector<8x128xf32>
    %452 = arith.mulf %442, %421 : vector<8x128xf32>
    %453 = arith.addf %451, %452 : vector<8x128xf32>
    %c4_i32_129 = arith.constant 4 : i32
    %454 = arith.index_cast %c4_i32_129 : i32 to index
    %c0_130 = arith.constant 0 : index
    %c0_131 = arith.constant 0 : index
    %455 = vector.load %arg8[%454, %c0_130, %c0_131] : memref<8x8x384xf32, #tpu.memory_space<vmem>>, vector<1x8x384xf32>
    %456 = vector.shape_cast %455 : vector<1x8x384xf32> to vector<8x384xf32>
    %457 = arith.truncf %453 : vector<8x128xf32> to vector<8x128xbf16>
    %cst_132 = arith.constant dense<0.000000e+00> : vector<8x384xf32>
    %458 = tpu.matmul %457, %320, %cst_132 {dimension_numbers = #tpu.dot_dimension_numbers<[1], [0], [0], [1], [0, 0, 1, 1], [], []>} : vector<8x128xbf16>, vector<128x384xbf16>, vector<8x384xf32> -> vector<8x384xf32>
    %459 = vector.extract_strided_slice %456 {offsets = [0, 0], sizes = [8, 128], strides = [1, 1]} : vector<8x384xf32> to vector<8x128xf32>
    %460 = vector.extract_strided_slice %458 {offsets = [0, 0], sizes = [8, 128], strides = [1, 1]} : vector<8x384xf32> to vector<8x128xf32>
    %461 = arith.addf %459, %460 : vector<8x128xf32>
    %462 = arith.negf %461 : vector<8x128xf32>
    %463 = math.exp %462 : vector<8x128xf32>
    %cst_133 = arith.constant 1.000000e+00 : f32
    %464 = vector.broadcast %cst_133 : f32 to vector<8x128xf32>
    %465 = arith.addf %464, %463 : vector<8x128xf32>
    %466 = arith.divf %464, %465 : vector<8x128xf32>
    %467 = vector.extract_strided_slice %456 {offsets = [0, 128], sizes = [8, 128], strides = [1, 1]} : vector<8x384xf32> to vector<8x128xf32>
    %468 = vector.extract_strided_slice %458 {offsets = [0, 128], sizes = [8, 128], strides = [1, 1]} : vector<8x384xf32> to vector<8x128xf32>
    %469 = arith.addf %467, %468 : vector<8x128xf32>
    %470 = arith.negf %469 : vector<8x128xf32>
    %471 = math.exp %470 : vector<8x128xf32>
    %cst_134 = arith.constant 1.000000e+00 : f32
    %472 = vector.broadcast %cst_134 : f32 to vector<8x128xf32>
    %473 = arith.addf %472, %471 : vector<8x128xf32>
    %474 = arith.divf %472, %473 : vector<8x128xf32>
    %475 = vector.extract_strided_slice %456 {offsets = [0, 256], sizes = [8, 128], strides = [1, 1]} : vector<8x384xf32> to vector<8x128xf32>
    %476 = vector.extract_strided_slice %458 {offsets = [0, 256], sizes = [8, 128], strides = [1, 1]} : vector<8x384xf32> to vector<8x128xf32>
    %477 = arith.addf %476, %324 : vector<8x128xf32>
    %478 = arith.mulf %466, %477 : vector<8x128xf32>
    %479 = arith.addf %475, %478 : vector<8x128xf32>
    %480 = math.tanh %479 : vector<8x128xf32>
    %cst_135 = arith.constant 1.000000e+00 : f32
    %481 = vector.broadcast %cst_135 : f32 to vector<8x128xf32>
    %482 = arith.subf %481, %474 : vector<8x128xf32>
    %483 = arith.mulf %482, %480 : vector<8x128xf32>
    %484 = arith.mulf %474, %453 : vector<8x128xf32>
    %485 = arith.addf %483, %484 : vector<8x128xf32>
    %c5_i32_136 = arith.constant 5 : i32
    %486 = arith.index_cast %c5_i32_136 : i32 to index
    %c0_137 = arith.constant 0 : index
    %c0_138 = arith.constant 0 : index
    %487 = vector.load %arg8[%486, %c0_137, %c0_138] : memref<8x8x384xf32, #tpu.memory_space<vmem>>, vector<1x8x384xf32>
    %488 = vector.shape_cast %487 : vector<1x8x384xf32> to vector<8x384xf32>
    %489 = arith.truncf %485 : vector<8x128xf32> to vector<8x128xbf16>
    %cst_139 = arith.constant dense<0.000000e+00> : vector<8x384xf32>
    %490 = tpu.matmul %489, %320, %cst_139 {dimension_numbers = #tpu.dot_dimension_numbers<[1], [0], [0], [1], [0, 0, 1, 1], [], []>} : vector<8x128xbf16>, vector<128x384xbf16>, vector<8x384xf32> -> vector<8x384xf32>
    %491 = vector.extract_strided_slice %488 {offsets = [0, 0], sizes = [8, 128], strides = [1, 1]} : vector<8x384xf32> to vector<8x128xf32>
    %492 = vector.extract_strided_slice %490 {offsets = [0, 0], sizes = [8, 128], strides = [1, 1]} : vector<8x384xf32> to vector<8x128xf32>
    %493 = arith.addf %491, %492 : vector<8x128xf32>
    %494 = arith.negf %493 : vector<8x128xf32>
    %495 = math.exp %494 : vector<8x128xf32>
    %cst_140 = arith.constant 1.000000e+00 : f32
    %496 = vector.broadcast %cst_140 : f32 to vector<8x128xf32>
    %497 = arith.addf %496, %495 : vector<8x128xf32>
    %498 = arith.divf %496, %497 : vector<8x128xf32>
    %499 = vector.extract_strided_slice %488 {offsets = [0, 128], sizes = [8, 128], strides = [1, 1]} : vector<8x384xf32> to vector<8x128xf32>
    %500 = vector.extract_strided_slice %490 {offsets = [0, 128], sizes = [8, 128], strides = [1, 1]} : vector<8x384xf32> to vector<8x128xf32>
    %501 = arith.addf %499, %500 : vector<8x128xf32>
    %502 = arith.negf %501 : vector<8x128xf32>
    %503 = math.exp %502 : vector<8x128xf32>
    %cst_141 = arith.constant 1.000000e+00 : f32
    %504 = vector.broadcast %cst_141 : f32 to vector<8x128xf32>
    %505 = arith.addf %504, %503 : vector<8x128xf32>
    %506 = arith.divf %504, %505 : vector<8x128xf32>
    %507 = vector.extract_strided_slice %488 {offsets = [0, 256], sizes = [8, 128], strides = [1, 1]} : vector<8x384xf32> to vector<8x128xf32>
    %508 = vector.extract_strided_slice %490 {offsets = [0, 256], sizes = [8, 128], strides = [1, 1]} : vector<8x384xf32> to vector<8x128xf32>
    %509 = arith.addf %508, %324 : vector<8x128xf32>
    %510 = arith.mulf %498, %509 : vector<8x128xf32>
    %511 = arith.addf %507, %510 : vector<8x128xf32>
    %512 = math.tanh %511 : vector<8x128xf32>
    %cst_142 = arith.constant 1.000000e+00 : f32
    %513 = vector.broadcast %cst_142 : f32 to vector<8x128xf32>
    %514 = arith.subf %513, %506 : vector<8x128xf32>
    %515 = arith.mulf %514, %512 : vector<8x128xf32>
    %516 = arith.mulf %506, %485 : vector<8x128xf32>
    %517 = arith.addf %515, %516 : vector<8x128xf32>
    %c6_i32_143 = arith.constant 6 : i32
    %518 = arith.index_cast %c6_i32_143 : i32 to index
    %c0_144 = arith.constant 0 : index
    %c0_145 = arith.constant 0 : index
    %519 = vector.load %arg8[%518, %c0_144, %c0_145] : memref<8x8x384xf32, #tpu.memory_space<vmem>>, vector<1x8x384xf32>
    %520 = vector.shape_cast %519 : vector<1x8x384xf32> to vector<8x384xf32>
    %521 = arith.truncf %517 : vector<8x128xf32> to vector<8x128xbf16>
    %cst_146 = arith.constant dense<0.000000e+00> : vector<8x384xf32>
    %522 = tpu.matmul %521, %320, %cst_146 {dimension_numbers = #tpu.dot_dimension_numbers<[1], [0], [0], [1], [0, 0, 1, 1], [], []>} : vector<8x128xbf16>, vector<128x384xbf16>, vector<8x384xf32> -> vector<8x384xf32>
    %523 = vector.extract_strided_slice %520 {offsets = [0, 0], sizes = [8, 128], strides = [1, 1]} : vector<8x384xf32> to vector<8x128xf32>
    %524 = vector.extract_strided_slice %522 {offsets = [0, 0], sizes = [8, 128], strides = [1, 1]} : vector<8x384xf32> to vector<8x128xf32>
    %525 = arith.addf %523, %524 : vector<8x128xf32>
    %526 = arith.negf %525 : vector<8x128xf32>
    %527 = math.exp %526 : vector<8x128xf32>
    %cst_147 = arith.constant 1.000000e+00 : f32
    %528 = vector.broadcast %cst_147 : f32 to vector<8x128xf32>
    %529 = arith.addf %528, %527 : vector<8x128xf32>
    %530 = arith.divf %528, %529 : vector<8x128xf32>
    %531 = vector.extract_strided_slice %520 {offsets = [0, 128], sizes = [8, 128], strides = [1, 1]} : vector<8x384xf32> to vector<8x128xf32>
    %532 = vector.extract_strided_slice %522 {offsets = [0, 128], sizes = [8, 128], strides = [1, 1]} : vector<8x384xf32> to vector<8x128xf32>
    %533 = arith.addf %531, %532 : vector<8x128xf32>
    %534 = arith.negf %533 : vector<8x128xf32>
    %535 = math.exp %534 : vector<8x128xf32>
    %cst_148 = arith.constant 1.000000e+00 : f32
    %536 = vector.broadcast %cst_148 : f32 to vector<8x128xf32>
    %537 = arith.addf %536, %535 : vector<8x128xf32>
    %538 = arith.divf %536, %537 : vector<8x128xf32>
    %539 = vector.extract_strided_slice %520 {offsets = [0, 256], sizes = [8, 128], strides = [1, 1]} : vector<8x384xf32> to vector<8x128xf32>
    %540 = vector.extract_strided_slice %522 {offsets = [0, 256], sizes = [8, 128], strides = [1, 1]} : vector<8x384xf32> to vector<8x128xf32>
    %541 = arith.addf %540, %324 : vector<8x128xf32>
    %542 = arith.mulf %530, %541 : vector<8x128xf32>
    %543 = arith.addf %539, %542 : vector<8x128xf32>
    %544 = math.tanh %543 : vector<8x128xf32>
    %cst_149 = arith.constant 1.000000e+00 : f32
    %545 = vector.broadcast %cst_149 : f32 to vector<8x128xf32>
    %546 = arith.subf %545, %538 : vector<8x128xf32>
    %547 = arith.mulf %546, %544 : vector<8x128xf32>
    %548 = arith.mulf %538, %517 : vector<8x128xf32>
    %549 = arith.addf %547, %548 : vector<8x128xf32>
    %c7_i32_150 = arith.constant 7 : i32
    %550 = arith.index_cast %c7_i32_150 : i32 to index
    %c0_151 = arith.constant 0 : index
    %c0_152 = arith.constant 0 : index
    %551 = vector.load %arg8[%550, %c0_151, %c0_152] : memref<8x8x384xf32, #tpu.memory_space<vmem>>, vector<1x8x384xf32>
    %552 = vector.shape_cast %551 : vector<1x8x384xf32> to vector<8x384xf32>
    %553 = arith.truncf %549 : vector<8x128xf32> to vector<8x128xbf16>
    %cst_153 = arith.constant dense<0.000000e+00> : vector<8x384xf32>
    %554 = tpu.matmul %553, %320, %cst_153 {dimension_numbers = #tpu.dot_dimension_numbers<[1], [0], [0], [1], [0, 0, 1, 1], [], []>} : vector<8x128xbf16>, vector<128x384xbf16>, vector<8x384xf32> -> vector<8x384xf32>
    %555 = vector.extract_strided_slice %552 {offsets = [0, 0], sizes = [8, 128], strides = [1, 1]} : vector<8x384xf32> to vector<8x128xf32>
    %556 = vector.extract_strided_slice %554 {offsets = [0, 0], sizes = [8, 128], strides = [1, 1]} : vector<8x384xf32> to vector<8x128xf32>
    %557 = arith.addf %555, %556 : vector<8x128xf32>
    %558 = arith.negf %557 : vector<8x128xf32>
    %559 = math.exp %558 : vector<8x128xf32>
    %cst_154 = arith.constant 1.000000e+00 : f32
    %560 = vector.broadcast %cst_154 : f32 to vector<8x128xf32>
    %561 = arith.addf %560, %559 : vector<8x128xf32>
    %562 = arith.divf %560, %561 : vector<8x128xf32>
    %563 = vector.extract_strided_slice %552 {offsets = [0, 128], sizes = [8, 128], strides = [1, 1]} : vector<8x384xf32> to vector<8x128xf32>
    %564 = vector.extract_strided_slice %554 {offsets = [0, 128], sizes = [8, 128], strides = [1, 1]} : vector<8x384xf32> to vector<8x128xf32>
    %565 = arith.addf %563, %564 : vector<8x128xf32>
    %566 = arith.negf %565 : vector<8x128xf32>
    %567 = math.exp %566 : vector<8x128xf32>
    %cst_155 = arith.constant 1.000000e+00 : f32
    %568 = vector.broadcast %cst_155 : f32 to vector<8x128xf32>
    %569 = arith.addf %568, %567 : vector<8x128xf32>
    %570 = arith.divf %568, %569 : vector<8x128xf32>
    %571 = vector.extract_strided_slice %552 {offsets = [0, 256], sizes = [8, 128], strides = [1, 1]} : vector<8x384xf32> to vector<8x128xf32>
    %572 = vector.extract_strided_slice %554 {offsets = [0, 256], sizes = [8, 128], strides = [1, 1]} : vector<8x384xf32> to vector<8x128xf32>
    %573 = arith.addf %572, %324 : vector<8x128xf32>
    %574 = arith.mulf %562, %573 : vector<8x128xf32>
    %575 = arith.addf %571, %574 : vector<8x128xf32>
    %576 = math.tanh %575 : vector<8x128xf32>
    %cst_156 = arith.constant 1.000000e+00 : f32
    %577 = vector.broadcast %cst_156 : f32 to vector<8x128xf32>
    %578 = arith.subf %577, %570 : vector<8x128xf32>
    %579 = arith.mulf %578, %576 : vector<8x128xf32>
    %580 = arith.mulf %570, %549 : vector<8x128xf32>
    %581 = arith.addf %579, %580 : vector<8x128xf32>
    %c8_i32_157 = arith.constant 8 : i32
    %582 = arith.truncf %581 : vector<8x128xf32> to vector<8x128xbf16>
    %c0_158 = arith.constant 0 : index
    %c0_159 = arith.constant 0 : index
    %583 = vector.load %arg5[%c0_158, %c0_159] : memref<128x128xbf16, #tpu.memory_space<vmem>>, vector<128x128xbf16>
    %cst_160 = arith.constant dense<0.000000e+00> : vector<8x128xf32>
    %584 = tpu.matmul %582, %583, %cst_160 {dimension_numbers = #tpu.dot_dimension_numbers<[1], [0], [0], [1], [0, 0, 1, 1], [], []>} : vector<8x128xbf16>, vector<128x128xbf16>, vector<8x128xf32> -> vector<8x128xf32>
    %c0_161 = arith.constant 0 : index
    %c0_162 = arith.constant 0 : index
    %585 = vector.load %arg6[%c0_161, %c0_162] : memref<1x128xf32, #tpu.memory_space<vmem>>, vector<1x128xf32>
    %586 = vector.broadcast %585 : vector<1x128xf32> to vector<8x128xf32>
    %587 = arith.addf %584, %586 : vector<8x128xf32>
    %588 = tpu.iota {dimensions = array<i32: 0>} : vector<8x128xi32>
    %c2_i32_163 = arith.constant 2 : i32
    %589 = vector.broadcast %c2_i32_163 : i32 to vector<8x128xi32>
    %590 = arith.cmpi slt, %588, %589 : vector<8x128xi32>
    %cst_164 = arith.constant 0xFF800000 : f32
    %591 = vector.broadcast %cst_164 : f32 to vector<8x128xf32>
    %592 = arith.select %590, %587, %591 : vector<8x128xi1>, vector<8x128xf32>
    %cst_165 = arith.constant dense<0xFF800000> : vector<128xf32>
    %593 = vector.multi_reduction <maximumf>, %592, %cst_165 [0] : vector<8x128xf32> to vector<128xf32>
    %594 = vector.shape_cast %593 : vector<128xf32> to vector<1x128xf32>
    %595 = vector.broadcast %594 : vector<1x128xf32> to vector<8x128xf32>
    %596 = arith.subf %592, %595 : vector<8x128xf32>
    %597 = math.exp %596 : vector<8x128xf32>
    %cst_166 = arith.constant dense<0.000000e+00> : vector<128xf32>
    %598 = vector.multi_reduction <add>, %597, %cst_166 [0] : vector<8x128xf32> to vector<128xf32>
    %599 = vector.shape_cast %598 : vector<128xf32> to vector<1x128xf32>
    %600 = math.log %599 : vector<1x128xf32>
    %601 = arith.addf %600, %594 : vector<1x128xf32>
    %602 = vector.broadcast %601 : vector<1x128xf32> to vector<8x128xf32>
    %603 = arith.subf %587, %602 : vector<8x128xf32>
    %c0_167 = arith.constant 0 : index
    %c0_168 = arith.constant 0 : index
    %604 = vector.load %arg7[%c0_167, %c0_168] : memref<8x128xf32, #tpu.memory_space<vmem>>, vector<8x128xf32>
    tpu.vector_store %arg7[%c0_167, %c0_168], %603 {strides = array<i32>} : memref<8x128xf32, #tpu.memory_space<vmem>>, vector<8x128xf32>,
    return
  }
}

</mosaic_0001>

<llo_original>
// kernel: tpu_custom_call.1
$region0: #{tpu_custom_call.1}
  #allocation0 [shape = 'u32[]', space=smem, size = 0x4, offset = 0x4, fixed_abs, tag = 'smem constant byte address 0x4 - core index']
  #allocation1 [shape = 'u32[144,128]{1,0:T(1,128)}', space=vmem, size = 0x12000, scoped, tag = 'internal scratch']
  #allocation2 [shape = 'f32[8,8,384]{2,1,0:T(8,128)}', space=vmem, size = 0x18000, scoped, tag = 'scratch operand']
  #allocation3 [shape = 'f32[8,8,128]{2,1,0:T(8,128)}', space=vmem, size = 0x8000, scoped, tag = 'scratch operand']
  %s0 = inlined_call_operand.hbm [shape: f32[8,8,128], index: 0, kind: input, shape index: {}]
  %s1 = inlined_call_operand.hbm [shape: bf16[2,128,384], index: 1, kind: input, shape index: {}]
  %s2 = inlined_call_operand.hbm [shape: bf16[2,128,384], index: 2, kind: input, shape index: {}]
  %s3 = inlined_call_operand.vmem [shape: f32[2,1,384], index: 3, kind: input, shape index: {}]
  %s4 = inlined_call_operand.vmem [shape: f32[2,1,128], index: 4, kind: input, shape index: {}]
  %s5 = inlined_call_operand.hbm [shape: bf16[128,128], index: 5, kind: input, shape index: {}]
  %s6 = inlined_call_operand.vmem [shape: f32[1,128], index: 6, kind: input, shape index: {}]
  %s7 = inlined_call_operand.hbm [shape: f32[8,128], index: 7, kind: output, shape index: {}]
  %s8 = sld [smem:[#allocation0]]
  $region54: #{tpu_custom_call.1} parent=0
    _
  %s10 = ssub.s32 1, %s8
  %s11 = scalar_select 0, %s10, %s8
  $region1: #{tpu_custom_call.1} parent=0
    #allocation4 [shape = 'u8[32768]{0}', space=vmem, size = 0x8000, scoped, tag = 'input window, operand 0, single buffered']
    #allocation5 [shape = 's32[1]{0}', space=sflag, size = 0x4, scoped, tag = 'scoped memory for tpu_custom_call.1']
    #allocation6 [shape = 's32[1]{0}', space=sflag, size = 0x4, scoped, tag = 'scoped memory for tpu_custom_call.1']
    #allocation7 [shape = 'u8[196608]{0}', space=vmem, size = 0x30000, scoped, tag = 'input window, operand 1, single buffered']
    #allocation8 [shape = 's32[1]{0}', space=sflag, size = 0x4, scoped, tag = 'scoped memory for tpu_custom_call.1']
    #allocation9 [shape = 'u8[196608]{0}', space=vmem, size = 0x30000, scoped, tag = 'input window, operand 2, single buffered']
    #allocation10 [shape = 'u8[32768]{0}', space=vmem, size = 0x8000, scoped, tag = 'input window, operand 5, single buffered']
    #allocation11 [shape = 's32[1]{0}', space=sflag, size = 0x4, scoped, tag = 'scoped memory for tpu_custom_call.1']
    #allocation12 [shape = 'u8[4096]{0}', space=vmem, size = 0x1000, scoped, tag = 'output window, operand 0, single buffered']
    %12 = vsyncpa [#allocation5], 0
    %13 = vsyncpa [#allocation8], 0
    %14 = vsyncpa [#allocation11], 0
    %15 = vsyncpa [#allocation6], 0
    // Predicated region
    $region2: #{tpu_custom_call.1} parent=1 // pred_check
      _
    $region3: #{tpu_custom_call.1} parent=1 // pred_check_branch
      %17 = sbr.rel (0) target = $region5
    $region4: #{tpu_custom_call.1} parent=1 // pred_region
      %s19 = ssub.s32 1024, 1024
      %20 = vsyncadd [#allocation5], %s19
      %s21 = sshll.u32 [#allocation4], 4
      %s22 = int_to_ptr.vmem [resolvable:$true] %s21
      %27 = dma.hbm_to_vmem [thread:$0]  %s0, 1024, %s22, [#allocation5], 128, 128, 8
    $region5: #{tpu_custom_call.1} parent=1 // pred_fallthru
      _
    // Predicated region
    $region6: #{tpu_custom_call.1} parent=1 // pred_check
      _
    $region7: #{tpu_custom_call.1} parent=1 // pred_check_branch
      %29 = sbr.rel (0) target = $region9
    $region8: #{tpu_custom_call.1} parent=1 // pred_region
      %s31 = ssub.s32 6144, 6144
      %32 = vsyncadd [#allocation8], %s31
      %s33 = sshll.u32 [#allocation7], 4
      %s34 = int_to_ptr.vmem [resolvable:$true] %s33
      %39 = dma.hbm_to_vmem [thread:$0]  %s1, 6144, %s34, [#allocation8], 192, 192, 12
    $region9: #{tpu_custom_call.1} parent=1 // pred_fallthru
      _
    // Predicated region
    $region10: #{tpu_custom_call.1} parent=1 // pred_check
      _
    $region11: #{tpu_custom_call.1} parent=1 // pred_check_branch
      %41 = sbr.rel (0) target = $region13
    $region12: #{tpu_custom_call.1} parent=1 // pred_region
      %s43 = ssub.s32 6144, 6144
      %44 = vsyncadd [#allocation8], %s43
      %s45 = sshll.u32 [#allocation9], 4
      %s46 = int_to_ptr.vmem [resolvable:$true] %s45
      %51 = dma.hbm_to_vmem [thread:$0]  %s2, 6144, %s46, [#allocation8], 192, 192, 12
    $region13: #{tpu_custom_call.1} parent=1 // pred_fallthru
      _
    // Predicated region
    $region14: #{tpu_custom_call.1} parent=1 // pred_check
      _
    $region15: #{tpu_custom_call.1} parent=1 // pred_check_branch
      %53 = sbr.rel (0) target = $region17
    $region16: #{tpu_custom_call.1} parent=1 // pred_region
      _
    $region17: #{tpu_custom_call.1} parent=1 // pred_fallthru
      _
    // Predicated region
    $region18: #{tpu_custom_call.1} parent=1 // pred_check
      _
    $region19: #{tpu_custom_call.1} parent=1 // pred_check_branch
      %55 = sbr.rel (0) target = $region21
    $region20: #{tpu_custom_call.1} parent=1 // pred_region
      _
    $region21: #{tpu_custom_call.1} parent=1 // pred_fallthru
      _
    // Predicated region
    $region22: #{tpu_custom_call.1} parent=1 // pred_check
      _
    $region23: #{tpu_custom_call.1} parent=1 // pred_check_branch
      %57 = sbr.rel (0) target = $region25
    $region24: #{tpu_custom_call.1} parent=1 // pred_region
      %s59 = ssub.s32 1024, 1024
      %60 = vsyncadd [#allocation11], %s59
      %s61 = sshll.u32 [#allocation10], 4
      %s62 = int_to_ptr.vmem [resolvable:$true] %s61
      %67 = dma.hbm_to_vmem [thread:$0]  %s5, 1024, %s62, [#allocation11], 64, 64, 4
    $region25: #{tpu_custom_call.1} parent=1 // pred_fallthru
      _
    // Predicated region
    $region26: #{tpu_custom_call.1} parent=1 // pred_check
      _
    $region27: #{tpu_custom_call.1} parent=1 // pred_check_branch
      %69 = sbr.rel (0) target = $region29
    $region28: #{tpu_custom_call.1} parent=1 // pred_region
      _
    $region29: #{tpu_custom_call.1} parent=1 // pred_fallthru
      _
    // Predicated region
    $region30: #{tpu_custom_call.1} parent=1 // pred_check
      _
    $region31: #{tpu_custom_call.1} parent=1 // pred_check_branch
      %71 = sbr.rel (0) target = $region33
    $region32: #{tpu_custom_call.1} parent=1 // pred_region
      %72 = dma.done [#allocation5], 1024
    $region33: #{tpu_custom_call.1} parent=1 // pred_fallthru
      _
    // Predicated region
    $region34: #{tpu_custom_call.1} parent=1 // pred_check
      _
    $region35: #{tpu_custom_call.1} parent=1 // pred_check_branch
      %74 = sbr.rel (0) target = $region37
    $region36: #{tpu_custom_call.1} parent=1 // pred_region
      %75 = dma.done [#allocation8], 6144
    $region37: #{tpu_custom_call.1} parent=1 // pred_fallthru
      _
    // Predicated region
    $region38: #{tpu_custom_call.1} parent=1 // pred_check
      _
    $region39: #{tpu_custom_call.1} parent=1 // pred_check_branch
      %77 = sbr.rel (0) target = $region41
    $region40: #{tpu_custom_call.1} parent=1 // pred_region
      %78 = dma.done [#allocation8], 6144
    $region41: #{tpu_custom_call.1} parent=1 // pred_fallthru
      _
    // Predicated region
    $region42: #{tpu_custom_call.1} parent=1 // pred_check
      _
    $region43: #{tpu_custom_call.1} parent=1 // pred_check_branch
      %80 = sbr.rel (0) target = $region45
    $region44: #{tpu_custom_call.1} parent=1 // pred_region
      %81 = dma.done [#allocation11], 1024
    $region45: #{tpu_custom_call.1} parent=1 // pred_fallthru
      _
    %v83 = vld [vmem:[#allocation4] sm:$0xff]
    %v84 = vld [vmem:[#allocation4 + $0x8] sm:$0xff]
    %v85 = vld [vmem:[#allocation4 + $0x10] sm:$0xff]
    %v86 = vld [vmem:[#allocation4 + $0x18] sm:$0xff]
    %v87 = vld [vmem:[#allocation4 + $0x20] sm:$0xff]
    %v88 = vld [vmem:[#allocation4 + $0x28] sm:$0xff]
    %v89 = vld [vmem:[#allocation4 + $0x30] sm:$0xff]
    %v90 = vld [vmem:[#allocation4 + $0x38] sm:$0xff]
    %v91 = vpack.c.bf16 %v84, %v83
    %v92 = vpack.c.bf16 %v86, %v85
    %v93 = vpack.c.bf16 %v88, %v87
    %v94 = vpack.c.bf16 %v90, %v89
    %v95 = vld [vmem:[#allocation7] sm:$0xff]
    %v96 = vld [vmem:[#allocation7 + $0x8] sm:$0xf]
    %v97 = vld [vmem:[#allocation7 + $0xc] sm:$0xff]
    %v98 = vld [vmem:[#allocation7 + $0x14] sm:$0xf]
    %v99 = vld [vmem:[#allocation7 + $0x18] sm:$0xff]
    %v100 = vld [vmem:[#allocation7 + $0x20] sm:$0xf]
    %v101 = vld [vmem:[#allocation7 + $0x24] sm:$0xff]
    %v102 = vld [vmem:[#allocation7 + $0x2c] sm:$0xf]
    %v103 = vld [vmem:[#allocation7 + $0x30] sm:$0xff]
    %v104 = vld [vmem:[#allocation7 + $0x38] sm:$0xf]
    %v105 = vld [vmem:[#allocation7 + $0x3c] sm:$0xff]
    %v106 = vld [vmem:[#allocation7 + $0x44] sm:$0xf]
    %v107 = vld [vmem:[#allocation7 + $0x48] sm:$0xff]
    %v108 = vld [vmem:[#allocation7 + $0x50] sm:$0xf]
    %v109 = vld [vmem:[#allocation7 + $0x54] sm:$0xff]
    %v110 = vld [vmem:[#allocation7 + $0x5c] sm:$0xf]
    %v111 = vld [vmem:[#allocation7 + $0x60] sm:$0xff]
    %v112 = vld [vmem:[#allocation7 + $0x68] sm:$0xf]
    %v113 = vld [vmem:[#allocation7 + $0x6c] sm:$0xff]
    %v114 = vld [vmem:[#allocation7 + $0x74] sm:$0xf]
    %v115 = vld [vmem:[#allocation7 + $0x78] sm:$0xff]
    %v116 = vld [vmem:[#allocation7 + $0x80] sm:$0xf]
    %v117 = vld [vmem:[#allocation7 + $0x84] sm:$0xff]
    %v118 = vld [vmem:[#allocation7 + $0x8c] sm:$0xf]
    %v119 = vld [vmem:[#allocation7 + $0x90] sm:$0xff]
    %v120 = vld [vmem:[#allocation7 + $0x98] sm:$0xf]
    %v121 = vld [vmem:[#allocation7 + $0x9c] sm:$0xff]
    %v122 = vld [vmem:[#allocation7 + $0xa4] sm:$0xf]
    %v123 = vld [vmem:[#allocation7 + $0xa8] sm:$0xff]
    %v124 = vld [vmem:[#allocation7 + $0xb0] sm:$0xf]
    %v125 = vld [vmem:[#allocation7 + $0xb4] sm:$0xff]
    %v126 = vld [vmem:[#allocation7 + $0xbc] sm:$0xf]
    %v127 = vld [vmem:[%s3] sm:$0x7]
    %v129 = vlaneseq
    %v130 = vshrl.u32 %v129, 7
    %v131 = vsub.s32 0, %v130
    %v132 = vrot.slane %v127, %v131
    %v133 = vlaneseq
    %v134 = vshrl.u32 %v133, 7
    %v135 = vsub.s32 1, %v134
    %v136 = vrot.slane %v127, %v135
    %v137 = vlaneseq
    %v138 = vshrl.u32 %v137, 7
    %v139 = vsub.s32 2, %v138
    %v140 = vrot.slane %v127, %v139
    %v176 = vunpack.c.l.b16 %v95
    %v177 = vunpack.c.h.b16 %v95
    %v178 = vunpack.c.l.b16 %v96
    %v179 = vunpack.c.l.b16 %v97
    %v180 = vunpack.c.h.b16 %v97
    %v181 = vunpack.c.l.b16 %v98
    %v182 = vunpack.c.l.b16 %v99
    %v183 = vunpack.c.h.b16 %v99
    %v184 = vunpack.c.l.b16 %v100
    %v185 = vunpack.c.l.b16 %v101
    %v186 = vunpack.c.h.b16 %v101
    %v187 = vunpack.c.l.b16 %v102
    %v188 = vunpack.c.l.b16 %v103
    %v189 = vunpack.c.h.b16 %v103
    %v190 = vunpack.c.l.b16 %v104
    %v191 = vunpack.c.l.b16 %v105
    %v192 = vunpack.c.h.b16 %v105
    %v193 = vunpack.c.l.b16 %v106
    %v194 = vunpack.c.l.b16 %v107
    %v195 = vunpack.c.h.b16 %v107
    %v196 = vunpack.c.l.b16 %v108
    %v197 = vunpack.c.l.b16 %v109
    %v198 = vunpack.c.h.b16 %v109
    %v199 = vunpack.c.l.b16 %v110
    %v200 = vunpack.c.l.b16 %v111
    %v201 = vunpack.c.h.b16 %v111
    %v202 = vunpack.c.l.b16 %v112
    %v203 = vunpack.c.l.b16 %v113
    %v204 = vunpack.c.h.b16 %v113
    %v205 = vunpack.c.l.b16 %v114
    %v206 = vunpack.c.l.b16 %v115
    %v207 = vunpack.c.h.b16 %v115
    %v208 = vunpack.c.l.b16 %v116
    %v209 = vunpack.c.l.b16 %v117
    %v210 = vunpack.c.h.b16 %v117
    %v211 = vunpack.c.l.b16 %v118
    %v212 = vunpack.c.l.b16 %v119
    %v213 = vunpack.c.h.b16 %v119
    %v214 = vunpack.c.l.b16 %v120
    %v215 = vunpack.c.l.b16 %v121
    %v216 = vunpack.c.h.b16 %v121
    %v217 = vunpack.c.l.b16 %v122
    %v218 = vunpack.c.l.b16 %v123
    %v219 = vunpack.c.h.b16 %v123
    %v220 = vunpack.c.l.b16 %v124
    %v221 = vunpack.c.l.b16 %v125
    %v222 = vunpack.c.h.b16 %v125
    %v223 = vunpack.c.l.b16 %v126
    %v224 = vpack.c.b16 %v179, %v176
    %v225 = vpack.c.b16 %v180, %v177
    %v226 = vpack.c.b16 %v181, %v178
    %v227 = vpack.c.b16 %v185, %v182
    %v228 = vpack.c.b16 %v186, %v183
    %v229 = vpack.c.b16 %v187, %v184
    %v230 = vpack.c.b16 %v191, %v188
    %v231 = vpack.c.b16 %v192, %v189
    %v232 = vpack.c.b16 %v193, %v190
    %v233 = vpack.c.b16 %v197, %v194
    %v234 = vpack.c.b16 %v198, %v195
    %v235 = vpack.c.b16 %v199, %v196
    %v236 = vpack.c.b16 %v203, %v200
    %v237 = vpack.c.b16 %v204, %v201
    %v238 = vpack.c.b16 %v205, %v202
    %v239 = vpack.c.b16 %v209, %v206
    %v240 = vpack.c.b16 %v210, %v207
    %v241 = vpack.c.b16 %v211, %v208
    %v242 = vpack.c.b16 %v215, %v212
    %v243 = vpack.c.b16 %v216, %v213
    %v244 = vpack.c.b16 %v217, %v214
    %v245 = vpack.c.b16 %v221, %v218
    %v246 = vpack.c.b16 %v222, %v219
    %v247 = vpack.c.b16 %v223, %v220
    %272 = vmatprep.subr.bf16.mxu0 %v225
    %273 = vmatpush1.bf16.msra.mxu0 %v224
    %274 = vmatprep.subr.bf16.mxu0 %v228
    %275 = vmatpush1.bf16.msra.mxu0 %v227
    %276 = vmatprep.subr.bf16.mxu0 %v231
    %277 = vmatpush1.bf16.msra.mxu0 %v230
    %278 = vmatprep.subr.bf16.mxu0 %v234
    %279 = vmatpush1.bf16.msra.mxu0 %v233
    %280 = vmatprep.subr.bf16.mxu0 %v237
    %281 = vmatpush1.bf16.msra.mxu0 %v236
    %282 = vmatprep.subr.bf16.mxu0 %v240
    %283 = vmatpush1.bf16.msra.mxu0 %v239
    %284 = vmatprep.subr.bf16.mxu0 %v243
    %285 = vmatpush1.bf16.msra.mxu0 %v242
    %286 = vmatprep.subr.bf16.mxu0 %v246
    %287 = vmatpush1.bf16.msra.mxu0 %v245
    %288 = vmatprep.subr.bf16.mxu0 0
    %289 = vmatpush1.bf16.msra.mxu0 0
    %290 = vmatprep.subr.bf16.mxu0 0
    %291 = vmatpush1.bf16.msra.mxu0 0
    %292 = vmatprep.subr.bf16.mxu0 0
    %293 = vmatpush1.bf16.msra.mxu0 0
    %294 = vmatprep.subr.bf16.mxu0 0
    %295 = vmatpush1.bf16.msra.mxu0 0
    %296 = vmatprep.subr.bf16.mxu0 0
    %297 = vmatpush1.bf16.msra.mxu0 0
    %298 = vmatprep.subr.bf16.mxu0 0
    %299 = vmatpush1.bf16.msra.mxu0 0
    %300 = vmatprep.subr.bf16.mxu0 0
    %301 = vmatpush1.bf16.msra.mxu0 0
    %302 = vmatprep.subr.bf16.mxu0 0
    %303 = vmatpush1.bf16.msra.mxu0 0
    %304 = vmatprep.mubr.bf16.mxu0 0
    %305 = vmatmul.mubr.bf16.gmra.mrb[0].mxu0 %v91
    %v306 = vpop.f32.mrb[0].mxu0
    %v307 = vadd.f32 %v132, %v306
    %v308 = vpop.f32.mrb[0].mxu0
    %v309 = vadd.f32 %v136, %v308
    %v310 = vpop.f32.mrb[0].mxu0
    %v311 = vadd.f32 %v132, %v310
    %v312 = vpop.f32.mrb[0].mxu0
    %v313 = vadd.f32 %v136, %v312
    %314 = vmatprep.mubr.bf16.mxu0 0
    %315 = vmatmul.mubr.bf16.gmra.mrb[0].mxu0 %v92
    %v316 = vpop.f32.mrb[0].mxu0
    %v317 = vadd.f32 %v132, %v316
    %v318 = vpop.f32.mrb[0].mxu0
    %v319 = vadd.f32 %v136, %v318
    %v320 = vpop.f32.mrb[0].mxu0
    %v321 = vadd.f32 %v132, %v320
    %v322 = vpop.f32.mrb[0].mxu0
    %v323 = vadd.f32 %v136, %v322
    %324 = vmatprep.mubr.bf16.mxu0 0
    %325 = vmatmul.mubr.bf16.gmra.mrb[0].mxu0 %v93
    %v326 = vpop.f32.mrb[0].mxu0
    %v327 = vadd.f32 %v132, %v326
    %v328 = vpop.f32.mrb[0].mxu0
    %v329 = vadd.f32 %v136, %v328
    %v330 = vpop.f32.mrb[0].mxu0
    %v331 = vadd.f32 %v132, %v330
    %v332 = vpop.f32.mrb[0].mxu0
    %v333 = vadd.f32 %v136, %v332
    %334 = vmatprep.mubr.bf16.mxu0 0
    %335 = vmatmul.mubr.bf16.gmra.mrb[0].mxu0 %v94
    %v336 = vpop.f32.mrb[0].mxu0
    %v337 = vadd.f32 %v132, %v336
    %v338 = vpop.f32.mrb[0].mxu0
    %v339 = vadd.f32 %v136, %v338
    %v340 = vpop.f32.mrb[0].mxu0
    %v341 = vadd.f32 %v132, %v340
    %v342 = vpop.f32.mrb[0].mxu0
    %v343 = vadd.f32 %v136, %v342
    %344 = vdwg.mxu0
    %345 = vmatprep.subr.bf16.mxu0 0
    %346 = vmatpush1.bf16.msra.mxu0 %v226
    %347 = vmatprep.subr.bf16.mxu0 0
    %348 = vmatpush1.bf16.msra.mxu0 %v229
    %349 = vmatprep.subr.bf16.mxu0 0
    %350 = vmatpush1.bf16.msra.mxu0 %v232
    %351 = vmatprep.subr.bf16.mxu0 0
    %352 = vmatpush1.bf16.msra.mxu0 %v235
    %353 = vmatprep.subr.bf16.mxu0 0
    %354 = vmatpush1.bf16.msra.mxu0 %v238
    %355 = vmatprep.subr.bf16.mxu0 0
    %356 = vmatpush1.bf16.msra.mxu0 %v241
    %357 = vmatprep.subr.bf16.mxu0 0
    %358 = vmatpush1.bf16.msra.mxu0 %v244
    %359 = vmatprep.subr.bf16.mxu0 0
    %360 = vmatpush1.bf16.msra.mxu0 %v247
    %361 = vmatprep.subr.bf16.mxu0 0
    %362 = vmatpush1.bf16.msra.mxu0 0
    %363 = vmatprep.subr.bf16.mxu0 0
    %364 = vmatpush1.bf16.msra.mxu0 0
    %365 = vmatprep.subr.bf16.mxu0 0
    %366 = vmatpush1.bf16.msra.mxu0 0
    %367 = vmatprep.subr.bf16.mxu0 0
    %368 = vmatpush1.bf16.msra.mxu0 0
    %369 = vmatprep.subr.bf16.mxu0 0
    %370 = vmatpush1.bf16.msra.mxu0 0
    %371 = vmatprep.subr.bf16.mxu0 0
    %372 = vmatpush1.bf16.msra.mxu0 0
    %373 = vmatprep.subr.bf16.mxu0 0
    %374 = vmatpush1.bf16.msra.mxu0 0
    %375 = vmatprep.subr.bf16.mxu0 0
    %376 = vmatpush1.bf16.msra.mxu0 0
    %377 = vmatprep.mubr.bf16.mxu0 0
    %378 = vmatmul.mubr.bf16.gmra.mrb[0].mxu0 %v91
    %v379 = vpop.f32.mrb[0].mxu0
    %v380 = vadd.f32 %v140, %v379
    %v381 = vpop.f32.mrb[0].mxu0
    %v382 = vpop.f32.mrb[0].mxu0
    %v383 = vadd.f32 %v140, %v382
    %v384 = vpop.f32.mrb[0].mxu0
    %385 = vmatprep.mubr.bf16.mxu0 0
    %386 = vmatmul.mubr.bf16.gmra.mrb[0].mxu0 %v92
    %v387 = vpop.f32.mrb[0].mxu0
    %v388 = vadd.f32 %v140, %v387
    %v389 = vpop.f32.mrb[0].mxu0
    %v390 = vpop.f32.mrb[0].mxu0
    %v391 = vadd.f32 %v140, %v390
    %v392 = vpop.f32.mrb[0].mxu0
    %393 = vmatprep.mubr.bf16.mxu0 0
    %394 = vmatmul.mubr.bf16.gmra.mrb[0].mxu0 %v93
    %v395 = vpop.f32.mrb[0].mxu0
    %v396 = vadd.f32 %v140, %v395
    %v397 = vpop.f32.mrb[0].mxu0
    %v398 = vpop.f32.mrb[0].mxu0
    %v399 = vadd.f32 %v140, %v398
    %v400 = vpop.f32.mrb[0].mxu0
    %401 = vmatprep.mubr.bf16.mxu0 0
    %402 = vmatmul.mubr.bf16.gmra.mrb[0].mxu0 %v94
    %v403 = vpop.f32.mrb[0].mxu0
    %v404 = vadd.f32 %v140, %v403
    %v405 = vpop.f32.mrb[0].mxu0
    %v406 = vpop.f32.mrb[0].mxu0
    %v407 = vadd.f32 %v140, %v406
    %v408 = vpop.f32.mrb[0].mxu0
    %409 = vdwg.mxu0
    %410 = vst [vmem:[#allocation2] sm:$0xff] %v307
    %411 = vst [vmem:[#allocation2 + $0x8] sm:$0xff] %v309
    %412 = vst [vmem:[#allocation2 + $0x10] sm:$0xff] %v380
    %413 = vst [vmem:[#allocation2 + $0x18] sm:$0xff] %v311
    %414 = vst [vmem:[#allocation2 + $0x20] sm:$0xff] %v313
    %415 = vst [vmem:[#allocation2 + $0x28] sm:$0xff] %v383
    %416 = vst [vmem:[#allocation2 + $0x30] sm:$0xff] %v317
    %417 = vst [vmem:[#allocation2 + $0x38] sm:$0xff] %v319
    %418 = vst [vmem:[#allocation2 + $0x40] sm:$0xff] %v388
    %419 = vst [vmem:[#allocation2 + $0x48] sm:$0xff] %v321
    %420 = vst [vmem:[#allocation2 + $0x50] sm:$0xff] %v323
    %421 = vst [vmem:[#allocation2 + $0x58] sm:$0xff] %v391
    %422 = vst [vmem:[#allocation2 + $0x60] sm:$0xff] %v327
    %423 = vst [vmem:[#allocation2 + $0x68] sm:$0xff] %v329
    %424 = vst [vmem:[#allocation2 + $0x70] sm:$0xff] %v396
    %425 = vst [vmem:[#allocation2 + $0x78] sm:$0xff] %v331
    %426 = vst [vmem:[#allocation2 + $0x80] sm:$0xff] %v333
    %427 = vst [vmem:[#allocation2 + $0x88] sm:$0xff] %v399
    %428 = vst [vmem:[#allocation2 + $0x90] sm:$0xff] %v337
    %429 = vst [vmem:[#allocation2 + $0x98] sm:$0xff] %v339
    %430 = vst [vmem:[#allocation2 + $0xa0] sm:$0xff] %v404
    %431 = vst [vmem:[#allocation2 + $0xa8] sm:$0xff] %v341
    %432 = vst [vmem:[#allocation2 + $0xb0] sm:$0xff] %v343
    %433 = vst [vmem:[#allocation2 + $0xb8] sm:$0xff] %v407
    %v434 = vld [vmem:[#allocation9] sm:$0xff]
    %v435 = vld [vmem:[#allocation9 + $0x8] sm:$0xf]
    %v436 = vld [vmem:[#allocation9 + $0xc] sm:$0xff]
    %v437 = vld [vmem:[#allocation9 + $0x14] sm:$0xf]
    %v438 = vld [vmem:[#allocation9 + $0x18] sm:$0xff]
    %v439 = vld [vmem:[#allocation9 + $0x20] sm:$0xf]
    %v440 = vld [vmem:[#allocation9 + $0x24] sm:$0xff]
    %v441 = vld [vmem:[#allocation9 + $0x2c] sm:$0xf]
    %v442 = vld [vmem:[#allocation9 + $0x30] sm:$0xff]
    %v443 = vld [vmem:[#allocation9 + $0x38] sm:$0xf]
    %v444 = vld [vmem:[#allocation9 + $0x3c] sm:$0xff]
    %v445 = vld [vmem:[#allocation9 + $0x44] sm:$0xf]
    %v446 = vld [vmem:[#allocation9 + $0x48] sm:$0xff]
    %v447 = vld [vmem:[#allocation9 + $0x50] sm:$0xf]
    %v448 = vld [vmem:[#allocation9 + $0x54] sm:$0xff]
    %v449 = vld [vmem:[#allocation9 + $0x5c] sm:$0xf]
    %v450 = vld [vmem:[#allocation9 + $0x60] sm:$0xff]
    %v451 = vld [vmem:[#allocation9 + $0x68] sm:$0xf]
    %v452 = vld [vmem:[#allocation9 + $0x6c] sm:$0xff]
    %v453 = vld [vmem:[#allocation9 + $0x74] sm:$0xf]
    %v454 = vld [vmem:[#allocation9 + $0x78] sm:$0xff]
    %v455 = vld [vmem:[#allocation9 + $0x80] sm:$0xf]
    %v456 = vld [vmem:[#allocation9 + $0x84] sm:$0xff]
    %v457 = vld [vmem:[#allocation9 + $0x8c] sm:$0xf]
    %v458 = vld [vmem:[#allocation9 + $0x90] sm:$0xff]
    %v459 = vld [vmem:[#allocation9 + $0x98] sm:$0xf]
    %v460 = vld [vmem:[#allocation9 + $0x9c] sm:$0xff]
    %v461 = vld [vmem:[#allocation9 + $0xa4] sm:$0xf]
    %v462 = vld [vmem:[#allocation9 + $0xa8] sm:$0xff]
    %v463 = vld [vmem:[#allocation9 + $0xb0] sm:$0xf]
    %v464 = vld [vmem:[#allocation9 + $0xb4] sm:$0xff]
    %v465 = vld [vmem:[#allocation9 + $0xbc] sm:$0xf]
    %v466 = vld [vmem:[%s4] sm:$0x1]
    %v468 = vlaneseq
    %v469 = vshrl.u32 %v468, 7
    %v470 = vsub.s32 0, %v469
    %v471 = vrot.slane %v466, %v470
    %v473 = vld [vmem:[#allocation2] sm:$0xff]
    %v474 = vld [vmem:[#allocation2 + $0x8] sm:$0xff]
    %v475 = vld [vmem:[#allocation2 + $0x10] sm:$0xff]
    %v508 = vunpack.c.l.b16 %v434
    %v509 = vunpack.c.h.b16 %v434
    %v510 = vunpack.c.l.b16 %v435
    %v511 = vunpack.c.l.b16 %v436
    %v512 = vunpack.c.h.b16 %v436
    %v513 = vunpack.c.l.b16 %v437
    %v514 = vunpack.c.l.b16 %v438
    %v515 = vunpack.c.h.b16 %v438
    %v516 = vunpack.c.l.b16 %v439
    %v517 = vunpack.c.l.b16 %v440
    %v518 = vunpack.c.h.b16 %v440
    %v519 = vunpack.c.l.b16 %v441
    %v520 = vunpack.c.l.b16 %v442
    %v521 = vunpack.c.h.b16 %v442
    %v522 = vunpack.c.l.b16 %v443
    %v523 = vunpack.c.l.b16 %v444
    %v524 = vunpack.c.h.b16 %v444
    %v525 = vunpack.c.l.b16 %v445
    %v526 = vunpack.c.l.b16 %v446
    %v527 = vunpack.c.h.b16 %v446
    %v528 = vunpack.c.l.b16 %v447
    %v529 = vunpack.c.l.b16 %v448
    %v530 = vunpack.c.h.b16 %v448
    %v531 = vunpack.c.l.b16 %v449
    %v532 = vunpack.c.l.b16 %v450
    %v533 = vunpack.c.h.b16 %v450
    %v534 = vunpack.c.l.b16 %v451
    %v535 = vunpack.c.l.b16 %v452
    %v536 = vunpack.c.h.b16 %v452
    %v537 = vunpack.c.l.b16 %v453
    %v538 = vunpack.c.l.b16 %v454
    %v539 = vunpack.c.h.b16 %v454
    %v540 = vunpack.c.l.b16 %v455
    %v541 = vunpack.c.l.b16 %v456
    %v542 = vunpack.c.h.b16 %v456
    %v543 = vunpack.c.l.b16 %v457
    %v544 = vunpack.c.l.b16 %v458
    %v545 = vunpack.c.h.b16 %v458
    %v546 = vunpack.c.l.b16 %v459
    %v547 = vunpack.c.l.b16 %v460
    %v548 = vunpack.c.h.b16 %v460
    %v549 = vunpack.c.l.b16 %v461
    %v550 = vunpack.c.l.b16 %v462
    %v551 = vunpack.c.h.b16 %v462
    %v552 = vunpack.c.l.b16 %v463
    %v553 = vunpack.c.l.b16 %v464
    %v554 = vunpack.c.h.b16 %v464
    %v555 = vunpack.c.l.b16 %v465
    %v556 = vpack.c.b16 %v511, %v508
    %v557 = vpack.c.b16 %v512, %v509
    %v558 = vpack.c.b16 %v513, %v510
    %v559 = vpack.c.b16 %v517, %v514
    %v560 = vpack.c.b16 %v518, %v515
    %v561 = vpack.c.b16 %v519, %v516
    %v562 = vpack.c.b16 %v523, %v520
    %v563 = vpack.c.b16 %v524, %v521
    %v564 = vpack.c.b16 %v525, %v522
    %v565 = vpack.c.b16 %v529, %v526
    %v566 = vpack.c.b16 %v530, %v527
    %v567 = vpack.c.b16 %v531, %v528
    %v568 = vpack.c.b16 %v535, %v532
    %v569 = vpack.c.b16 %v536, %v533
    %v570 = vpack.c.b16 %v537, %v534
    %v571 = vpack.c.b16 %v541, %v538
    %v572 = vpack.c.b16 %v542, %v539
    %v573 = vpack.c.b16 %v543, %v540
    %v574 = vpack.c.b16 %v547, %v544
    %v575 = vpack.c.b16 %v548, %v545
    %v576 = vpack.c.b16 %v549, %v546
    %v577 = vpack.c.b16 %v553, %v550
    %v578 = vpack.c.b16 %v554, %v551
    %v579 = vpack.c.b16 %v555, %v552
    %604 = vmatprep.subr.bf16.mxu0 %v557
    %605 = vmatpush1.bf16.msra.mxu0 %v556
    %606 = vmatprep.subr.bf16.mxu0 %v560
    %607 = vmatpush1.bf16.msra.mxu0 %v559
    %608 = vmatprep.subr.bf16.mxu0 %v563
    %609 = vmatpush1.bf16.msra.mxu0 %v562
    %610 = vmatprep.subr.bf16.mxu0 %v566
    %611 = vmatpush1.bf16.msra.mxu0 %v565
    %612 = vmatprep.subr.bf16.mxu0 %v569
    %613 = vmatpush1.bf16.msra.mxu0 %v568
    %614 = vmatprep.subr.bf16.mxu0 %v572
    %615 = vmatpush1.bf16.msra.mxu0 %v571
    %616 = vmatprep.subr.bf16.mxu0 %v575
    %617 = vmatpush1.bf16.msra.mxu0 %v574
    %618 = vmatprep.subr.bf16.mxu0 %v578
    %619 = vmatpush1.bf16.msra.mxu0 %v577
    %620 = vmatprep.subr.bf16.mxu0 0
    %621 = vmatpush1.bf16.msra.mxu0 0
    %622 = vmatprep.subr.bf16.mxu0 0
    %623 = vmatpush1.bf16.msra.mxu0 0
    %624 = vmatprep.subr.bf16.mxu0 0
    %625 = vmatpush1.bf16.msra.mxu0 0
    %626 = vmatprep.subr.bf16.mxu0 0
    %627 = vmatpush1.bf16.msra.mxu0 0
    %628 = vmatprep.subr.bf16.mxu0 0
    %629 = vmatpush1.bf16.msra.mxu0 0
    %630 = vmatprep.subr.bf16.mxu0 0
    %631 = vmatpush1.bf16.msra.mxu0 0
    %632 = vmatprep.subr.bf16.mxu0 0
    %633 = vmatpush1.bf16.msra.mxu0 0
    %634 = vmatprep.subr.bf16.mxu0 0
    %635 = vmatpush1.bf16.msra.mxu0 0
    %636 = vmatprep.mubr.bf16.mxu0 0
    %637 = vmatmul.mubr.bf16.gmra.mrb[0].mxu0 0
    %v638 = vpop.f32.mrb[0].mxu0
    %v639 = vadd.f32 0.0, %v638
    %v640 = vpop.f32.mrb[0].mxu0
    %v641 = vadd.f32 0.0, %v640
    %v642 = vpop.f32.mrb[0].mxu0
    %v643 = vpop.f32.mrb[0].mxu0
    %644 = vdwg.mxu0
    %645 = vmatprep.subr.bf16.mxu0 0
    %646 = vmatpush1.bf16.msra.mxu0 %v558
    %647 = vmatprep.subr.bf16.mxu0 0
    %648 = vmatpush1.bf16.msra.mxu0 %v561
    %649 = vmatprep.subr.bf16.mxu0 0
    %650 = vmatpush1.bf16.msra.mxu0 %v564
    %651 = vmatprep.subr.bf16.mxu0 0
    %652 = vmatpush1.bf16.msra.mxu0 %v567
    %653 = vmatprep.subr.bf16.mxu0 0
    %654 = vmatpush1.bf16.msra.mxu0 %v570
    %655 = vmatprep.subr.bf16.mxu0 0
    %656 = vmatpush1.bf16.msra.mxu0 %v573
    %657 = vmatprep.subr.bf16.mxu0 0
    %658 = vmatpush1.bf16.msra.mxu0 %v576
    %659 = vmatprep.subr.bf16.mxu0 0
    %660 = vmatpush1.bf16.msra.mxu0 %v579
    %661 = vmatprep.subr.bf16.mxu0 0
    %662 = vmatpush1.bf16.msra.mxu0 0
    %663 = vmatprep.subr.bf16.mxu0 0
    %664 = vmatpush1.bf16.msra.mxu0 0
    %665 = vmatprep.subr.bf16.mxu0 0
    %666 = vmatpush1.bf16.msra.mxu0 0
    %667 = vmatprep.subr.bf16.mxu0 0
    %668 = vmatpush1.bf16.msra.mxu0 0
    %669 = vmatprep.subr.bf16.mxu0 0
    %670 = vmatpush1.bf16.msra.mxu0 0
    %671 = vmatprep.subr.bf16.mxu0 0
    %672 = vmatpush1.bf16.msra.mxu0 0
    %673 = vmatprep.subr.bf16.mxu0 0
    %674 = vmatpush1.bf16.msra.mxu0 0
    %675 = vmatprep.subr.bf16.mxu0 0
    %676 = vmatpush1.bf16.msra.mxu0 0
    %677 = vmatprep.mubr.bf16.mxu0 0
    %678 = vmatmul.mubr.bf16.gmra.mrb[0].mxu0 0
    %v679 = vpop.f32.mrb[0].mxu0
    %v680 = vadd.f32 0.0, %v679
    %v681 = vpop.f32.mrb[0].mxu0
    %v682 = vpop.f32.mrb[0].mxu0
    %v683 = vpop.f32.mrb[0].mxu0
    %684 = vdwg.mxu0
    %v685 = vadd.f32 %v473, %v639
    %v686 = vxor.u32 %v685, 2147483648
    %v687 = vmul.f32 %v686, 1.442695
    %v688 = vpow.pop %v687
    %v689 = vadd.f32 %v688, 1.0
    %v690 = vrcp.pop %v689
    %v691 = vmul.f32 1.0, %v690
    %v692 = vadd.f32 %v474, %v641
    %v693 = vxor.u32 %v692, 2147483648
    %v694 = vmul.f32 %v693, 1.442695
    %v695 = vpow.pop %v694
    %v696 = vadd.f32 %v695, 1.0
    %v697 = vrcp.pop %v696
    %v698 = vmul.f32 1.0, %v697
    %v699 = vadd.f32 %v680, %v471
    %v700 = vmul.f32 %v691, %v699
    %v701 = vadd.f32 %v475, %v700
    %v702 = vtanh.pop %v701
    %v703 = vsub.f32 1.0, %v698
    %v704 = vmul.f32 %v703, %v702
    %v705 = vmul.f32 %v698, 0.0
    %v706 = vadd.f32 %v704, %v705
    %707 = vst [vmem:[#allocation3] sm:$0xff] %v706
    %s708 = scalar_lea.vmem [#allocation2], 24
    %v709 = vld [vmem:[%s708] sm:$0xff]
    %v710 = vld [vmem:[%s708 + $0x8] sm:$0xff]
    %v711 = vld [vmem:[%s708 + $0x10] sm:$0xff]
    %v712 = vpack.c.bf16 %v706, %v706
    %713 = vmatprep.subr.bf16.mxu0 %v557
    %714 = vmatpush1.bf16.msra.mxu0 %v556
    %715 = vmatprep.subr.bf16.mxu0 %v560
    %716 = vmatpush1.bf16.msra.mxu0 %v559
    %717 = vmatprep.subr.bf16.mxu0 %v563
    %718 = vmatpush1.bf16.msra.mxu0 %v562
    %719 = vmatprep.subr.bf16.mxu0 %v566
    %720 = vmatpush1.bf16.msra.mxu0 %v565
    %721 = vmatprep.subr.bf16.mxu0 %v569
    %722 = vmatpush1.bf16.msra.mxu0 %v568
    %723 = vmatprep.subr.bf16.mxu0 %v572
    %724 = vmatpush1.bf16.msra.mxu0 %v571
    %725 = vmatprep.subr.bf16.mxu0 %v575
    %726 = vmatpush1.bf16.msra.mxu0 %v574
    %727 = vmatprep.subr.bf16.mxu0 %v578
    %728 = vmatpush1.bf16.msra.mxu0 %v577
    %729 = vmatprep.subr.bf16.mxu0 0
    %730 = vmatpush1.bf16.msra.mxu0 0
    %731 = vmatprep.subr.bf16.mxu0 0
    %732 = vmatpush1.bf16.msra.mxu0 0
    %733 = vmatprep.subr.bf16.mxu0 0
    %734 = vmatpush1.bf16.msra.mxu0 0
    %735 = vmatprep.subr.bf16.mxu0 0
    %736 = vmatpush1.bf16.msra.mxu0 0
    %737 = vmatprep.subr.bf16.mxu0 0
    %738 = vmatpush1.bf16.msra.mxu0 0
    %739 = vmatprep.subr.bf16.mxu0 0
    %740 = vmatpush1.bf16.msra.mxu0 0
    %741 = vmatprep.subr.bf16.mxu0 0
    %742 = vmatpush1.bf16.msra.mxu0 0
    %743 = vmatprep.subr.bf16.mxu0 0
    %744 = vmatpush1.bf16.msra.mxu0 0
    %745 = vmatprep.mubr.bf16.mxu0 0
    %746 = vmatmul.mubr.bf16.gmra.mrb[0].mxu0 %v712
    %v747 = vpop.f32.mrb[0].mxu0
    %v748 = vadd.f32 0.0, %v747
    %v749 = vpop.f32.mrb[0].mxu0
    %v750 = vadd.f32 0.0, %v749
    %v751 = vpop.f32.mrb[0].mxu0
    %v752 = vpop.f32.mrb[0].mxu0
    %753 = vdwg.mxu0
    %754 = vmatprep.subr.bf16.mxu0 0
    %755 = vmatpush1.bf16.msra.mxu0 %v558
    %756 = vmatprep.subr.bf16.mxu0 0
    %757 = vmatpush1.bf16.msra.mxu0 %v561
    %758 = vmatprep.subr.bf16.mxu0 0
    %759 = vmatpush1.bf16.msra.mxu0 %v564
    %760 = vmatprep.subr.bf16.mxu0 0
    %761 = vmatpush1.bf16.msra.mxu0 %v567
    %762 = vmatprep.subr.bf16.mxu0 0
    %763 = vmatpush1.bf16.msra.mxu0 %v570
    %764 = vmatprep.subr.bf16.mxu0 0
    %765 = vmatpush1.bf16.msra.mxu0 %v573
    %766 = vmatprep.subr.bf16.mxu0 0
    %767 = vmatpush1.bf16.msra.mxu0 %v576
    %768 = vmatprep.subr.bf16.mxu0 0
    %769 = vmatpush1.bf16.msra.mxu0 %v579
    %770 = vmatprep.subr.bf16.mxu0 0
    %771 = vmatpush1.bf16.msra.mxu0 0
    %772 = vmatprep.subr.bf16.mxu0 0
    %773 = vmatpush1.bf16.msra.mxu0 0
    %774 = vmatprep.subr.bf16.mxu0 0
    %775 = vmatpush1.bf16.msra.mxu0 0
    %776 = vmatprep.subr.bf16.mxu0 0
    %777 = vmatpush1.bf16.msra.mxu0 0
    %778 = vmatprep.subr.bf16.mxu0 0
    %779 = vmatpush1.bf16.msra.mxu0 0
    %780 = vmatprep.subr.bf16.mxu0 0
    %781 = vmatpush1.bf16.msra.mxu0 0
    %782 = vmatprep.subr.bf16.mxu0 0
    %783 = vmatpush1.bf16.msra.mxu0 0
    %784 = vmatprep.subr.bf16.mxu0 0
    %785 = vmatpush1.bf16.msra.mxu0 0
    %786 = vmatprep.mubr.bf16.mxu0 0
    %787 = vmatmul.mubr.bf16.gmra.mrb[0].mxu0 %v712
    %v788 = vpop.f32.mrb[0].mxu0
    %v789 = vadd.f32 0.0, %v788
    %v790 = vpop.f32.mrb[0].mxu0
    %v791 = vpop.f32.mrb[0].mxu0
    %v792 = vpop.f32.mrb[0].mxu0
    %793 = vdwg.mxu0
    %v794 = vadd.f32 %v709, %v748
    %v795 = vxor.u32 %v794, 2147483648
    %v796 = vmul.f32 %v795, 1.442695
    %v797 = vpow.pop %v796
    %v798 = vadd.f32 %v797, 1.0
    %v799 = vrcp.pop %v798
    %v800 = vmul.f32 1.0, %v799
    %v801 = vadd.f32 %v710, %v750
    %v802 = vxor.u32 %v801, 2147483648
    %v803 = vmul.f32 %v802, 1.442695
    %v804 = vpow.pop %v803
    %v805 = vadd.f32 %v804, 1.0
    %v806 = vrcp.pop %v805
    %v807 = vmul.f32 1.0, %v806
    %v808 = vadd.f32 %v789, %v471
    %v809 = vmul.f32 %v800, %v808
    %v810 = vadd.f32 %v711, %v809
    %v811 = vtanh.pop %v810
    %v812 = vsub.f32 1.0, %v807
    %v813 = vmul.f32 %v812, %v811
    %v814 = vmul.f32 %v807, %v706
    %v815 = vadd.f32 %v813, %v814
    %s816 = scalar_lea.vmem [#allocation3], 8
    %817 = vst [vmem:[%s816] sm:$0xff] %v815
    %s818 = scalar_lea.vmem [#allocation2], 48
    %v819 = vld [vmem:[%s818] sm:$0xff]
    %v820 = vld [vmem:[%s818 + $0x8] sm:$0xff]
    %v821 = vld [vmem:[%s818 + $0x10] sm:$0xff]
    %v822 = vpack.c.bf16 %v815, %v815
    %823 = vmatprep.subr.bf16.mxu0 %v557
    %824 = vmatpush1.bf16.msra.mxu0 %v556
    %825 = vmatprep.subr.bf16.mxu0 %v560
    %826 = vmatpush1.bf16.msra.mxu0 %v559
    %827 = vmatprep.subr.bf16.mxu0 %v563
    %828 = vmatpush1.bf16.msra.mxu0 %v562
    %829 = vmatprep.subr.bf16.mxu0 %v566
    %830 = vmatpush1.bf16.msra.mxu0 %v565
    %831 = vmatprep.subr.bf16.mxu0 %v569
    %832 = vmatpush1.bf16.msra.mxu0 %v568
    %833 = vmatprep.subr.bf16.mxu0 %v572
    %834 = vmatpush1.bf16.msra.mxu0 %v571
    %835 = vmatprep.subr.bf16.mxu0 %v575
    %836 = vmatpush1.bf16.msra.mxu0 %v574
    %837 = vmatprep.subr.bf16.mxu0 %v578
    %838 = vmatpush1.bf16.msra.mxu0 %v577
    %839 = vmatprep.subr.bf16.mxu0 0
    %840 = vmatpush1.bf16.msra.mxu0 0
    %841 = vmatprep.subr.bf16.mxu0 0
    %842 = vmatpush1.bf16.msra.mxu0 0
    %843 = vmatprep.subr.bf16.mxu0 0
    %844 = vmatpush1.bf16.msra.mxu0 0
    %845 = vmatprep.subr.bf16.mxu0 0
    %846 = vmatpush1.bf16.msra.mxu0 0
    %847 = vmatprep.subr.bf16.mxu0 0
    %848 = vmatpush1.bf16.msra.mxu0 0
    %849 = vmatprep.subr.bf16.mxu0 0
    %850 = vmatpush1.bf16.msra.mxu0 0
    %851 = vmatprep.subr.bf16.mxu0 0
    %852 = vmatpush1.bf16.msra.mxu0 0
    %853 = vmatprep.subr.bf16.mxu0 0
    %854 = vmatpush1.bf16.msra.mxu0 0
    %855 = vmatprep.mubr.bf16.mxu0 0
    %856 = vmatmul.mubr.bf16.gmra.mrb[0].mxu0 %v822
    %v857 = vpop.f32.mrb[0].mxu0
    %v858 = vadd.f32 0.0, %v857
    %v859 = vpop.f32.mrb[0].mxu0
    %v860 = vadd.f32 0.0, %v859
    %v861 = vpop.f32.mrb[0].mxu0
    %v862 = vpop.f32.mrb[0].mxu0
    %863 = vdwg.mxu0
    %864 = vmatprep.subr.bf16.mxu0 0
    %865 = vmatpush1.bf16.msra.mxu0 %v558
    %866 = vmatprep.subr.bf16.mxu0 0
    %867 = vmatpush1.bf16.msra.mxu0 %v561
    %868 = vmatprep.subr.bf16.mxu0 0
    %869 = vmatpush1.bf16.msra.mxu0 %v564
    %870 = vmatprep.subr.bf16.mxu0 0
    %871 = vmatpush1.bf16.msra.mxu0 %v567
    %872 = vmatprep.subr.bf16.mxu0 0
    %873 = vmatpush1.bf16.msra.mxu0 %v570
    %874 = vmatprep.subr.bf16.mxu0 0
    %875 = vmatpush1.bf16.msra.mxu0 %v573
    %876 = vmatprep.subr.bf16.mxu0 0
    %877 = vmatpush1.bf16.msra.mxu0 %v576
    %878 = vmatprep.subr.bf16.mxu0 0
    %879 = vmatpush1.bf16.msra.mxu0 %v579
    %880 = vmatprep.subr.bf16.mxu0 0
    %881 = vmatpush1.bf16.msra.mxu0 0
    %882 = vmatprep.subr.bf16.mxu0 0
    %883 = vmatpush1.bf16.msra.mxu0 0
    %884 = vmatprep.subr.bf16.mxu0 0
    %885 = vmatpush1.bf16.msra.mxu0 0
    %886 = vmatprep.subr.bf16.mxu0 0
    %887 = vmatpush1.bf16.msra.mxu0 0
    %888 = vmatprep.subr.bf16.mxu0 0
    %889 = vmatpush1.bf16.msra.mxu0 0
    %890 = vmatprep.subr.bf16.mxu0 0
    %891 = vmatpush1.bf16.msra.mxu0 0
    %892 = vmatprep.subr.bf16.mxu0 0
    %893 = vmatpush1.bf16.msra.mxu0 0
    %894 = vmatprep.subr.bf16.mxu0 0
    %895 = vmatpush1.bf16.msra.mxu0 0
    %896 = vmatprep.mubr.bf16.mxu0 0
    %897 = vmatmul.mubr.bf16.gmra.mrb[0].mxu0 %v822
    %v898 = vpop.f32.mrb[0].mxu0
    %v899 = vadd.f32 0.0, %v898
    %v900 = vpop.f32.mrb[0].mxu0
    %v901 = vpop.f32.mrb[0].mxu0
    %v902 = vpop.f32.mrb[0].mxu0
    %903 = vdwg.mxu0
    %v904 = vadd.f32 %v819, %v858
    %v905 = vxor.u32 %v904, 2147483648
    %v906 = vmul.f32 %v905, 1.442695
    %v907 = vpow.pop %v906
    %v908 = vadd.f32 %v907, 1.0
    %v909 = vrcp.pop %v908
    %v910 = vmul.f32 1.0, %v909
    %v911 = vadd.f32 %v820, %v860
    %v912 = vxor.u32 %v911, 2147483648
    %v913 = vmul.f32 %v912, 1.442695
    %v914 = vpow.pop %v913
    %v915 = vadd.f32 %v914, 1.0
    %v916 = vrcp.pop %v915
    %v917 = vmul.f32 1.0, %v916
    %v918 = vadd.f32 %v899, %v471
    %v919 = vmul.f32 %v910, %v918
    %v920 = vadd.f32 %v821, %v919
    %v921 = vtanh.pop %v920
    %v922 = vsub.f32 1.0, %v917
    %v923 = vmul.f32 %v922, %v921
    %v924 = vmul.f32 %v917, %v815
    %v925 = vadd.f32 %v923, %v924
    %s926 = scalar_lea.vmem [#allocation3], 16
    %927 = vst [vmem:[%s926] sm:$0xff] %v925
    %s928 = scalar_lea.vmem [#allocation2], 72
    %v929 = vld [vmem:[%s928] sm:$0xff]
    %v930 = vld [vmem:[%s928 + $0x8] sm:$0xff]
    %v931 = vld [vmem:[%s928 + $0x10] sm:$0xff]
    %v932 = vpack.c.bf16 %v925, %v925
    %933 = vmatprep.subr.bf16.mxu0 %v557
    %934 = vmatpush1.bf16.msra.mxu0 %v556
    %935 = vmatprep.subr.bf16.mxu0 %v560
    %936 = vmatpush1.bf16.msra.mxu0 %v559
    %937 = vmatprep.subr.bf16.mxu0 %v563
    %938 = vmatpush1.bf16.msra.mxu0 %v562
    %939 = vmatprep.subr.bf16.mxu0 %v566
    %940 = vmatpush1.bf16.msra.mxu0 %v565
    %941 = vmatprep.subr.bf16.mxu0 %v569
    %942 = vmatpush1.bf16.msra.mxu0 %v568
    %943 = vmatprep.subr.bf16.mxu0 %v572
    %944 = vmatpush1.bf16.msra.mxu0 %v571
    %945 = vmatprep.subr.bf16.mxu0 %v575
    %946 = vmatpush1.bf16.msra.mxu0 %v574
    %947 = vmatprep.subr.bf16.mxu0 %v578
    %948 = vmatpush1.bf16.msra.mxu0 %v577
    %949 = vmatprep.subr.bf16.mxu0 0
    %950 = vmatpush1.bf16.msra.mxu0 0
    %951 = vmatprep.subr.bf16.mxu0 0
    %952 = vmatpush1.bf16.msra.mxu0 0
    %953 = vmatprep.subr.bf16.mxu0 0
    %954 = vmatpush1.bf16.msra.mxu0 0
    %955 = vmatprep.subr.bf16.mxu0 0
    %956 = vmatpush1.bf16.msra.mxu0 0
    %957 = vmatprep.subr.bf16.mxu0 0
    %958 = vmatpush1.bf16.msra.mxu0 0
    %959 = vmatprep.subr.bf16.mxu0 0
    %960 = vmatpush1.bf16.msra.mxu0 0
    %961 = vmatprep.subr.bf16.mxu0 0
    %962 = vmatpush1.bf16.msra.mxu0 0
    %963 = vmatprep.subr.bf16.mxu0 0
    %964 = vmatpush1.bf16.msra.mxu0 0
    %965 = vmatprep.mubr.bf16.mxu0 0
    %966 = vmatmul.mubr.bf16.gmra.mrb[0].mxu0 %v932
    %v967 = vpop.f32.mrb[0].mxu0
    %v968 = vadd.f32 0.0, %v967
    %v969 = vpop.f32.mrb[0].mxu0
    %v970 = vadd.f32 0.0, %v969
    %v971 = vpop.f32.mrb[0].mxu0
    %v972 = vpop.f32.mrb[0].mxu0
    %973 = vdwg.mxu0
    %974 = vmatprep.subr.bf16.mxu0 0
    %975 = vmatpush1.bf16.msra.mxu0 %v558
    %976 = vmatprep.subr.bf16.mxu0 0
    %977 = vmatpush1.bf16.msra.mxu0 %v561
    %978 = vmatprep.subr.bf16.mxu0 0
    %979 = vmatpush1.bf16.msra.mxu0 %v564
    %980 = vmatprep.subr.bf16.mxu0 0
    %981 = vmatpush1.bf16.msra.mxu0 %v567
    %982 = vmatprep.subr.bf16.mxu0 0
    %983 = vmatpush1.bf16.msra.mxu0 %v570
    %984 = vmatprep.subr.bf16.mxu0 0
    %985 = vmatpush1.bf16.msra.mxu0 %v573
    %986 = vmatprep.subr.bf16.mxu0 0
    %987 = vmatpush1.bf16.msra.mxu0 %v576
    %988 = vmatprep.subr.bf16.mxu0 0
    %989 = vmatpush1.bf16.msra.mxu0 %v579
    %990 = vmatprep.subr.bf16.mxu0 0
    %991 = vmatpush1.bf16.msra.mxu0 0
    %992 = vmatprep.subr.bf16.mxu0 0
    %993 = vmatpush1.bf16.msra.mxu0 0
    %994 = vmatprep.subr.bf16.mxu0 0
    %995 = vmatpush1.bf16.msra.mxu0 0
    %996 = vmatprep.subr.bf16.mxu0 0
    %997 = vmatpush1.bf16.msra.mxu0 0
    %998 = vmatprep.subr.bf16.mxu0 0
    %999 = vmatpush1.bf16.msra.mxu0 0
    %1000 = vmatprep.subr.bf16.mxu0 0
    %1001 = vmatpush1.bf16.msra.mxu0 0
    %1002 = vmatprep.subr.bf16.mxu0 0
    %1003 = vmatpush1.bf16.msra.mxu0 0
    %1004 = vmatprep.subr.bf16.mxu0 0
    %1005 = vmatpush1.bf16.msra.mxu0 0
    %1006 = vmatprep.mubr.bf16.mxu0 0
    %1007 = vmatmul.mubr.bf16.gmra.mrb[0].mxu0 %v932
    %v1008 = vpop.f32.mrb[0].mxu0
    %v1009 = vadd.f32 0.0, %v1008
    %v1010 = vpop.f32.mrb[0].mxu0
    %v1011 = vpop.f32.mrb[0].mxu0
    %v1012 = vpop.f32.mrb[0].mxu0
    %1013 = vdwg.mxu0
    %v1014 = vadd.f32 %v929, %v968
    %v1015 = vxor.u32 %v1014, 2147483648
    %v1016 = vmul.f32 %v1015, 1.442695
    %v1017 = vpow.pop %v1016
    %v1018 = vadd.f32 %v1017, 1.0
    %v1019 = vrcp.pop %v1018
    %v1020 = vmul.f32 1.0, %v1019
    %v1021 = vadd.f32 %v930, %v970
    %v1022 = vxor.u32 %v1021, 2147483648
    %v1023 = vmul.f32 %v1022, 1.442695
    %v1024 = vpow.pop %v1023
    %v1025 = vadd.f32 %v1024, 1.0
    %v1026 = vrcp.pop %v1025
    %v1027 = vmul.f32 1.0, %v1026
    %v1028 = vadd.f32 %v1009, %v471
    %v1029 = vmul.f32 %v1020, %v1028
    %v1030 = vadd.f32 %v931, %v1029
    %v1031 = vtanh.pop %v1030
    %v1032 = vsub.f32 1.0, %v1027
    %v1033 = vmul.f32 %v1032, %v1031
    %v1034 = vmul.f32 %v1027, %v925
    %v1035 = vadd.f32 %v1033, %v1034
    %s1036 = scalar_lea.vmem [#allocation3], 24
    %1037 = vst [vmem:[%s1036] sm:$0xff] %v1035
    %s1038 = scalar_lea.vmem [#allocation2], 96
    %v1039 = vld [vmem:[%s1038] sm:$0xff]
    %v1040 = vld [vmem:[%s1038 + $0x8] sm:$0xff]
    %v1041 = vld [vmem:[%s1038 + $0x10] sm:$0xff]
    %v1042 = vpack.c.bf16 %v1035, %v1035
    %1043 = vmatprep.subr.bf16.mxu0 %v557
    %1044 = vmatpush1.bf16.msra.mxu0 %v556
    %1045 = vmatprep.subr.bf16.mxu0 %v560
    %1046 = vmatpush1.bf16.msra.mxu0 %v559
    %1047 = vmatprep.subr.bf16.mxu0 %v563
    %1048 = vmatpush1.bf16.msra.mxu0 %v562
    %1049 = vmatprep.subr.bf16.mxu0 %v566
    %1050 = vmatpush1.bf16.msra.mxu0 %v565
    %1051 = vmatprep.subr.bf16.mxu0 %v569
    %1052 = vmatpush1.bf16.msra.mxu0 %v568
    %1053 = vmatprep.subr.bf16.mxu0 %v572
    %1054 = vmatpush1.bf16.msra.mxu0 %v571
    %1055 = vmatprep.subr.bf16.mxu0 %v575
    %1056 = vmatpush1.bf16.msra.mxu0 %v574
    %1057 = vmatprep.subr.bf16.mxu0 %v578
    %1058 = vmatpush1.bf16.msra.mxu0 %v577
    %1059 = vmatprep.subr.bf16.mxu0 0
    %1060 = vmatpush1.bf16.msra.mxu0 0
    %1061 = vmatprep.subr.bf16.mxu0 0
    %1062 = vmatpush1.bf16.msra.mxu0 0
    %1063 = vmatprep.subr.bf16.mxu0 0
    %1064 = vmatpush1.bf16.msra.mxu0 0
    %1065 = vmatprep.subr.bf16.mxu0 0
    %1066 = vmatpush1.bf16.msra.mxu0 0
    %1067 = vmatprep.subr.bf16.mxu0 0
    %1068 = vmatpush1.bf16.msra.mxu0 0
    %1069 = vmatprep.subr.bf16.mxu0 0
    %1070 = vmatpush1.bf16.msra.mxu0 0
    %1071 = vmatprep.subr.bf16.mxu0 0
    %1072 = vmatpush1.bf16.msra.mxu0 0
    %1073 = vmatprep.subr.bf16.mxu0 0
    %1074 = vmatpush1.bf16.msra.mxu0 0
    %1075 = vmatprep.mubr.bf16.mxu0 0
    %1076 = vmatmul.mubr.bf16.gmra.mrb[0].mxu0 %v1042
    %v1077 = vpop.f32.mrb[0].mxu0
    %v1078 = vadd.f32 0.0, %v1077
    %v1079 = vpop.f32.mrb[0].mxu0
    %v1080 = vadd.f32 0.0, %v1079
    %v1081 = vpop.f32.mrb[0].mxu0
    %v1082 = vpop.f32.mrb[0].mxu0
    %1083 = vdwg.mxu0
    %1084 = vmatprep.subr.bf16.mxu0 0
    %1085 = vmatpush1.bf16.msra.mxu0 %v558
    %1086 = vmatprep.subr.bf16.mxu0 0
    %1087 = vmatpush1.bf16.msra.mxu0 %v561
    %1088 = vmatprep.subr.bf16.mxu0 0
    %1089 = vmatpush1.bf16.msra.mxu0 %v564
    %1090 = vmatprep.subr.bf16.mxu0 0
    %1091 = vmatpush1.bf16.msra.mxu0 %v567
    %1092 = vmatprep.subr.bf16.mxu0 0
    %1093 = vmatpush1.bf16.msra.mxu0 %v570
    %1094 = vmatprep.subr.bf16.mxu0 0
    %1095 = vmatpush1.bf16.msra.mxu0 %v573
    %1096 = vmatprep.subr.bf16.mxu0 0
    %1097 = vmatpush1.bf16.msra.mxu0 %v576
    %1098 = vmatprep.subr.bf16.mxu0 0
    %1099 = vmatpush1.bf16.msra.mxu0 %v579
    %1100 = vmatprep.subr.bf16.mxu0 0
    %1101 = vmatpush1.bf16.msra.mxu0 0
    %1102 = vmatprep.subr.bf16.mxu0 0
    %1103 = vmatpush1.bf16.msra.mxu0 0
    %1104 = vmatprep.subr.bf16.mxu0 0
    %1105 = vmatpush1.bf16.msra.mxu0 0
    %1106 = vmatprep.subr.bf16.mxu0 0
    %1107 = vmatpush1.bf16.msra.mxu0 0
    %1108 = vmatprep.subr.bf16.mxu0 0
    %1109 = vmatpush1.bf16.msra.mxu0 0
    %1110 = vmatprep.subr.bf16.mxu0 0
    %1111 = vmatpush1.bf16.msra.mxu0 0
    %1112 = vmatprep.subr.bf16.mxu0 0
    %1113 = vmatpush1.bf16.msra.mxu0 0
    %1114 = vmatprep.subr.bf16.mxu0 0
    %1115 = vmatpush1.bf16.msra.mxu0 0
    %1116 = vmatprep.mubr.bf16.mxu0 0
    %1117 = vmatmul.mubr.bf16.gmra.mrb[0].mxu0 %v1042
    %v1118 = vpop.f32.mrb[0].mxu0
    %v1119 = vadd.f32 0.0, %v1118
    %v1120 = vpop.f32.mrb[0].mxu0
    %v1121 = vpop.f32.mrb[0].mxu0
    %v1122 = vpop.f32.mrb[0].mxu0
    %1123 = vdwg.mxu0
    %v1124 = vadd.f32 %v1039, %v1078
    %v1125 = vxor.u32 %v1124, 2147483648
    %v1126 = vmul.f32 %v1125, 1.442695
    %v1127 = vpow.pop %v1126
    %v1128 = vadd.f32 %v1127, 1.0
    %v1129 = vrcp.pop %v1128
    %v1130 = vmul.f32 1.0, %v1129
    %v1131 = vadd.f32 %v1040, %v1080
    %v1132 = vxor.u32 %v1131, 2147483648
    %v1133 = vmul.f32 %v1132, 1.442695
    %v1134 = vpow.pop %v1133
    %v1135 = vadd.f32 %v1134, 1.0
    %v1136 = vrcp.pop %v1135
    %v1137 = vmul.f32 1.0, %v1136
    %v1138 = vadd.f32 %v1119, %v471
    %v1139 = vmul.f32 %v1130, %v1138
    %v1140 = vadd.f32 %v1041, %v1139
    %v1141 = vtanh.pop %v1140
    %v1142 = vsub.f32 1.0, %v1137
    %v1143 = vmul.f32 %v1142, %v1141
    %v1144 = vmul.f32 %v1137, %v1035
    %v1145 = vadd.f32 %v1143, %v1144
    %s1146 = scalar_lea.vmem [#allocation3], 32
    %1147 = vst [vmem:[%s1146] sm:$0xff] %v1145
    %s1148 = scalar_lea.vmem [#allocation2], 120
    %v1149 = vld [vmem:[%s1148] sm:$0xff]
    %v1150 = vld [vmem:[%s1148 + $0x8] sm:$0xff]
    %v1151 = vld [vmem:[%s1148 + $0x10] sm:$0xff]
    %v1152 = vpack.c.bf16 %v1145, %v1145
    %1153 = vmatprep.subr.bf16.mxu0 %v557
    %1154 = vmatpush1.bf16.msra.mxu0 %v556
    %1155 = vmatprep.subr.bf16.mxu0 %v560
    %1156 = vmatpush1.bf16.msra.mxu0 %v559
    %1157 = vmatprep.subr.bf16.mxu0 %v563
    %1158 = vmatpush1.bf16.msra.mxu0 %v562
    %1159 = vmatprep.subr.bf16.mxu0 %v566
    %1160 = vmatpush1.bf16.msra.mxu0 %v565
    %1161 = vmatprep.subr.bf16.mxu0 %v569
    %1162 = vmatpush1.bf16.msra.mxu0 %v568
    %1163 = vmatprep.subr.bf16.mxu0 %v572
    %1164 = vmatpush1.bf16.msra.mxu0 %v571
    %1165 = vmatprep.subr.bf16.mxu0 %v575
    %1166 = vmatpush1.bf16.msra.mxu0 %v574
    %1167 = vmatprep.subr.bf16.mxu0 %v578
    %1168 = vmatpush1.bf16.msra.mxu0 %v577
    %1169 = vmatprep.subr.bf16.mxu0 0
    %1170 = vmatpush1.bf16.msra.mxu0 0
    %1171 = vmatprep.subr.bf16.mxu0 0
    %1172 = vmatpush1.bf16.msra.mxu0 0
    %1173 = vmatprep.subr.bf16.mxu0 0
    %1174 = vmatpush1.bf16.msra.mxu0 0
    %1175 = vmatprep.subr.bf16.mxu0 0
    %1176 = vmatpush1.bf16.msra.mxu0 0
    %1177 = vmatprep.subr.bf16.mxu0 0
    %1178 = vmatpush1.bf16.msra.mxu0 0
    %1179 = vmatprep.subr.bf16.mxu0 0
    %1180 = vmatpush1.bf16.msra.mxu0 0
    %1181 = vmatprep.subr.bf16.mxu0 0
    %1182 = vmatpush1.bf16.msra.mxu0 0
    %1183 = vmatprep.subr.bf16.mxu0 0
    %1184 = vmatpush1.bf16.msra.mxu0 0
    %1185 = vmatprep.mubr.bf16.mxu0 0
    %1186 = vmatmul.mubr.bf16.gmra.mrb[0].mxu0 %v1152
    %v1187 = vpop.f32.mrb[0].mxu0
    %v1188 = vadd.f32 0.0, %v1187
    %v1189 = vpop.f32.mrb[0].mxu0
    %v1190 = vadd.f32 0.0, %v1189
    %v1191 = vpop.f32.mrb[0].mxu0
    %v1192 = vpop.f32.mrb[0].mxu0
    %1193 = vdwg.mxu0
    %1194 = vmatprep.subr.bf16.mxu0 0
    %1195 = vmatpush1.bf16.msra.mxu0 %v558
    %1196 = vmatprep.subr.bf16.mxu0 0
    %1197 = vmatpush1.bf16.msra.mxu0 %v561
    %1198 = vmatprep.subr.bf16.mxu0 0
    %1199 = vmatpush1.bf16.msra.mxu0 %v564
    %1200 = vmatprep.subr.bf16.mxu0 0
    %1201 = vmatpush1.bf16.msra.mxu0 %v567
    %1202 = vmatprep.subr.bf16.mxu0 0
    %1203 = vmatpush1.bf16.msra.mxu0 %v570
    %1204 = vmatprep.subr.bf16.mxu0 0
    %1205 = vmatpush1.bf16.msra.mxu0 %v573
    %1206 = vmatprep.subr.bf16.mxu0 0
    %1207 = vmatpush1.bf16.msra.mxu0 %v576
    %1208 = vmatprep.subr.bf16.mxu0 0
    %1209 = vmatpush1.bf16.msra.mxu0 %v579
    %1210 = vmatprep.subr.bf16.mxu0 0
    %1211 = vmatpush1.bf16.msra.mxu0 0
    %1212 = vmatprep.subr.bf16.mxu0 0
    %1213 = vmatpush1.bf16.msra.mxu0 0
    %1214 = vmatprep.subr.bf16.mxu0 0
    %1215 = vmatpush1.bf16.msra.mxu0 0
    %1216 = vmatprep.subr.bf16.mxu0 0
    %1217 = vmatpush1.bf16.msra.mxu0 0
    %1218 = vmatprep.subr.bf16.mxu0 0
    %1219 = vmatpush1.bf16.msra.mxu0 0
    %1220 = vmatprep.subr.bf16.mxu0 0
    %1221 = vmatpush1.bf16.msra.mxu0 0
    %1222 = vmatprep.subr.bf16.mxu0 0
    %1223 = vmatpush1.bf16.msra.mxu0 0
    %1224 = vmatprep.subr.bf16.mxu0 0
    %1225 = vmatpush1.bf16.msra.mxu0 0
    %1226 = vmatprep.mubr.bf16.mxu0 0
    %1227 = vmatmul.mubr.bf16.gmra.mrb[0].mxu0 %v1152
    %v1228 = vpop.f32.mrb[0].mxu0
    %v1229 = vadd.f32 0.0, %v1228
    %v1230 = vpop.f32.mrb[0].mxu0
    %v1231 = vpop.f32.mrb[0].mxu0
    %v1232 = vpop.f32.mrb[0].mxu0
    %1233 = vdwg.mxu0
    %v1234 = vadd.f32 %v1149, %v1188
    %v1235 = vxor.u32 %v1234, 2147483648
    %v1236 = vmul.f32 %v1235, 1.442695
    %v1237 = vpow.pop %v1236
    %v1238 = vadd.f32 %v1237, 1.0
    %v1239 = vrcp.pop %v1238
    %v1240 = vmul.f32 1.0, %v1239
    %v1241 = vadd.f32 %v1150, %v1190
    %v1242 = vxor.u32 %v1241, 2147483648
    %v1243 = vmul.f32 %v1242, 1.442695
    %v1244 = vpow.pop %v1243
    %v1245 = vadd.f32 %v1244, 1.0
    %v1246 = vrcp.pop %v1245
    %v1247 = vmul.f32 1.0, %v1246
    %v1248 = vadd.f32 %v1229, %v471
    %v1249 = vmul.f32 %v1240, %v1248
    %v1250 = vadd.f32 %v1151, %v1249
    %v1251 = vtanh.pop %v1250
    %v1252 = vsub.f32 1.0, %v1247
    %v1253 = vmul.f32 %v1252, %v1251
    %v1254 = vmul.f32 %v1247, %v1145
    %v1255 = vadd.f32 %v1253, %v1254
    %s1256 = scalar_lea.vmem [#allocation3], 40
    %1257 = vst [vmem:[%s1256] sm:$0xff] %v1255
    %s1258 = scalar_lea.vmem [#allocation2], 144
    %v1259 = vld [vmem:[%s1258] sm:$0xff]
    %v1260 = vld [vmem:[%s1258 + $0x8] sm:$0xff]
    %v1261 = vld [vmem:[%s1258 + $0x10] sm:$0xff]
    %v1262 = vpack.c.bf16 %v1255, %v1255
    %1263 = vmatprep.subr.bf16.mxu0 %v557
    %1264 = vmatpush1.bf16.msra.mxu0 %v556
    %1265 = vmatprep.subr.bf16.mxu0 %v560
    %1266 = vmatpush1.bf16.msra.mxu0 %v559
    %1267 = vmatprep.subr.bf16.mxu0 %v563
    %1268 = vmatpush1.bf16.msra.mxu0 %v562
    %1269 = vmatprep.subr.bf16.mxu0 %v566
    %1270 = vmatpush1.bf16.msra.mxu0 %v565
    %1271 = vmatprep.subr.bf16.mxu0 %v569
    %1272 = vmatpush1.bf16.msra.mxu0 %v568
    %1273 = vmatprep.subr.bf16.mxu0 %v572
    %1274 = vmatpush1.bf16.msra.mxu0 %v571
    %1275 = vmatprep.subr.bf16.mxu0 %v575
    %1276 = vmatpush1.bf16.msra.mxu0 %v574
    %1277 = vmatprep.subr.bf16.mxu0 %v578
    %1278 = vmatpush1.bf16.msra.mxu0 %v577
    %1279 = vmatprep.subr.bf16.mxu0 0
    %1280 = vmatpush1.bf16.msra.mxu0 0
    %1281 = vmatprep.subr.bf16.mxu0 0
    %1282 = vmatpush1.bf16.msra.mxu0 0
    %1283 = vmatprep.subr.bf16.mxu0 0
    %1284 = vmatpush1.bf16.msra.mxu0 0
    %1285 = vmatprep.subr.bf16.mxu0 0
    %1286 = vmatpush1.bf16.msra.mxu0 0
    %1287 = vmatprep.subr.bf16.mxu0 0
    %1288 = vmatpush1.bf16.msra.mxu0 0
    %1289 = vmatprep.subr.bf16.mxu0 0
    %1290 = vmatpush1.bf16.msra.mxu0 0
    %1291 = vmatprep.subr.bf16.mxu0 0
    %1292 = vmatpush1.bf16.msra.mxu0 0
    %1293 = vmatprep.subr.bf16.mxu0 0
    %1294 = vmatpush1.bf16.msra.mxu0 0
    %1295 = vmatprep.mubr.bf16.mxu0 0
    %1296 = vmatmul.mubr.bf16.gmra.mrb[0].mxu0 %v1262
    %v1297 = vpop.f32.mrb[0].mxu0
    %v1298 = vadd.f32 0.0, %v1297
    %v1299 = vpop.f32.mrb[0].mxu0
    %v1300 = vadd.f32 0.0, %v1299
    %v1301 = vpop.f32.mrb[0].mxu0
    %v1302 = vpop.f32.mrb[0].mxu0
    %1303 = vdwg.mxu0
    %1304 = vmatprep.subr.bf16.mxu0 0
    %1305 = vmatpush1.bf16.msra.mxu0 %v558
    %1306 = vmatprep.subr.bf16.mxu0 0
    %1307 = vmatpush1.bf16.msra.mxu0 %v561
    %1308 = vmatprep.subr.bf16.mxu0 0
    %1309 = vmatpush1.bf16.msra.mxu0 %v564
    %1310 = vmatprep.subr.bf16.mxu0 0
    %1311 = vmatpush1.bf16.msra.mxu0 %v567
    %1312 = vmatprep.subr.bf16.mxu0 0
    %1313 = vmatpush1.bf16.msra.mxu0 %v570
    %1314 = vmatprep.subr.bf16.mxu0 0
    %1315 = vmatpush1.bf16.msra.mxu0 %v573
    %1316 = vmatprep.subr.bf16.mxu0 0
    %1317 = vmatpush1.bf16.msra.mxu0 %v576
    %1318 = vmatprep.subr.bf16.mxu0 0
    %1319 = vmatpush1.bf16.msra.mxu0 %v579
    %1320 = vmatprep.subr.bf16.mxu0 0
    %1321 = vmatpush1.bf16.msra.mxu0 0
    %1322 = vmatprep.subr.bf16.mxu0 0
    %1323 = vmatpush1.bf16.msra.mxu0 0
    %1324 = vmatprep.subr.bf16.mxu0 0
    %1325 = vmatpush1.bf16.msra.mxu0 0
    %1326 = vmatprep.subr.bf16.mxu0 0
    %1327 = vmatpush1.bf16.msra.mxu0 0
    %1328 = vmatprep.subr.bf16.mxu0 0
    %1329 = vmatpush1.bf16.msra.mxu0 0
    %1330 = vmatprep.subr.bf16.mxu0 0
    %1331 = vmatpush1.bf16.msra.mxu0 0
    %1332 = vmatprep.subr.bf16.mxu0 0
    %1333 = vmatpush1.bf16.msra.mxu0 0
    %1334 = vmatprep.subr.bf16.mxu0 0
    %1335 = vmatpush1.bf16.msra.mxu0 0
    %1336 = vmatprep.mubr.bf16.mxu0 0
    %1337 = vmatmul.mubr.bf16.gmra.mrb[0].mxu0 %v1262
    %v1338 = vpop.f32.mrb[0].mxu0
    %v1339 = vadd.f32 0.0, %v1338
    %v1340 = vpop.f32.mrb[0].mxu0
    %v1341 = vpop.f32.mrb[0].mxu0
    %v1342 = vpop.f32.mrb[0].mxu0
    %1343 = vdwg.mxu0
    %v1344 = vadd.f32 %v1259, %v1298
    %v1345 = vxor.u32 %v1344, 2147483648
    %v1346 = vmul.f32 %v1345, 1.442695
    %v1347 = vpow.pop %v1346
    %v1348 = vadd.f32 %v1347, 1.0
    %v1349 = vrcp.pop %v1348
    %v1350 = vmul.f32 1.0, %v1349
    %v1351 = vadd.f32 %v1260, %v1300
    %v1352 = vxor.u32 %v1351, 2147483648
    %v1353 = vmul.f32 %v1352, 1.442695
    %v1354 = vpow.pop %v1353
    %v1355 = vadd.f32 %v1354, 1.0
    %v1356 = vrcp.pop %v1355
    %v1357 = vmul.f32 1.0, %v1356
    %v1358 = vadd.f32 %v1339, %v471
    %v1359 = vmul.f32 %v1350, %v1358
    %v1360 = vadd.f32 %v1261, %v1359
    %v1361 = vtanh.pop %v1360
    %v1362 = vsub.f32 1.0, %v1357
    %v1363 = vmul.f32 %v1362, %v1361
    %v1364 = vmul.f32 %v1357, %v1255
    %v1365 = vadd.f32 %v1363, %v1364
    %s1366 = scalar_lea.vmem [#allocation3], 48
    %1367 = vst [vmem:[%s1366] sm:$0xff] %v1365
    %s1368 = scalar_lea.vmem [#allocation2], 168
    %v1369 = vld [vmem:[%s1368] sm:$0xff]
    %v1370 = vld [vmem:[%s1368 + $0x8] sm:$0xff]
    %v1371 = vld [vmem:[%s1368 + $0x10] sm:$0xff]
    %v1372 = vpack.c.bf16 %v1365, %v1365
    %1373 = vmatprep.subr.bf16.mxu0 %v557
    %1374 = vmatpush1.bf16.msra.mxu0 %v556
    %1375 = vmatprep.subr.bf16.mxu0 %v560
    %1376 = vmatpush1.bf16.msra.mxu0 %v559
    %1377 = vmatprep.subr.bf16.mxu0 %v563
    %1378 = vmatpush1.bf16.msra.mxu0 %v562
    %1379 = vmatprep.subr.bf16.mxu0 %v566
    %1380 = vmatpush1.bf16.msra.mxu0 %v565
    %1381 = vmatprep.subr.bf16.mxu0 %v569
    %1382 = vmatpush1.bf16.msra.mxu0 %v568
    %1383 = vmatprep.subr.bf16.mxu0 %v572
    %1384 = vmatpush1.bf16.msra.mxu0 %v571
    %1385 = vmatprep.subr.bf16.mxu0 %v575
    %1386 = vmatpush1.bf16.msra.mxu0 %v574
    %1387 = vmatprep.subr.bf16.mxu0 %v578
    %1388 = vmatpush1.bf16.msra.mxu0 %v577
    %1389 = vmatprep.subr.bf16.mxu0 0
    %1390 = vmatpush1.bf16.msra.mxu0 0
    %1391 = vmatprep.subr.bf16.mxu0 0
    %1392 = vmatpush1.bf16.msra.mxu0 0
    %1393 = vmatprep.subr.bf16.mxu0 0
    %1394 = vmatpush1.bf16.msra.mxu0 0
    %1395 = vmatprep.subr.bf16.mxu0 0
    %1396 = vmatpush1.bf16.msra.mxu0 0
    %1397 = vmatprep.subr.bf16.mxu0 0
    %1398 = vmatpush1.bf16.msra.mxu0 0
    %1399 = vmatprep.subr.bf16.mxu0 0
    %1400 = vmatpush1.bf16.msra.mxu0 0
    %1401 = vmatprep.subr.bf16.mxu0 0
    %1402 = vmatpush1.bf16.msra.mxu0 0
    %1403 = vmatprep.subr.bf16.mxu0 0
    %1404 = vmatpush1.bf16.msra.mxu0 0
    %1405 = vmatprep.mubr.bf16.mxu0 0
    %1406 = vmatmul.mubr.bf16.gmra.mrb[0].mxu0 %v1372
    %v1407 = vpop.f32.mrb[0].mxu0
    %v1408 = vadd.f32 0.0, %v1407
    %v1409 = vpop.f32.mrb[0].mxu0
    %v1410 = vadd.f32 0.0, %v1409
    %v1411 = vpop.f32.mrb[0].mxu0
    %v1412 = vpop.f32.mrb[0].mxu0
    %1413 = vdwg.mxu0
    %1414 = vmatprep.subr.bf16.mxu0 0
    %1415 = vmatpush1.bf16.msra.mxu0 %v558
    %1416 = vmatprep.subr.bf16.mxu0 0
    %1417 = vmatpush1.bf16.msra.mxu0 %v561
    %1418 = vmatprep.subr.bf16.mxu0 0
    %1419 = vmatpush1.bf16.msra.mxu0 %v564
    %1420 = vmatprep.subr.bf16.mxu0 0
    %1421 = vmatpush1.bf16.msra.mxu0 %v567
    %1422 = vmatprep.subr.bf16.mxu0 0
    %1423 = vmatpush1.bf16.msra.mxu0 %v570
    %1424 = vmatprep.subr.bf16.mxu0 0
    %1425 = vmatpush1.bf16.msra.mxu0 %v573
    %1426 = vmatprep.subr.bf16.mxu0 0
    %1427 = vmatpush1.bf16.msra.mxu0 %v576
    %1428 = vmatprep.subr.bf16.mxu0 0
    %1429 = vmatpush1.bf16.msra.mxu0 %v579
    %1430 = vmatprep.subr.bf16.mxu0 0
    %1431 = vmatpush1.bf16.msra.mxu0 0
    %1432 = vmatprep.subr.bf16.mxu0 0
    %1433 = vmatpush1.bf16.msra.mxu0 0
    %1434 = vmatprep.subr.bf16.mxu0 0
    %1435 = vmatpush1.bf16.msra.mxu0 0
    %1436 = vmatprep.subr.bf16.mxu0 0
    %1437 = vmatpush1.bf16.msra.mxu0 0
    %1438 = vmatprep.subr.bf16.mxu0 0
    %1439 = vmatpush1.bf16.msra.mxu0 0
    %1440 = vmatprep.subr.bf16.mxu0 0
    %1441 = vmatpush1.bf16.msra.mxu0 0
    %1442 = vmatprep.subr.bf16.mxu0 0
    %1443 = vmatpush1.bf16.msra.mxu0 0
    %1444 = vmatprep.subr.bf16.mxu0 0
    %1445 = vmatpush1.bf16.msra.mxu0 0
    %1446 = vmatprep.mubr.bf16.mxu0 0
    %1447 = vmatmul.mubr.bf16.gmra.mrb[0].mxu0 %v1372
    %v1448 = vpop.f32.mrb[0].mxu0
    %v1449 = vadd.f32 0.0, %v1448
    %v1450 = vpop.f32.mrb[0].mxu0
    %v1451 = vpop.f32.mrb[0].mxu0
    %v1452 = vpop.f32.mrb[0].mxu0
    %1453 = vdwg.mxu0
    %v1454 = vadd.f32 %v1369, %v1408
    %v1455 = vxor.u32 %v1454, 2147483648
    %v1456 = vmul.f32 %v1455, 1.442695
    %v1457 = vpow.pop %v1456
    %v1458 = vadd.f32 %v1457, 1.0
    %v1459 = vrcp.pop %v1458
    %v1460 = vmul.f32 1.0, %v1459
    %v1461 = vadd.f32 %v1370, %v1410
    %v1462 = vxor.u32 %v1461, 2147483648
    %v1463 = vmul.f32 %v1462, 1.442695
    %v1464 = vpow.pop %v1463
    %v1465 = vadd.f32 %v1464, 1.0
    %v1466 = vrcp.pop %v1465
    %v1467 = vmul.f32 1.0, %v1466
    %v1468 = vadd.f32 %v1449, %v471
    %v1469 = vmul.f32 %v1460, %v1468
    %v1470 = vadd.f32 %v1371, %v1469
    %v1471 = vtanh.pop %v1470
    %v1472 = vsub.f32 1.0, %v1467
    %v1473 = vmul.f32 %v1472, %v1471
    %v1474 = vmul.f32 %v1467, %v1365
    %v1475 = vadd.f32 %v1473, %v1474
    %s1476 = scalar_lea.vmem [#allocation3], 56
    %1477 = vst [vmem:[%s1476] sm:$0xff] %v1475
    %v1478 = vld [vmem:[#allocation3] sm:$0xff]
    %v1479 = vld [vmem:[#allocation3 + $0x8] sm:$0xff]
    %v1480 = vld [vmem:[#allocation3 + $0x10] sm:$0xff]
    %v1481 = vld [vmem:[#allocation3 + $0x18] sm:$0xff]
    %v1482 = vld [vmem:[#allocation3 + $0x20] sm:$0xff]
    %v1483 = vld [vmem:[#allocation3 + $0x28] sm:$0xff]
    %v1484 = vld [vmem:[#allocation3 + $0x30] sm:$0xff]
    %v1485 = vld [vmem:[#allocation3 + $0x38] sm:$0xff]
    %v1486 = vpack.c.bf16 %v1479, %v1478
    %v1487 = vpack.c.bf16 %v1481, %v1480
    %v1488 = vpack.c.bf16 %v1483, %v1482
    %v1489 = vpack.c.bf16 %v1485, %v1484
    %s1490 = scalar_lea.vmem [#allocation7], 192
    %v1491 = vld [vmem:[%s1490] sm:$0xff]
    %v1492 = vld [vmem:[%s1490 + $0x8] sm:$0xf]
    %v1493 = vld [vmem:[%s1490 + $0xc] sm:$0xff]
    %v1494 = vld [vmem:[%s1490 + $0x14] sm:$0xf]
    %v1495 = vld [vmem:[%s1490 + $0x18] sm:$0xff]
    %v1496 = vld [vmem:[%s1490 + $0x20] sm:$0xf]
    %v1497 = vld [vmem:[%s1490 + $0x24] sm:$0xff]
    %v1498 = vld [vmem:[%s1490 + $0x2c] sm:$0xf]
    %v1499 = vld [vmem:[%s1490 + $0x30] sm:$0xff]
    %v1500 = vld [vmem:[%s1490 + $0x38] sm:$0xf]
    %v1501 = vld [vmem:[%s1490 + $0x3c] sm:$0xff]
    %v1502 = vld [vmem:[%s1490 + $0x44] sm:$0xf]
    %v1503 = vld [vmem:[%s1490 + $0x48] sm:$0xff]
    %v1504 = vld [vmem:[%s1490 + $0x50] sm:$0xf]
    %v1505 = vld [vmem:[%s1490 + $0x54] sm:$0xff]
    %v1506 = vld [vmem:[%s1490 + $0x5c] sm:$0xf]
    %v1507 = vld [vmem:[%s1490 + $0x60] sm:$0xff]
    %v1508 = vld [vmem:[%s1490 + $0x68] sm:$0xf]
    %v1509 = vld [vmem:[%s1490 + $0x6c] sm:$0xff]
    %v1510 = vld [vmem:[%s1490 + $0x74] sm:$0xf]
    %v1511 = vld [vmem:[%s1490 + $0x78] sm:$0xff]
    %v1512 = vld [vmem:[%s1490 + $0x80] sm:$0xf]
    %v1513 = vld [vmem:[%s1490 + $0x84] sm:$0xff]
    %v1514 = vld [vmem:[%s1490 + $0x8c] sm:$0xf]
    %v1515 = vld [vmem:[%s1490 + $0x90] sm:$0xff]
    %v1516 = vld [vmem:[%s1490 + $0x98] sm:$0xf]
    %v1517 = vld [vmem:[%s1490 + $0x9c] sm:$0xff]
    %v1518 = vld [vmem:[%s1490 + $0xa4] sm:$0xf]
    %v1519 = vld [vmem:[%s1490 + $0xa8] sm:$0xff]
    %v1520 = vld [vmem:[%s1490 + $0xb0] sm:$0xf]
    %v1521 = vld [vmem:[%s1490 + $0xb4] sm:$0xff]
    %v1522 = vld [vmem:[%s1490 + $0xbc] sm:$0xf]
    %s1523 = scalar_lea.vmem %s3, 3
    %v1524 = vld [vmem:[%s1523] sm:$0x7]
    %v1526 = vlaneseq
    %v1527 = vshrl.u32 %v1526, 7
    %v1528 = vsub.s32 0, %v1527
    %v1529 = vrot.slane %v1524, %v1528
    %v1530 = vlaneseq
    %v1531 = vshrl.u32 %v1530, 7
    %v1532 = vsub.s32 1, %v1531
    %v1533 = vrot.slane %v1524, %v1532
    %v1534 = vlaneseq
    %v1535 = vshrl.u32 %v1534, 7
    %v1536 = vsub.s32 2, %v1535
    %v1537 = vrot.slane %v1524, %v1536
    %v1573 = vunpack.c.l.b16 %v1491
    %v1574 = vunpack.c.h.b16 %v1491
    %v1575 = vunpack.c.l.b16 %v1492
    %v1576 = vunpack.c.l.b16 %v1493
    %v1577 = vunpack.c.h.b16 %v1493
    %v1578 = vunpack.c.l.b16 %v1494
    %v1579 = vunpack.c.l.b16 %v1495
    %v1580 = vunpack.c.h.b16 %v1495
    %v1581 = vunpack.c.l.b16 %v1496
    %v1582 = vunpack.c.l.b16 %v1497
    %v1583 = vunpack.c.h.b16 %v1497
    %v1584 = vunpack.c.l.b16 %v1498
    %v1585 = vunpack.c.l.b16 %v1499
    %v1586 = vunpack.c.h.b16 %v1499
    %v1587 = vunpack.c.l.b16 %v1500
    %v1588 = vunpack.c.l.b16 %v1501
    %v1589 = vunpack.c.h.b16 %v1501
    %v1590 = vunpack.c.l.b16 %v1502
    %v1591 = vunpack.c.l.b16 %v1503
    %v1592 = vunpack.c.h.b16 %v1503
    %v1593 = vunpack.c.l.b16 %v1504
    %v1594 = vunpack.c.l.b16 %v1505
    %v1595 = vunpack.c.h.b16 %v1505
    %v1596 = vunpack.c.l.b16 %v1506
    %v1597 = vunpack.c.l.b16 %v1507
    %v1598 = vunpack.c.h.b16 %v1507
    %v1599 = vunpack.c.l.b16 %v1508
    %v1600 = vunpack.c.l.b16 %v1509
    %v1601 = vunpack.c.h.b16 %v1509
    %v1602 = vunpack.c.l.b16 %v1510
    %v1603 = vunpack.c.l.b16 %v1511
    %v1604 = vunpack.c.h.b16 %v1511
    %v1605 = vunpack.c.l.b16 %v1512
    %v1606 = vunpack.c.l.b16 %v1513
    %v1607 = vunpack.c.h.b16 %v1513
    %v1608 = vunpack.c.l.b16 %v1514
    %v1609 = vunpack.c.l.b16 %v1515
    %v1610 = vunpack.c.h.b16 %v1515
    %v1611 = vunpack.c.l.b16 %v1516
    %v1612 = vunpack.c.l.b16 %v1517
    %v1613 = vunpack.c.h.b16 %v1517
    %v1614 = vunpack.c.l.b16 %v1518
    %v1615 = vunpack.c.l.b16 %v1519
    %v1616 = vunpack.c.h.b16 %v1519
    %v1617 = vunpack.c.l.b16 %v1520
    %v1618 = vunpack.c.l.b16 %v1521
    %v1619 = vunpack.c.h.b16 %v1521
    %v1620 = vunpack.c.l.b16 %v1522
    %v1621 = vpack.c.b16 %v1576, %v1573
    %v1622 = vpack.c.b16 %v1577, %v1574
    %v1623 = vpack.c.b16 %v1578, %v1575
    %v1624 = vpack.c.b16 %v1582, %v1579
    %v1625 = vpack.c.b16 %v1583, %v1580
    %v1626 = vpack.c.b16 %v1584, %v1581
    %v1627 = vpack.c.b16 %v1588, %v1585
    %v1628 = vpack.c.b16 %v1589, %v1586
    %v1629 = vpack.c.b16 %v1590, %v1587
    %v1630 = vpack.c.b16 %v1594, %v1591
    %v1631 = vpack.c.b16 %v1595, %v1592
    %v1632 = vpack.c.b16 %v1596, %v1593
    %v1633 = vpack.c.b16 %v1600, %v1597
    %v1634 = vpack.c.b16 %v1601, %v1598
    %v1635 = vpack.c.b16 %v1602, %v1599
    %v1636 = vpack.c.b16 %v1606, %v1603
    %v1637 = vpack.c.b16 %v1607, %v1604
    %v1638 = vpack.c.b16 %v1608, %v1605
    %v1639 = vpack.c.b16 %v1612, %v1609
    %v1640 = vpack.c.b16 %v1613, %v1610
    %v1641 = vpack.c.b16 %v1614, %v1611
    %v1642 = vpack.c.b16 %v1618, %v1615
    %v1643 = vpack.c.b16 %v1619, %v1616
    %v1644 = vpack.c.b16 %v1620, %v1617
    %1669 = vmatprep.subr.bf16.mxu0 %v1622
    %1670 = vmatpush1.bf16.msra.mxu0 %v1621
    %1671 = vmatprep.subr.bf16.mxu0 %v1625
    %1672 = vmatpush1.bf16.msra.mxu0 %v1624
    %1673 = vmatprep.subr.bf16.mxu0 %v1628
    %1674 = vmatpush1.bf16.msra.mxu0 %v1627
    %1675 = vmatprep.subr.bf16.mxu0 %v1631
    %1676 = vmatpush1.bf16.msra.mxu0 %v1630
    %1677 = vmatprep.subr.bf16.mxu0 %v1634
    %1678 = vmatpush1.bf16.msra.mxu0 %v1633
    %1679 = vmatprep.subr.bf16.mxu0 %v1637
    %1680 = vmatpush1.bf16.msra.mxu0 %v1636
    %1681 = vmatprep.subr.bf16.mxu0 %v1640
    %1682 = vmatpush1.bf16.msra.mxu0 %v1639
    %1683 = vmatprep.subr.bf16.mxu0 %v1643
    %1684 = vmatpush1.bf16.msra.mxu0 %v1642
    %1685 = vmatprep.subr.bf16.mxu0 0
    %1686 = vmatpush1.bf16.msra.mxu0 0
    %1687 = vmatprep.subr.bf16.mxu0 0
    %1688 = vmatpush1.bf16.msra.mxu0 0
    %1689 = vmatprep.subr.bf16.mxu0 0
    %1690 = vmatpush1.bf16.msra.mxu0 0
    %1691 = vmatprep.subr.bf16.mxu0 0
    %1692 = vmatpush1.bf16.msra.mxu0 0
    %1693 = vmatprep.subr.bf16.mxu0 0
    %1694 = vmatpush1.bf16.msra.mxu0 0
    %1695 = vmatprep.subr.bf16.mxu0 0
    %1696 = vmatpush1.bf16.msra.mxu0 0
    %1697 = vmatprep.subr.bf16.mxu0 0
    %1698 = vmatpush1.bf16.msra.mxu0 0
    %1699 = vmatprep.subr.bf16.mxu0 0
    %1700 = vmatpush1.bf16.msra.mxu0 0
    %1701 = vmatprep.mubr.bf16.mxu0 0
    %1702 = vmatmul.mubr.bf16.gmra.mrb[0].mxu0 %v1486
    %v1703 = vpop.f32.mrb[0].mxu0
    %v1704 = vadd.f32 %v1529, %v1703
    %v1705 = vpop.f32.mrb[0].mxu0
    %v1706 = vadd.f32 %v1533, %v1705
    %v1707 = vpop.f32.mrb[0].mxu0
    %v1708 = vadd.f32 %v1529, %v1707
    %v1709 = vpop.f32.mrb[0].mxu0
    %v1710 = vadd.f32 %v1533, %v1709
    %1711 = vmatprep.mubr.bf16.mxu0 0
    %1712 = vmatmul.mubr.bf16.gmra.mrb[0].mxu0 %v1487
    %v1713 = vpop.f32.mrb[0].mxu0
    %v1714 = vadd.f32 %v1529, %v1713
    %v1715 = vpop.f32.mrb[0].mxu0
    %v1716 = vadd.f32 %v1533, %v1715
    %v1717 = vpop.f32.mrb[0].mxu0
    %v1718 = vadd.f32 %v1529, %v1717
    %v1719 = vpop.f32.mrb[0].mxu0
    %v1720 = vadd.f32 %v1533, %v1719
    %1721 = vmatprep.mubr.bf16.mxu0 0
    %1722 = vmatmul.mubr.bf16.gmra.mrb[0].mxu0 %v1488
    %v1723 = vpop.f32.mrb[0].mxu0
    %v1724 = vadd.f32 %v1529, %v1723
    %v1725 = vpop.f32.mrb[0].mxu0
    %v1726 = vadd.f32 %v1533, %v1725
    %v1727 = vpop.f32.mrb[0].mxu0
    %v1728 = vadd.f32 %v1529, %v1727
    %v1729 = vpop.f32.mrb[0].mxu0
    %v1730 = vadd.f32 %v1533, %v1729
    %1731 = vmatprep.mubr.bf16.mxu0 0
    %1732 = vmatmul.mubr.bf16.gmra.mrb[0].mxu0 %v1489
    %v1733 = vpop.f32.mrb[0].mxu0
    %v1734 = vadd.f32 %v1529, %v1733
    %v1735 = vpop.f32.mrb[0].mxu0
    %v1736 = vadd.f32 %v1533, %v1735
    %v1737 = vpop.f32.mrb[0].mxu0
    %v1738 = vadd.f32 %v1529, %v1737
    %v1739 = vpop.f32.mrb[0].mxu0
    %v1740 = vadd.f32 %v1533, %v1739
    %1741 = vdwg.mxu0
    %1742 = vmatprep.subr.bf16.mxu0 0
    %1743 = vmatpush1.bf16.msra.mxu0 %v1623
    %1744 = vmatprep.subr.bf16.mxu0 0
    %1745 = vmatpush1.bf16.msra.mxu0 %v1626
    %1746 = vmatprep.subr.bf16.mxu0 0
    %1747 = vmatpush1.bf16.msra.mxu0 %v1629
    %1748 = vmatprep.subr.bf16.mxu0 0
    %1749 = vmatpush1.bf16.msra.mxu0 %v1632
    %1750 = vmatprep.subr.bf16.mxu0 0
    %1751 = vmatpush1.bf16.msra.mxu0 %v1635
    %1752 = vmatprep.subr.bf16.mxu0 0
    %1753 = vmatpush1.bf16.msra.mxu0 %v1638
    %1754 = vmatprep.subr.bf16.mxu0 0
    %1755 = vmatpush1.bf16.msra.mxu0 %v1641
    %1756 = vmatprep.subr.bf16.mxu0 0
    %1757 = vmatpush1.bf16.msra.mxu0 %v1644
    %1758 = vmatprep.subr.bf16.mxu0 0
    %1759 = vmatpush1.bf16.msra.mxu0 0
    %1760 = vmatprep.subr.bf16.mxu0 0
    %1761 = vmatpush1.bf16.msra.mxu0 0
    %1762 = vmatprep.subr.bf16.mxu0 0
    %1763 = vmatpush1.bf16.msra.mxu0 0
    %1764 = vmatprep.subr.bf16.mxu0 0
    %1765 = vmatpush1.bf16.msra.mxu0 0
    %1766 = vmatprep.subr.bf16.mxu0 0
    %1767 = vmatpush1.bf16.msra.mxu0 0
    %1768 = vmatprep.subr.bf16.mxu0 0
    %1769 = vmatpush1.bf16.msra.mxu0 0
    %1770 = vmatprep.subr.bf16.mxu0 0
    %1771 = vmatpush1.bf16.msra.mxu0 0
    %1772 = vmatprep.subr.bf16.mxu0 0
    %1773 = vmatpush1.bf16.msra.mxu0 0
    %1774 = vmatprep.mubr.bf16.mxu0 0
    %1775 = vmatmul.mubr.bf16.gmra.mrb[0].mxu0 %v1486
    %v1776 = vpop.f32.mrb[0].mxu0
    %v1777 = vadd.f32 %v1537, %v1776
    %v1778 = vpop.f32.mrb[0].mxu0
    %v1779 = vpop.f32.mrb[0].mxu0
    %v1780 = vadd.f32 %v1537, %v1779
    %v1781 = vpop.f32.mrb[0].mxu0
    %1782 = vmatprep.mubr.bf16.mxu0 0
    %1783 = vmatmul.mubr.bf16.gmra.mrb[0].mxu0 %v1487
    %v1784 = vpop.f32.mrb[0].mxu0
    %v1785 = vadd.f32 %v1537, %v1784
    %v1786 = vpop.f32.mrb[0].mxu0
    %v1787 = vpop.f32.mrb[0].mxu0
    %v1788 = vadd.f32 %v1537, %v1787
    %v1789 = vpop.f32.mrb[0].mxu0
    %1790 = vmatprep.mubr.bf16.mxu0 0
    %1791 = vmatmul.mubr.bf16.gmra.mrb[0].mxu0 %v1488
    %v1792 = vpop.f32.mrb[0].mxu0
    %v1793 = vadd.f32 %v1537, %v1792
    %v1794 = vpop.f32.mrb[0].mxu0
    %v1795 = vpop.f32.mrb[0].mxu0
    %v1796 = vadd.f32 %v1537, %v1795
    %v1797 = vpop.f32.mrb[0].mxu0
    %1798 = vmatprep.mubr.bf16.mxu0 0
    %1799 = vmatmul.mubr.bf16.gmra.mrb[0].mxu0 %v1489
    %v1800 = vpop.f32.mrb[0].mxu0
    %v1801 = vadd.f32 %v1537, %v1800
    %v1802 = vpop.f32.mrb[0].mxu0
    %v1803 = vpop.f32.mrb[0].mxu0
    %v1804 = vadd.f32 %v1537, %v1803
    %v1805 = vpop.f32.mrb[0].mxu0
    %1806 = vdwg.mxu0
    %1807 = vst [vmem:[#allocation2] sm:$0xff] %v1704
    %1808 = vst [vmem:[#allocation2 + $0x8] sm:$0xff] %v1706
    %1809 = vst [vmem:[#allocation2 + $0x10] sm:$0xff] %v1777
    %1810 = vst [vmem:[#allocation2 + $0x18] sm:$0xff] %v1708
    %1811 = vst [vmem:[#allocation2 + $0x20] sm:$0xff] %v1710
    %1812 = vst [vmem:[#allocation2 + $0x28] sm:$0xff] %v1780
    %1813 = vst [vmem:[#allocation2 + $0x30] sm:$0xff] %v1714
    %1814 = vst [vmem:[#allocation2 + $0x38] sm:$0xff] %v1716
    %1815 = vst [vmem:[#allocation2 + $0x40] sm:$0xff] %v1785
    %1816 = vst [vmem:[#allocation2 + $0x48] sm:$0xff] %v1718
    %1817 = vst [vmem:[#allocation2 + $0x50] sm:$0xff] %v1720
    %1818 = vst [vmem:[#allocation2 + $0x58] sm:$0xff] %v1788
    %1819 = vst [vmem:[#allocation2 + $0x60] sm:$0xff] %v1724
    %1820 = vst [vmem:[#allocation2 + $0x68] sm:$0xff] %v1726
    %1821 = vst [vmem:[#allocation2 + $0x70] sm:$0xff] %v1793
    %1822 = vst [vmem:[#allocation2 + $0x78] sm:$0xff] %v1728
    %1823 = vst [vmem:[#allocation2 + $0x80] sm:$0xff] %v1730
    %1824 = vst [vmem:[#allocation2 + $0x88] sm:$0xff] %v1796
    %1825 = vst [vmem:[#allocation2 + $0x90] sm:$0xff] %v1734
    %1826 = vst [vmem:[#allocation2 + $0x98] sm:$0xff] %v1736
    %1827 = vst [vmem:[#allocation2 + $0xa0] sm:$0xff] %v1801
    %1828 = vst [vmem:[#allocation2 + $0xa8] sm:$0xff] %v1738
    %1829 = vst [vmem:[#allocation2 + $0xb0] sm:$0xff] %v1740
    %1830 = vst [vmem:[#allocation2 + $0xb8] sm:$0xff] %v1804
    %s1831 = scalar_lea.vmem [#allocation9], 192
    %v1832 = vld [vmem:[%s1831] sm:$0xff]
    %v1833 = vld [vmem:[%s1831 + $0x8] sm:$0xf]
    %v1834 = vld [vmem:[%s1831 + $0xc] sm:$0xff]
    %v1835 = vld [vmem:[%s1831 + $0x14] sm:$0xf]
    %v1836 = vld [vmem:[%s1831 + $0x18] sm:$0xff]
    %v1837 = vld [vmem:[%s1831 + $0x20] sm:$0xf]
    %v1838 = vld [vmem:[%s1831 + $0x24] sm:$0xff]
    %v1839 = vld [vmem:[%s1831 + $0x2c] sm:$0xf]
    %v1840 = vld [vmem:[%s1831 + $0x30] sm:$0xff]
    %v1841 = vld [vmem:[%s1831 + $0x38] sm:$0xf]
    %v1842 = vld [vmem:[%s1831 + $0x3c] sm:$0xff]
    %v1843 = vld [vmem:[%s1831 + $0x44] sm:$0xf]
    %v1844 = vld [vmem:[%s1831 + $0x48] sm:$0xff]
    %v1845 = vld [vmem:[%s1831 + $0x50] sm:$0xf]
    %v1846 = vld [vmem:[%s1831 + $0x54] sm:$0xff]
    %v1847 = vld [vmem:[%s1831 + $0x5c] sm:$0xf]
    %v1848 = vld [vmem:[%s1831 + $0x60] sm:$0xff]
    %v1849 = vld [vmem:[%s1831 + $0x68] sm:$0xf]
    %v1850 = vld [vmem:[%s1831 + $0x6c] sm:$0xff]
    %v1851 = vld [vmem:[%s1831 + $0x74] sm:$0xf]
    %v1852 = vld [vmem:[%s1831 + $0x78] sm:$0xff]
    %v1853 = vld [vmem:[%s1831 + $0x80] sm:$0xf]
    %v1854 = vld [vmem:[%s1831 + $0x84] sm:$0xff]
    %v1855 = vld [vmem:[%s1831 + $0x8c] sm:$0xf]
    %v1856 = vld [vmem:[%s1831 + $0x90] sm:$0xff]
    %v1857 = vld [vmem:[%s1831 + $0x98] sm:$0xf]
    %v1858 = vld [vmem:[%s1831 + $0x9c] sm:$0xff]
    %v1859 = vld [vmem:[%s1831 + $0xa4] sm:$0xf]
    %v1860 = vld [vmem:[%s1831 + $0xa8] sm:$0xff]
    %v1861 = vld [vmem:[%s1831 + $0xb0] sm:$0xf]
    %v1862 = vld [vmem:[%s1831 + $0xb4] sm:$0xff]
    %v1863 = vld [vmem:[%s1831 + $0xbc] sm:$0xf]
    %s1864 = scalar_lea.vmem %s4, 1
    %v1865 = vld [vmem:[%s1864] sm:$0x1]
    %v1867 = vlaneseq
    %v1868 = vshrl.u32 %v1867, 7
    %v1869 = vsub.s32 0, %v1868
    %v1870 = vrot.slane %v1865, %v1869
    %v1872 = vld [vmem:[#allocation2] sm:$0xff]
    %v1873 = vld [vmem:[#allocation2 + $0x8] sm:$0xff]
    %v1874 = vld [vmem:[#allocation2 + $0x10] sm:$0xff]
    %v1907 = vunpack.c.l.b16 %v1832
    %v1908 = vunpack.c.h.b16 %v1832
    %v1909 = vunpack.c.l.b16 %v1833
    %v1910 = vunpack.c.l.b16 %v1834
    %v1911 = vunpack.c.h.b16 %v1834
    %v1912 = vunpack.c.l.b16 %v1835
    %v1913 = vunpack.c.l.b16 %v1836
    %v1914 = vunpack.c.h.b16 %v1836
    %v1915 = vunpack.c.l.b16 %v1837
    %v1916 = vunpack.c.l.b16 %v1838
    %v1917 = vunpack.c.h.b16 %v1838
    %v1918 = vunpack.c.l.b16 %v1839
    %v1919 = vunpack.c.l.b16 %v1840
    %v1920 = vunpack.c.h.b16 %v1840
    %v1921 = vunpack.c.l.b16 %v1841
    %v1922 = vunpack.c.l.b16 %v1842
    %v1923 = vunpack.c.h.b16 %v1842
    %v1924 = vunpack.c.l.b16 %v1843
    %v1925 = vunpack.c.l.b16 %v1844
    %v1926 = vunpack.c.h.b16 %v1844
    %v1927 = vunpack.c.l.b16 %v1845
    %v1928 = vunpack.c.l.b16 %v1846
    %v1929 = vunpack.c.h.b16 %v1846
    %v1930 = vunpack.c.l.b16 %v1847
    %v1931 = vunpack.c.l.b16 %v1848
    %v1932 = vunpack.c.h.b16 %v1848
    %v1933 = vunpack.c.l.b16 %v1849
    %v1934 = vunpack.c.l.b16 %v1850
    %v1935 = vunpack.c.h.b16 %v1850
    %v1936 = vunpack.c.l.b16 %v1851
    %v1937 = vunpack.c.l.b16 %v1852
    %v1938 = vunpack.c.h.b16 %v1852
    %v1939 = vunpack.c.l.b16 %v1853
    %v1940 = vunpack.c.l.b16 %v1854
    %v1941 = vunpack.c.h.b16 %v1854
    %v1942 = vunpack.c.l.b16 %v1855
    %v1943 = vunpack.c.l.b16 %v1856
    %v1944 = vunpack.c.h.b16 %v1856
    %v1945 = vunpack.c.l.b16 %v1857
    %v1946 = vunpack.c.l.b16 %v1858
    %v1947 = vunpack.c.h.b16 %v1858
    %v1948 = vunpack.c.l.b16 %v1859
    %v1949 = vunpack.c.l.b16 %v1860
    %v1950 = vunpack.c.h.b16 %v1860
    %v1951 = vunpack.c.l.b16 %v1861
    %v1952 = vunpack.c.l.b16 %v1862
    %v1953 = vunpack.c.h.b16 %v1862
    %v1954 = vunpack.c.l.b16 %v1863
    %v1955 = vpack.c.b16 %v1910, %v1907
    %v1956 = vpack.c.b16 %v1911, %v1908
    %v1957 = vpack.c.b16 %v1912, %v1909
    %v1958 = vpack.c.b16 %v1916, %v1913
    %v1959 = vpack.c.b16 %v1917, %v1914
    %v1960 = vpack.c.b16 %v1918, %v1915
    %v1961 = vpack.c.b16 %v1922, %v1919
    %v1962 = vpack.c.b16 %v1923, %v1920
    %v1963 = vpack.c.b16 %v1924, %v1921
    %v1964 = vpack.c.b16 %v1928, %v1925
    %v1965 = vpack.c.b16 %v1929, %v1926
    %v1966 = vpack.c.b16 %v1930, %v1927
    %v1967 = vpack.c.b16 %v1934, %v1931
    %v1968 = vpack.c.b16 %v1935, %v1932
    %v1969 = vpack.c.b16 %v1936, %v1933
    %v1970 = vpack.c.b16 %v1940, %v1937
    %v1971 = vpack.c.b16 %v1941, %v1938
    %v1972 = vpack.c.b16 %v1942, %v1939
    %v1973 = vpack.c.b16 %v1946, %v1943
    %v1974 = vpack.c.b16 %v1947, %v1944
    %v1975 = vpack.c.b16 %v1948, %v1945
    %v1976 = vpack.c.b16 %v1952, %v1949
    %v1977 = vpack.c.b16 %v1953, %v1950
    %v1978 = vpack.c.b16 %v1954, %v1951
    %2003 = vmatprep.subr.bf16.mxu0 %v1956
    %2004 = vmatpush1.bf16.msra.mxu0 %v1955
    %2005 = vmatprep.subr.bf16.mxu0 %v1959
    %2006 = vmatpush1.bf16.msra.mxu0 %v1958
    %2007 = vmatprep.subr.bf16.mxu0 %v1962
    %2008 = vmatpush1.bf16.msra.mxu0 %v1961
    %2009 = vmatprep.subr.bf16.mxu0 %v1965
    %2010 = vmatpush1.bf16.msra.mxu0 %v1964
    %2011 = vmatprep.subr.bf16.mxu0 %v1968
    %2012 = vmatpush1.bf16.msra.mxu0 %v1967
    %2013 = vmatprep.subr.bf16.mxu0 %v1971
    %2014 = vmatpush1.bf16.msra.mxu0 %v1970
    %2015 = vmatprep.subr.bf16.mxu0 %v1974
    %2016 = vmatpush1.bf16.msra.mxu0 %v1973
    %2017 = vmatprep.subr.bf16.mxu0 %v1977
    %2018 = vmatpush1.bf16.msra.mxu0 %v1976
    %2019 = vmatprep.subr.bf16.mxu0 0
    %2020 = vmatpush1.bf16.msra.mxu0 0
    %2021 = vmatprep.subr.bf16.mxu0 0
    %2022 = vmatpush1.bf16.msra.mxu0 0
    %2023 = vmatprep.subr.bf16.mxu0 0
    %2024 = vmatpush1.bf16.msra.mxu0 0
    %2025 = vmatprep.subr.bf16.mxu0 0
    %2026 = vmatpush1.bf16.msra.mxu0 0
    %2027 = vmatprep.subr.bf16.mxu0 0
    %2028 = vmatpush1.bf16.msra.mxu0 0
    %2029 = vmatprep.subr.bf16.mxu0 0
    %2030 = vmatpush1.bf16.msra.mxu0 0
    %2031 = vmatprep.subr.bf16.mxu0 0
    %2032 = vmatpush1.bf16.msra.mxu0 0
    %2033 = vmatprep.subr.bf16.mxu0 0
    %2034 = vmatpush1.bf16.msra.mxu0 0
    %2035 = vmatprep.mubr.bf16.mxu0 0
    %2036 = vmatmul.mubr.bf16.gmra.mrb[0].mxu0 0
    %v2037 = vpop.f32.mrb[0].mxu0
    %v2038 = vadd.f32 0.0, %v2037
    %v2039 = vpop.f32.mrb[0].mxu0
    %v2040 = vadd.f32 0.0, %v2039
    %v2041 = vpop.f32.mrb[0].mxu0
    %v2042 = vpop.f32.mrb[0].mxu0
    %2043 = vdwg.mxu0
    %2044 = vmatprep.subr.bf16.mxu0 0
    %2045 = vmatpush1.bf16.msra.mxu0 %v1957
    %2046 = vmatprep.subr.bf16.mxu0 0
    %2047 = vmatpush1.bf16.msra.mxu0 %v1960
    %2048 = vmatprep.subr.bf16.mxu0 0
    %2049 = vmatpush1.bf16.msra.mxu0 %v1963
    %2050 = vmatprep.subr.bf16.mxu0 0
    %2051 = vmatpush1.bf16.msra.mxu0 %v1966
    %2052 = vmatprep.subr.bf16.mxu0 0
    %2053 = vmatpush1.bf16.msra.mxu0 %v1969
    %2054 = vmatprep.subr.bf16.mxu0 0
    %2055 = vmatpush1.bf16.msra.mxu0 %v1972
    %2056 = vmatprep.subr.bf16.mxu0 0
    %2057 = vmatpush1.bf16.msra.mxu0 %v1975
    %2058 = vmatprep.subr.bf16.mxu0 0
    %2059 = vmatpush1.bf16.msra.mxu0 %v1978
    %2060 = vmatprep.subr.bf16.mxu0 0
    %2061 = vmatpush1.bf16.msra.mxu0 0
    %2062 = vmatprep.subr.bf16.mxu0 0
    %2063 = vmatpush1.bf16.msra.mxu0 0
    %2064 = vmatprep.subr.bf16.mxu0 0
    %2065 = vmatpush1.bf16.msra.mxu0 0
    %2066 = vmatprep.subr.bf16.mxu0 0
    %2067 = vmatpush1.bf16.msra.mxu0 0
    %2068 = vmatprep.subr.bf16.mxu0 0
    %2069 = vmatpush1.bf16.msra.mxu0 0
    %2070 = vmatprep.subr.bf16.mxu0 0
    %2071 = vmatpush1.bf16.msra.mxu0 0
    %2072 = vmatprep.subr.bf16.mxu0 0
    %2073 = vmatpush1.bf16.msra.mxu0 0
    %2074 = vmatprep.subr.bf16.mxu0 0
    %2075 = vmatpush1.bf16.msra.mxu0 0
    %2076 = vmatprep.mubr.bf16.mxu0 0
    %2077 = vmatmul.mubr.bf16.gmra.mrb[0].mxu0 0
    %v2078 = vpop.f32.mrb[0].mxu0
    %v2079 = vadd.f32 0.0, %v2078
    %v2080 = vpop.f32.mrb[0].mxu0
    %v2081 = vpop.f32.mrb[0].mxu0
    %v2082 = vpop.f32.mrb[0].mxu0
    %2083 = vdwg.mxu0
    %v2084 = vadd.f32 %v1872, %v2038
    %v2085 = vxor.u32 %v2084, 2147483648
    %v2086 = vmul.f32 %v2085, 1.442695
    %v2087 = vpow.pop %v2086
    %v2088 = vadd.f32 %v2087, 1.0
    %v2089 = vrcp.pop %v2088
    %v2090 = vmul.f32 1.0, %v2089
    %v2091 = vadd.f32 %v1873, %v2040
    %v2092 = vxor.u32 %v2091, 2147483648
    %v2093 = vmul.f32 %v2092, 1.442695
    %v2094 = vpow.pop %v2093
    %v2095 = vadd.f32 %v2094, 1.0
    %v2096 = vrcp.pop %v2095
    %v2097 = vmul.f32 1.0, %v2096
    %v2098 = vadd.f32 %v2079, %v1870
    %v2099 = vmul.f32 %v2090, %v2098
    %v2100 = vadd.f32 %v1874, %v2099
    %v2101 = vtanh.pop %v2100
    %v2102 = vsub.f32 1.0, %v2097
    %v2103 = vmul.f32 %v2102, %v2101
    %v2104 = vmul.f32 %v2097, 0.0
    %v2105 = vadd.f32 %v2103, %v2104
    %v2106 = vld [vmem:[%s708] sm:$0xff]
    %v2107 = vld [vmem:[%s708 + $0x8] sm:$0xff]
    %v2108 = vld [vmem:[%s708 + $0x10] sm:$0xff]
    %v2109 = vpack.c.bf16 %v2105, %v2105
    %2110 = vmatprep.subr.bf16.mxu0 %v1956
    %2111 = vmatpush1.bf16.msra.mxu0 %v1955
    %2112 = vmatprep.subr.bf16.mxu0 %v1959
    %2113 = vmatpush1.bf16.msra.mxu0 %v1958
    %2114 = vmatprep.subr.bf16.mxu0 %v1962
    %2115 = vmatpush1.bf16.msra.mxu0 %v1961
    %2116 = vmatprep.subr.bf16.mxu0 %v1965
    %2117 = vmatpush1.bf16.msra.mxu0 %v1964
    %2118 = vmatprep.subr.bf16.mxu0 %v1968
    %2119 = vmatpush1.bf16.msra.mxu0 %v1967
    %2120 = vmatprep.subr.bf16.mxu0 %v1971
    %2121 = vmatpush1.bf16.msra.mxu0 %v1970
    %2122 = vmatprep.subr.bf16.mxu0 %v1974
    %2123 = vmatpush1.bf16.msra.mxu0 %v1973
    %2124 = vmatprep.subr.bf16.mxu0 %v1977
    %2125 = vmatpush1.bf16.msra.mxu0 %v1976
    %2126 = vmatprep.subr.bf16.mxu0 0
    %2127 = vmatpush1.bf16.msra.mxu0 0
    %2128 = vmatprep.subr.bf16.mxu0 0
    %2129 = vmatpush1.bf16.msra.mxu0 0
    %2130 = vmatprep.subr.bf16.mxu0 0
    %2131 = vmatpush1.bf16.msra.mxu0 0
    %2132 = vmatprep.subr.bf16.mxu0 0
    %2133 = vmatpush1.bf16.msra.mxu0 0
    %2134 = vmatprep.subr.bf16.mxu0 0
    %2135 = vmatpush1.bf16.msra.mxu0 0
    %2136 = vmatprep.subr.bf16.mxu0 0
    %2137 = vmatpush1.bf16.msra.mxu0 0
    %2138 = vmatprep.subr.bf16.mxu0 0
    %2139 = vmatpush1.bf16.msra.mxu0 0
    %2140 = vmatprep.subr.bf16.mxu0 0
    %2141 = vmatpush1.bf16.msra.mxu0 0
    %2142 = vmatprep.mubr.bf16.mxu0 0
    %2143 = vmatmul.mubr.bf16.gmra.mrb[0].mxu0 %v2109
    %v2144 = vpop.f32.mrb[0].mxu0
    %v2145 = vadd.f32 0.0, %v2144
    %v2146 = vpop.f32.mrb[0].mxu0
    %v2147 = vadd.f32 0.0, %v2146
    %v2148 = vpop.f32.mrb[0].mxu0
    %v2149 = vpop.f32.mrb[0].mxu0
    %2150 = vdwg.mxu0
    %2151 = vmatprep.subr.bf16.mxu0 0
    %2152 = vmatpush1.bf16.msra.mxu0 %v1957
    %2153 = vmatprep.subr.bf16.mxu0 0
    %2154 = vmatpush1.bf16.msra.mxu0 %v1960
    %2155 = vmatprep.subr.bf16.mxu0 0
    %2156 = vmatpush1.bf16.msra.mxu0 %v1963
    %2157 = vmatprep.subr.bf16.mxu0 0
    %2158 = vmatpush1.bf16.msra.mxu0 %v1966
    %2159 = vmatprep.subr.bf16.mxu0 0
    %2160 = vmatpush1.bf16.msra.mxu0 %v1969
    %2161 = vmatprep.subr.bf16.mxu0 0
    %2162 = vmatpush1.bf16.msra.mxu0 %v1972
    %2163 = vmatprep.subr.bf16.mxu0 0
    %2164 = vmatpush1.bf16.msra.mxu0 %v1975
    %2165 = vmatprep.subr.bf16.mxu0 0
    %2166 = vmatpush1.bf16.msra.mxu0 %v1978
    %2167 = vmatprep.subr.bf16.mxu0 0
    %2168 = vmatpush1.bf16.msra.mxu0 0
    %2169 = vmatprep.subr.bf16.mxu0 0
    %2170 = vmatpush1.bf16.msra.mxu0 0
    %2171 = vmatprep.subr.bf16.mxu0 0
    %2172 = vmatpush1.bf16.msra.mxu0 0
    %2173 = vmatprep.subr.bf16.mxu0 0
    %2174 = vmatpush1.bf16.msra.mxu0 0
    %2175 = vmatprep.subr.bf16.mxu0 0
    %2176 = vmatpush1.bf16.msra.mxu0 0
    %2177 = vmatprep.subr.bf16.mxu0 0
    %2178 = vmatpush1.bf16.msra.mxu0 0
    %2179 = vmatprep.subr.bf16.mxu0 0
    %2180 = vmatpush1.bf16.msra.mxu0 0
    %2181 = vmatprep.subr.bf16.mxu0 0
    %2182 = vmatpush1.bf16.msra.mxu0 0
    %2183 = vmatprep.mubr.bf16.mxu0 0
    %2184 = vmatmul.mubr.bf16.gmra.mrb[0].mxu0 %v2109
    %v2185 = vpop.f32.mrb[0].mxu0
    %v2186 = vadd.f32 0.0, %v2185
    %v2187 = vpop.f32.mrb[0].mxu0
    %v2188 = vpop.f32.mrb[0].mxu0
    %v2189 = vpop.f32.mrb[0].mxu0
    %2190 = vdwg.mxu0
    %v2191 = vadd.f32 %v2106, %v2145
    %v2192 = vxor.u32 %v2191, 2147483648
    %v2193 = vmul.f32 %v2192, 1.442695
    %v2194 = vpow.pop %v2193
    %v2195 = vadd.f32 %v2194, 1.0
    %v2196 = vrcp.pop %v2195
    %v2197 = vmul.f32 1.0, %v2196
    %v2198 = vadd.f32 %v2107, %v2147
    %v2199 = vxor.u32 %v2198, 2147483648
    %v2200 = vmul.f32 %v2199, 1.442695
    %v2201 = vpow.pop %v2200
    %v2202 = vadd.f32 %v2201, 1.0
    %v2203 = vrcp.pop %v2202
    %v2204 = vmul.f32 1.0, %v2203
    %v2205 = vadd.f32 %v2186, %v1870
    %v2206 = vmul.f32 %v2197, %v2205
    %v2207 = vadd.f32 %v2108, %v2206
    %v2208 = vtanh.pop %v2207
    %v2209 = vsub.f32 1.0, %v2204
    %v2210 = vmul.f32 %v2209, %v2208
    %v2211 = vmul.f32 %v2204, %v2105
    %v2212 = vadd.f32 %v2210, %v2211
    %v2213 = vld [vmem:[%s818] sm:$0xff]
    %v2214 = vld [vmem:[%s818 + $0x8] sm:$0xff]
    %v2215 = vld [vmem:[%s818 + $0x10] sm:$0xff]
    %v2216 = vpack.c.bf16 %v2212, %v2212
    %2217 = vmatprep.subr.bf16.mxu0 %v1956
    %2218 = vmatpush1.bf16.msra.mxu0 %v1955
    %2219 = vmatprep.subr.bf16.mxu0 %v1959
    %2220 = vmatpush1.bf16.msra.mxu0 %v1958
    %2221 = vmatprep.subr.bf16.mxu0 %v1962
    %2222 = vmatpush1.bf16.msra.mxu0 %v1961
    %2223 = vmatprep.subr.bf16.mxu0 %v1965
    %2224 = vmatpush1.bf16.msra.mxu0 %v1964
    %2225 = vmatprep.subr.bf16.mxu0 %v1968
    %2226 = vmatpush1.bf16.msra.mxu0 %v1967
    %2227 = vmatprep.subr.bf16.mxu0 %v1971
    %2228 = vmatpush1.bf16.msra.mxu0 %v1970
    %2229 = vmatprep.subr.bf16.mxu0 %v1974
    %2230 = vmatpush1.bf16.msra.mxu0 %v1973
    %2231 = vmatprep.subr.bf16.mxu0 %v1977
    %2232 = vmatpush1.bf16.msra.mxu0 %v1976
    %2233 = vmatprep.subr.bf16.mxu0 0
    %2234 = vmatpush1.bf16.msra.mxu0 0
    %2235 = vmatprep.subr.bf16.mxu0 0
    %2236 = vmatpush1.bf16.msra.mxu0 0
    %2237 = vmatprep.subr.bf16.mxu0 0
    %2238 = vmatpush1.bf16.msra.mxu0 0
    %2239 = vmatprep.subr.bf16.mxu0 0
    %2240 = vmatpush1.bf16.msra.mxu0 0
    %2241 = vmatprep.subr.bf16.mxu0 0
    %2242 = vmatpush1.bf16.msra.mxu0 0
    %2243 = vmatprep.subr.bf16.mxu0 0
    %2244 = vmatpush1.bf16.msra.mxu0 0
    %2245 = vmatprep.subr.bf16.mxu0 0
    %2246 = vmatpush1.bf16.msra.mxu0 0
    %2247 = vmatprep.subr.bf16.mxu0 0
    %2248 = vmatpush1.bf16.msra.mxu0 0
    %2249 = vmatprep.mubr.bf16.mxu0 0
    %2250 = vmatmul.mubr.bf16.gmra.mrb[0].mxu0 %v2216
    %v2251 = vpop.f32.mrb[0].mxu0
    %v2252 = vadd.f32 0.0, %v2251
    %v2253 = vpop.f32.mrb[0].mxu0
    %v2254 = vadd.f32 0.0, %v2253
    %v2255 = vpop.f32.mrb[0].mxu0
    %v2256 = vpop.f32.mrb[0].mxu0
    %2257 = vdwg.mxu0
    %2258 = vmatprep.subr.bf16.mxu0 0
    %2259 = vmatpush1.bf16.msra.mxu0 %v1957
    %2260 = vmatprep.subr.bf16.mxu0 0
    %2261 = vmatpush1.bf16.msra.mxu0 %v1960
    %2262 = vmatprep.subr.bf16.mxu0 0
    %2263 = vmatpush1.bf16.msra.mxu0 %v1963
    %2264 = vmatprep.subr.bf16.mxu0 0
    %2265 = vmatpush1.bf16.msra.mxu0 %v1966
    %2266 = vmatprep.subr.bf16.mxu0 0
    %2267 = vmatpush1.bf16.msra.mxu0 %v1969
    %2268 = vmatprep.subr.bf16.mxu0 0
    %2269 = vmatpush1.bf16.msra.mxu0 %v1972
    %2270 = vmatprep.subr.bf16.mxu0 0
    %2271 = vmatpush1.bf16.msra.mxu0 %v1975
    %2272 = vmatprep.subr.bf16.mxu0 0
    %2273 = vmatpush1.bf16.msra.mxu0 %v1978
    %2274 = vmatprep.subr.bf16.mxu0 0
    %2275 = vmatpush1.bf16.msra.mxu0 0
    %2276 = vmatprep.subr.bf16.mxu0 0
    %2277 = vmatpush1.bf16.msra.mxu0 0
    %2278 = vmatprep.subr.bf16.mxu0 0
    %2279 = vmatpush1.bf16.msra.mxu0 0
    %2280 = vmatprep.subr.bf16.mxu0 0
    %2281 = vmatpush1.bf16.msra.mxu0 0
    %2282 = vmatprep.subr.bf16.mxu0 0
    %2283 = vmatpush1.bf16.msra.mxu0 0
    %2284 = vmatprep.subr.bf16.mxu0 0
    %2285 = vmatpush1.bf16.msra.mxu0 0
    %2286 = vmatprep.subr.bf16.mxu0 0
    %2287 = vmatpush1.bf16.msra.mxu0 0
    %2288 = vmatprep.subr.bf16.mxu0 0
    %2289 = vmatpush1.bf16.msra.mxu0 0
    %2290 = vmatprep.mubr.bf16.mxu0 0
    %2291 = vmatmul.mubr.bf16.gmra.mrb[0].mxu0 %v2216
    %v2292 = vpop.f32.mrb[0].mxu0
    %v2293 = vadd.f32 0.0, %v2292
    %v2294 = vpop.f32.mrb[0].mxu0
    %v2295 = vpop.f32.mrb[0].mxu0
    %v2296 = vpop.f32.mrb[0].mxu0
    %2297 = vdwg.mxu0
    %v2298 = vadd.f32 %v2213, %v2252
    %v2299 = vxor.u32 %v2298, 2147483648
    %v2300 = vmul.f32 %v2299, 1.442695
    %v2301 = vpow.pop %v2300
    %v2302 = vadd.f32 %v2301, 1.0
    %v2303 = vrcp.pop %v2302
    %v2304 = vmul.f32 1.0, %v2303
    %v2305 = vadd.f32 %v2214, %v2254
    %v2306 = vxor.u32 %v2305, 2147483648
    %v2307 = vmul.f32 %v2306, 1.442695
    %v2308 = vpow.pop %v2307
    %v2309 = vadd.f32 %v2308, 1.0
    %v2310 = vrcp.pop %v2309
    %v2311 = vmul.f32 1.0, %v2310
    %v2312 = vadd.f32 %v2293, %v1870
    %v2313 = vmul.f32 %v2304, %v2312
    %v2314 = vadd.f32 %v2215, %v2313
    %v2315 = vtanh.pop %v2314
    %v2316 = vsub.f32 1.0, %v2311
    %v2317 = vmul.f32 %v2316, %v2315
    %v2318 = vmul.f32 %v2311, %v2212
    %v2319 = vadd.f32 %v2317, %v2318
    %v2320 = vld [vmem:[%s928] sm:$0xff]
    %v2321 = vld [vmem:[%s928 + $0x8] sm:$0xff]
    %v2322 = vld [vmem:[%s928 + $0x10] sm:$0xff]
    %v2323 = vpack.c.bf16 %v2319, %v2319
    %2324 = vmatprep.subr.bf16.mxu0 %v1956
    %2325 = vmatpush1.bf16.msra.mxu0 %v1955
    %2326 = vmatprep.subr.bf16.mxu0 %v1959
    %2327 = vmatpush1.bf16.msra.mxu0 %v1958
    %2328 = vmatprep.subr.bf16.mxu0 %v1962
    %2329 = vmatpush1.bf16.msra.mxu0 %v1961
    %2330 = vmatprep.subr.bf16.mxu0 %v1965
    %2331 = vmatpush1.bf16.msra.mxu0 %v1964
    %2332 = vmatprep.subr.bf16.mxu0 %v1968
    %2333 = vmatpush1.bf16.msra.mxu0 %v1967
    %2334 = vmatprep.subr.bf16.mxu0 %v1971
    %2335 = vmatpush1.bf16.msra.mxu0 %v1970
    %2336 = vmatprep.subr.bf16.mxu0 %v1974
    %2337 = vmatpush1.bf16.msra.mxu0 %v1973
    %2338 = vmatprep.subr.bf16.mxu0 %v1977
    %2339 = vmatpush1.bf16.msra.mxu0 %v1976
    %2340 = vmatprep.subr.bf16.mxu0 0
    %2341 = vmatpush1.bf16.msra.mxu0 0
    %2342 = vmatprep.subr.bf16.mxu0 0
    %2343 = vmatpush1.bf16.msra.mxu0 0
    %2344 = vmatprep.subr.bf16.mxu0 0
    %2345 = vmatpush1.bf16.msra.mxu0 0
    %2346 = vmatprep.subr.bf16.mxu0 0
    %2347 = vmatpush1.bf16.msra.mxu0 0
    %2348 = vmatprep.subr.bf16.mxu0 0
    %2349 = vmatpush1.bf16.msra.mxu0 0
    %2350 = vmatprep.subr.bf16.mxu0 0
    %2351 = vmatpush1.bf16.msra.mxu0 0
    %2352 = vmatprep.subr.bf16.mxu0 0
    %2353 = vmatpush1.bf16.msra.mxu0 0
    %2354 = vmatprep.subr.bf16.mxu0 0
    %2355 = vmatpush1.bf16.msra.mxu0 0
    %2356 = vmatprep.mubr.bf16.mxu0 0
    %2357 = vmatmul.mubr.bf16.gmra.mrb[0].mxu0 %v2323
    %v2358 = vpop.f32.mrb[0].mxu0
    %v2359 = vadd.f32 0.0, %v2358
    %v2360 = vpop.f32.mrb[0].mxu0
    %v2361 = vadd.f32 0.0, %v2360
    %v2362 = vpop.f32.mrb[0].mxu0
    %v2363 = vpop.f32.mrb[0].mxu0
    %2364 = vdwg.mxu0
    %2365 = vmatprep.subr.bf16.mxu0 0
    %2366 = vmatpush1.bf16.msra.mxu0 %v1957
    %2367 = vmatprep.subr.bf16.mxu0 0
    %2368 = vmatpush1.bf16.msra.mxu0 %v1960
    %2369 = vmatprep.subr.bf16.mxu0 0
    %2370 = vmatpush1.bf16.msra.mxu0 %v1963
    %2371 = vmatprep.subr.bf16.mxu0 0
    %2372 = vmatpush1.bf16.msra.mxu0 %v1966
    %2373 = vmatprep.subr.bf16.mxu0 0
    %2374 = vmatpush1.bf16.msra.mxu0 %v1969
    %2375 = vmatprep.subr.bf16.mxu0 0
    %2376 = vmatpush1.bf16.msra.mxu0 %v1972
    %2377 = vmatprep.subr.bf16.mxu0 0
    %2378 = vmatpush1.bf16.msra.mxu0 %v1975
    %2379 = vmatprep.subr.bf16.mxu0 0
    %2380 = vmatpush1.bf16.msra.mxu0 %v1978
    %2381 = vmatprep.subr.bf16.mxu0 0
    %2382 = vmatpush1.bf16.msra.mxu0 0
    %2383 = vmatprep.subr.bf16.mxu0 0
    %2384 = vmatpush1.bf16.msra.mxu0 0
    %2385 = vmatprep.subr.bf16.mxu0 0
    %2386 = vmatpush1.bf16.msra.mxu0 0
    %2387 = vmatprep.subr.bf16.mxu0 0
    %2388 = vmatpush1.bf16.msra.mxu0 0
    %2389 = vmatprep.subr.bf16.mxu0 0
    %2390 = vmatpush1.bf16.msra.mxu0 0
    %2391 = vmatprep.subr.bf16.mxu0 0
    %2392 = vmatpush1.bf16.msra.mxu0 0
    %2393 = vmatprep.subr.bf16.mxu0 0
    %2394 = vmatpush1.bf16.msra.mxu0 0
    %2395 = vmatprep.subr.bf16.mxu0 0
    %2396 = vmatpush1.bf16.msra.mxu0 0
    %2397 = vmatprep.mubr.bf16.mxu0 0
    %2398 = vmatmul.mubr.bf16.gmra.mrb[0].mxu0 %v2323
    %v2399 = vpop.f32.mrb[0].mxu0
    %v2400 = vadd.f32 0.0, %v2399
    %v2401 = vpop.f32.mrb[0].mxu0
    %v2402 = vpop.f32.mrb[0].mxu0
    %v2403 = vpop.f32.mrb[0].mxu0
    %2404 = vdwg.mxu0
    %v2405 = vadd.f32 %v2320, %v2359
    %v2406 = vxor.u32 %v2405, 2147483648
    %v2407 = vmul.f32 %v2406, 1.442695
    %v2408 = vpow.pop %v2407
    %v2409 = vadd.f32 %v2408, 1.0
    %v2410 = vrcp.pop %v2409
    %v2411 = vmul.f32 1.0, %v2410
    %v2412 = vadd.f32 %v2321, %v2361
    %v2413 = vxor.u32 %v2412, 2147483648
    %v2414 = vmul.f32 %v2413, 1.442695
    %v2415 = vpow.pop %v2414
    %v2416 = vadd.f32 %v2415, 1.0
    %v2417 = vrcp.pop %v2416
    %v2418 = vmul.f32 1.0, %v2417
    %v2419 = vadd.f32 %v2400, %v1870
    %v2420 = vmul.f32 %v2411, %v2419
    %v2421 = vadd.f32 %v2322, %v2420
    %v2422 = vtanh.pop %v2421
    %v2423 = vsub.f32 1.0, %v2418
    %v2424 = vmul.f32 %v2423, %v2422
    %v2425 = vmul.f32 %v2418, %v2319
    %v2426 = vadd.f32 %v2424, %v2425
    %v2427 = vld [vmem:[%s1038] sm:$0xff]
    %v2428 = vld [vmem:[%s1038 + $0x8] sm:$0xff]
    %v2429 = vld [vmem:[%s1038 + $0x10] sm:$0xff]
    %v2430 = vpack.c.bf16 %v2426, %v2426
    %2431 = vmatprep.subr.bf16.mxu0 %v1956
    %2432 = vmatpush1.bf16.msra.mxu0 %v1955
    %2433 = vmatprep.subr.bf16.mxu0 %v1959
    %2434 = vmatpush1.bf16.msra.mxu0 %v1958
    %2435 = vmatprep.subr.bf16.mxu0 %v1962
    %2436 = vmatpush1.bf16.msra.mxu0 %v1961
    %2437 = vmatprep.subr.bf16.mxu0 %v1965
    %2438 = vmatpush1.bf16.msra.mxu0 %v1964
    %2439 = vmatprep.subr.bf16.mxu0 %v1968
    %2440 = vmatpush1.bf16.msra.mxu0 %v1967
    %2441 = vmatprep.subr.bf16.mxu0 %v1971
    %2442 = vmatpush1.bf16.msra.mxu0 %v1970
    %2443 = vmatprep.subr.bf16.mxu0 %v1974
    %2444 = vmatpush1.bf16.msra.mxu0 %v1973
    %2445 = vmatprep.subr.bf16.mxu0 %v1977
    %2446 = vmatpush1.bf16.msra.mxu0 %v1976
    %2447 = vmatprep.subr.bf16.mxu0 0
    %2448 = vmatpush1.bf16.msra.mxu0 0
    %2449 = vmatprep.subr.bf16.mxu0 0
    %2450 = vmatpush1.bf16.msra.mxu0 0
    %2451 = vmatprep.subr.bf16.mxu0 0
    %2452 = vmatpush1.bf16.msra.mxu0 0
    %2453 = vmatprep.subr.bf16.mxu0 0
    %2454 = vmatpush1.bf16.msra.mxu0 0
    %2455 = vmatprep.subr.bf16.mxu0 0
    %2456 = vmatpush1.bf16.msra.mxu0 0
    %2457 = vmatprep.subr.bf16.mxu0 0
    %2458 = vmatpush1.bf16.msra.mxu0 0
    %2459 = vmatprep.subr.bf16.mxu0 0
    %2460 = vmatpush1.bf16.msra.mxu0 0
    %2461 = vmatprep.subr.bf16.mxu0 0
    %2462 = vmatpush1.bf16.msra.mxu0 0
    %2463 = vmatprep.mubr.bf16.mxu0 0
    %2464 = vmatmul.mubr.bf16.gmra.mrb[0].mxu0 %v2430
    %v2465 = vpop.f32.mrb[0].mxu0
    %v2466 = vadd.f32 0.0, %v2465
    %v2467 = vpop.f32.mrb[0].mxu0
    %v2468 = vadd.f32 0.0, %v2467
    %v2469 = vpop.f32.mrb[0].mxu0
    %v2470 = vpop.f32.mrb[0].mxu0
    %2471 = vdwg.mxu0
    %2472 = vmatprep.subr.bf16.mxu0 0
    %2473 = vmatpush1.bf16.msra.mxu0 %v1957
    %2474 = vmatprep.subr.bf16.mxu0 0
    %2475 = vmatpush1.bf16.msra.mxu0 %v1960
    %2476 = vmatprep.subr.bf16.mxu0 0
    %2477 = vmatpush1.bf16.msra.mxu0 %v1963
    %2478 = vmatprep.subr.bf16.mxu0 0
    %2479 = vmatpush1.bf16.msra.mxu0 %v1966
    %2480 = vmatprep.subr.bf16.mxu0 0
    %2481 = vmatpush1.bf16.msra.mxu0 %v1969
    %2482 = vmatprep.subr.bf16.mxu0 0
    %2483 = vmatpush1.bf16.msra.mxu0 %v1972
    %2484 = vmatprep.subr.bf16.mxu0 0
    %2485 = vmatpush1.bf16.msra.mxu0 %v1975
    %2486 = vmatprep.subr.bf16.mxu0 0
    %2487 = vmatpush1.bf16.msra.mxu0 %v1978
    %2488 = vmatprep.subr.bf16.mxu0 0
    %2489 = vmatpush1.bf16.msra.mxu0 0
    %2490 = vmatprep.subr.bf16.mxu0 0
    %2491 = vmatpush1.bf16.msra.mxu0 0
    %2492 = vmatprep.subr.bf16.mxu0 0
    %2493 = vmatpush1.bf16.msra.mxu0 0
    %2494 = vmatprep.subr.bf16.mxu0 0
    %2495 = vmatpush1.bf16.msra.mxu0 0
    %2496 = vmatprep.subr.bf16.mxu0 0
    %2497 = vmatpush1.bf16.msra.mxu0 0
    %2498 = vmatprep.subr.bf16.mxu0 0
    %2499 = vmatpush1.bf16.msra.mxu0 0
    %2500 = vmatprep.subr.bf16.mxu0 0
    %2501 = vmatpush1.bf16.msra.mxu0 0
    %2502 = vmatprep.subr.bf16.mxu0 0
    %2503 = vmatpush1.bf16.msra.mxu0 0
    %2504 = vmatprep.mubr.bf16.mxu0 0
    %2505 = vmatmul.mubr.bf16.gmra.mrb[0].mxu0 %v2430
    %v2506 = vpop.f32.mrb[0].mxu0
    %v2507 = vadd.f32 0.0, %v2506
    %v2508 = vpop.f32.mrb[0].mxu0
    %v2509 = vpop.f32.mrb[0].mxu0
    %v2510 = vpop.f32.mrb[0].mxu0
    %2511 = vdwg.mxu0
    %v2512 = vadd.f32 %v2427, %v2466
    %v2513 = vxor.u32 %v2512, 2147483648
    %v2514 = vmul.f32 %v2513, 1.442695
    %v2515 = vpow.pop %v2514
    %v2516 = vadd.f32 %v2515, 1.0
    %v2517 = vrcp.pop %v2516
    %v2518 = vmul.f32 1.0, %v2517
    %v2519 = vadd.f32 %v2428, %v2468
    %v2520 = vxor.u32 %v2519, 2147483648
    %v2521 = vmul.f32 %v2520, 1.442695
    %v2522 = vpow.pop %v2521
    %v2523 = vadd.f32 %v2522, 1.0
    %v2524 = vrcp.pop %v2523
    %v2525 = vmul.f32 1.0, %v2524
    %v2526 = vadd.f32 %v2507, %v1870
    %v2527 = vmul.f32 %v2518, %v2526
    %v2528 = vadd.f32 %v2429, %v2527
    %v2529 = vtanh.pop %v2528
    %v2530 = vsub.f32 1.0, %v2525
    %v2531 = vmul.f32 %v2530, %v2529
    %v2532 = vmul.f32 %v2525, %v2426
    %v2533 = vadd.f32 %v2531, %v2532
    %v2534 = vld [vmem:[%s1148] sm:$0xff]
    %v2535 = vld [vmem:[%s1148 + $0x8] sm:$0xff]
    %v2536 = vld [vmem:[%s1148 + $0x10] sm:$0xff]
    %v2537 = vpack.c.bf16 %v2533, %v2533
    %2538 = vmatprep.subr.bf16.mxu0 %v1956
    %2539 = vmatpush1.bf16.msra.mxu0 %v1955
    %2540 = vmatprep.subr.bf16.mxu0 %v1959
    %2541 = vmatpush1.bf16.msra.mxu0 %v1958
    %2542 = vmatprep.subr.bf16.mxu0 %v1962
    %2543 = vmatpush1.bf16.msra.mxu0 %v1961
    %2544 = vmatprep.subr.bf16.mxu0 %v1965
    %2545 = vmatpush1.bf16.msra.mxu0 %v1964
    %2546 = vmatprep.subr.bf16.mxu0 %v1968
    %2547 = vmatpush1.bf16.msra.mxu0 %v1967
    %2548 = vmatprep.subr.bf16.mxu0 %v1971
    %2549 = vmatpush1.bf16.msra.mxu0 %v1970
    %2550 = vmatprep.subr.bf16.mxu0 %v1974
    %2551 = vmatpush1.bf16.msra.mxu0 %v1973
    %2552 = vmatprep.subr.bf16.mxu0 %v1977
    %2553 = vmatpush1.bf16.msra.mxu0 %v1976
    %2554 = vmatprep.subr.bf16.mxu0 0
    %2555 = vmatpush1.bf16.msra.mxu0 0
    %2556 = vmatprep.subr.bf16.mxu0 0
    %2557 = vmatpush1.bf16.msra.mxu0 0
    %2558 = vmatprep.subr.bf16.mxu0 0
    %2559 = vmatpush1.bf16.msra.mxu0 0
    %2560 = vmatprep.subr.bf16.mxu0 0
    %2561 = vmatpush1.bf16.msra.mxu0 0
    %2562 = vmatprep.subr.bf16.mxu0 0
    %2563 = vmatpush1.bf16.msra.mxu0 0
    %2564 = vmatprep.subr.bf16.mxu0 0
    %2565 = vmatpush1.bf16.msra.mxu0 0
    %2566 = vmatprep.subr.bf16.mxu0 0
    %2567 = vmatpush1.bf16.msra.mxu0 0
    %2568 = vmatprep.subr.bf16.mxu0 0
    %2569 = vmatpush1.bf16.msra.mxu0 0
    %2570 = vmatprep.mubr.bf16.mxu0 0
    %2571 = vmatmul.mubr.bf16.gmra.mrb[0].mxu0 %v2537
    %v2572 = vpop.f32.mrb[0].mxu0
    %v2573 = vadd.f32 0.0, %v2572
    %v2574 = vpop.f32.mrb[0].mxu0
    %v2575 = vadd.f32 0.0, %v2574
    %v2576 = vpop.f32.mrb[0].mxu0
    %v2577 = vpop.f32.mrb[0].mxu0
    %2578 = vdwg.mxu0
    %2579 = vmatprep.subr.bf16.mxu0 0
    %2580 = vmatpush1.bf16.msra.mxu0 %v1957
    %2581 = vmatprep.subr.bf16.mxu0 0
    %2582 = vmatpush1.bf16.msra.mxu0 %v1960
    %2583 = vmatprep.subr.bf16.mxu0 0
    %2584 = vmatpush1.bf16.msra.mxu0 %v1963
    %2585 = vmatprep.subr.bf16.mxu0 0
    %2586 = vmatpush1.bf16.msra.mxu0 %v1966
    %2587 = vmatprep.subr.bf16.mxu0 0
    %2588 = vmatpush1.bf16.msra.mxu0 %v1969
    %2589 = vmatprep.subr.bf16.mxu0 0
    %2590 = vmatpush1.bf16.msra.mxu0 %v1972
    %2591 = vmatprep.subr.bf16.mxu0 0
    %2592 = vmatpush1.bf16.msra.mxu0 %v1975
    %2593 = vmatprep.subr.bf16.mxu0 0
    %2594 = vmatpush1.bf16.msra.mxu0 %v1978
    %2595 = vmatprep.subr.bf16.mxu0 0
    %2596 = vmatpush1.bf16.msra.mxu0 0
    %2597 = vmatprep.subr.bf16.mxu0 0
    %2598 = vmatpush1.bf16.msra.mxu0 0
    %2599 = vmatprep.subr.bf16.mxu0 0
    %2600 = vmatpush1.bf16.msra.mxu0 0
    %2601 = vmatprep.subr.bf16.mxu0 0
    %2602 = vmatpush1.bf16.msra.mxu0 0
    %2603 = vmatprep.subr.bf16.mxu0 0
    %2604 = vmatpush1.bf16.msra.mxu0 0
    %2605 = vmatprep.subr.bf16.mxu0 0
    %2606 = vmatpush1.bf16.msra.mxu0 0
    %2607 = vmatprep.subr.bf16.mxu0 0
    %2608 = vmatpush1.bf16.msra.mxu0 0
    %2609 = vmatprep.subr.bf16.mxu0 0
    %2610 = vmatpush1.bf16.msra.mxu0 0
    %2611 = vmatprep.mubr.bf16.mxu0 0
    %2612 = vmatmul.mubr.bf16.gmra.mrb[0].mxu0 %v2537
    %v2613 = vpop.f32.mrb[0].mxu0
    %v2614 = vadd.f32 0.0, %v2613
    %v2615 = vpop.f32.mrb[0].mxu0
    %v2616 = vpop.f32.mrb[0].mxu0
    %v2617 = vpop.f32.mrb[0].mxu0
    %2618 = vdwg.mxu0
    %v2619 = vadd.f32 %v2534, %v2573
    %v2620 = vxor.u32 %v2619, 2147483648
    %v2621 = vmul.f32 %v2620, 1.442695
    %v2622 = vpow.pop %v2621
    %v2623 = vadd.f32 %v2622, 1.0
    %v2624 = vrcp.pop %v2623
    %v2625 = vmul.f32 1.0, %v2624
    %v2626 = vadd.f32 %v2535, %v2575
    %v2627 = vxor.u32 %v2626, 2147483648
    %v2628 = vmul.f32 %v2627, 1.442695
    %v2629 = vpow.pop %v2628
    %v2630 = vadd.f32 %v2629, 1.0
    %v2631 = vrcp.pop %v2630
    %v2632 = vmul.f32 1.0, %v2631
    %v2633 = vadd.f32 %v2614, %v1870
    %v2634 = vmul.f32 %v2625, %v2633
    %v2635 = vadd.f32 %v2536, %v2634
    %v2636 = vtanh.pop %v2635
    %v2637 = vsub.f32 1.0, %v2632
    %v2638 = vmul.f32 %v2637, %v2636
    %v2639 = vmul.f32 %v2632, %v2533
    %v2640 = vadd.f32 %v2638, %v2639
    %v2641 = vld [vmem:[%s1258] sm:$0xff]
    %v2642 = vld [vmem:[%s1258 + $0x8] sm:$0xff]
    %v2643 = vld [vmem:[%s1258 + $0x10] sm:$0xff]
    %v2644 = vpack.c.bf16 %v2640, %v2640
    %2645 = vmatprep.subr.bf16.mxu0 %v1956
    %2646 = vmatpush1.bf16.msra.mxu0 %v1955
    %2647 = vmatprep.subr.bf16.mxu0 %v1959
    %2648 = vmatpush1.bf16.msra.mxu0 %v1958
    %2649 = vmatprep.subr.bf16.mxu0 %v1962
    %2650 = vmatpush1.bf16.msra.mxu0 %v1961
    %2651 = vmatprep.subr.bf16.mxu0 %v1965
    %2652 = vmatpush1.bf16.msra.mxu0 %v1964
    %2653 = vmatprep.subr.bf16.mxu0 %v1968
    %2654 = vmatpush1.bf16.msra.mxu0 %v1967
    %2655 = vmatprep.subr.bf16.mxu0 %v1971
    %2656 = vmatpush1.bf16.msra.mxu0 %v1970
    %2657 = vmatprep.subr.bf16.mxu0 %v1974
    %2658 = vmatpush1.bf16.msra.mxu0 %v1973
    %2659 = vmatprep.subr.bf16.mxu0 %v1977
    %2660 = vmatpush1.bf16.msra.mxu0 %v1976
    %2661 = vmatprep.subr.bf16.mxu0 0
    %2662 = vmatpush1.bf16.msra.mxu0 0
    %2663 = vmatprep.subr.bf16.mxu0 0
    %2664 = vmatpush1.bf16.msra.mxu0 0
    %2665 = vmatprep.subr.bf16.mxu0 0
    %2666 = vmatpush1.bf16.msra.mxu0 0
    %2667 = vmatprep.subr.bf16.mxu0 0
    %2668 = vmatpush1.bf16.msra.mxu0 0
    %2669 = vmatprep.subr.bf16.mxu0 0
    %2670 = vmatpush1.bf16.msra.mxu0 0
    %2671 = vmatprep.subr.bf16.mxu0 0
    %2672 = vmatpush1.bf16.msra.mxu0 0
    %2673 = vmatprep.subr.bf16.mxu0 0
    %2674 = vmatpush1.bf16.msra.mxu0 0
    %2675 = vmatprep.subr.bf16.mxu0 0
    %2676 = vmatpush1.bf16.msra.mxu0 0
    %2677 = vmatprep.mubr.bf16.mxu0 0
    %2678 = vmatmul.mubr.bf16.gmra.mrb[0].mxu0 %v2644
    %v2679 = vpop.f32.mrb[0].mxu0
    %v2680 = vadd.f32 0.0, %v2679
    %v2681 = vpop.f32.mrb[0].mxu0
    %v2682 = vadd.f32 0.0, %v2681
    %v2683 = vpop.f32.mrb[0].mxu0
    %v2684 = vpop.f32.mrb[0].mxu0
    %2685 = vdwg.mxu0
    %2686 = vmatprep.subr.bf16.mxu0 0
    %2687 = vmatpush1.bf16.msra.mxu0 %v1957
    %2688 = vmatprep.subr.bf16.mxu0 0
    %2689 = vmatpush1.bf16.msra.mxu0 %v1960
    %2690 = vmatprep.subr.bf16.mxu0 0
    %2691 = vmatpush1.bf16.msra.mxu0 %v1963
    %2692 = vmatprep.subr.bf16.mxu0 0
    %2693 = vmatpush1.bf16.msra.mxu0 %v1966
    %2694 = vmatprep.subr.bf16.mxu0 0
    %2695 = vmatpush1.bf16.msra.mxu0 %v1969
    %2696 = vmatprep.subr.bf16.mxu0 0
    %2697 = vmatpush1.bf16.msra.mxu0 %v1972
    %2698 = vmatprep.subr.bf16.mxu0 0
    %2699 = vmatpush1.bf16.msra.mxu0 %v1975
    %2700 = vmatprep.subr.bf16.mxu0 0
    %2701 = vmatpush1.bf16.msra.mxu0 %v1978
    %2702 = vmatprep.subr.bf16.mxu0 0
    %2703 = vmatpush1.bf16.msra.mxu0 0
    %2704 = vmatprep.subr.bf16.mxu0 0
    %2705 = vmatpush1.bf16.msra.mxu0 0
    %2706 = vmatprep.subr.bf16.mxu0 0
    %2707 = vmatpush1.bf16.msra.mxu0 0
    %2708 = vmatprep.subr.bf16.mxu0 0
    %2709 = vmatpush1.bf16.msra.mxu0 0
    %2710 = vmatprep.subr.bf16.mxu0 0
    %2711 = vmatpush1.bf16.msra.mxu0 0
    %2712 = vmatprep.subr.bf16.mxu0 0
    %2713 = vmatpush1.bf16.msra.mxu0 0
    %2714 = vmatprep.subr.bf16.mxu0 0
    %2715 = vmatpush1.bf16.msra.mxu0 0
    %2716 = vmatprep.subr.bf16.mxu0 0
    %2717 = vmatpush1.bf16.msra.mxu0 0
    %2718 = vmatprep.mubr.bf16.mxu0 0
    %2719 = vmatmul.mubr.bf16.gmra.mrb[0].mxu0 %v2644
    %v2720 = vpop.f32.mrb[0].mxu0
    %v2721 = vadd.f32 0.0, %v2720
    %v2722 = vpop.f32.mrb[0].mxu0
    %v2723 = vpop.f32.mrb[0].mxu0
    %v2724 = vpop.f32.mrb[0].mxu0
    %2725 = vdwg.mxu0
    %v2726 = vadd.f32 %v2641, %v2680
    %v2727 = vxor.u32 %v2726, 2147483648
    %v2728 = vmul.f32 %v2727, 1.442695
    %v2729 = vpow.pop %v2728
    %v2730 = vadd.f32 %v2729, 1.0
    %v2731 = vrcp.pop %v2730
    %v2732 = vmul.f32 1.0, %v2731
    %v2733 = vadd.f32 %v2642, %v2682
    %v2734 = vxor.u32 %v2733, 2147483648
    %v2735 = vmul.f32 %v2734, 1.442695
    %v2736 = vpow.pop %v2735
    %v2737 = vadd.f32 %v2736, 1.0
    %v2738 = vrcp.pop %v2737
    %v2739 = vmul.f32 1.0, %v2738
    %v2740 = vadd.f32 %v2721, %v1870
    %v2741 = vmul.f32 %v2732, %v2740
    %v2742 = vadd.f32 %v2643, %v2741
    %v2743 = vtanh.pop %v2742
    %v2744 = vsub.f32 1.0, %v2739
    %v2745 = vmul.f32 %v2744, %v2743
    %v2746 = vmul.f32 %v2739, %v2640
    %v2747 = vadd.f32 %v2745, %v2746
    %v2748 = vld [vmem:[%s1368] sm:$0xff]
    %v2749 = vld [vmem:[%s1368 + $0x8] sm:$0xff]
    %v2750 = vld [vmem:[%s1368 + $0x10] sm:$0xff]
    %v2751 = vpack.c.bf16 %v2747, %v2747
    %2752 = vmatprep.subr.bf16.mxu0 %v1956
    %2753 = vmatpush1.bf16.msra.mxu0 %v1955
    %2754 = vmatprep.subr.bf16.mxu0 %v1959
    %2755 = vmatpush1.bf16.msra.mxu0 %v1958
    %2756 = vmatprep.subr.bf16.mxu0 %v1962
    %2757 = vmatpush1.bf16.msra.mxu0 %v1961
    %2758 = vmatprep.subr.bf16.mxu0 %v1965
    %2759 = vmatpush1.bf16.msra.mxu0 %v1964
    %2760 = vmatprep.subr.bf16.mxu0 %v1968
    %2761 = vmatpush1.bf16.msra.mxu0 %v1967
    %2762 = vmatprep.subr.bf16.mxu0 %v1971
    %2763 = vmatpush1.bf16.msra.mxu0 %v1970
    %2764 = vmatprep.subr.bf16.mxu0 %v1974
    %2765 = vmatpush1.bf16.msra.mxu0 %v1973
    %2766 = vmatprep.subr.bf16.mxu0 %v1977
    %2767 = vmatpush1.bf16.msra.mxu0 %v1976
    %2768 = vmatprep.subr.bf16.mxu0 0
    %2769 = vmatpush1.bf16.msra.mxu0 0
    %2770 = vmatprep.subr.bf16.mxu0 0
    %2771 = vmatpush1.bf16.msra.mxu0 0
    %2772 = vmatprep.subr.bf16.mxu0 0
    %2773 = vmatpush1.bf16.msra.mxu0 0
    %2774 = vmatprep.subr.bf16.mxu0 0
    %2775 = vmatpush1.bf16.msra.mxu0 0
    %2776 = vmatprep.subr.bf16.mxu0 0
    %2777 = vmatpush1.bf16.msra.mxu0 0
    %2778 = vmatprep.subr.bf16.mxu0 0
    %2779 = vmatpush1.bf16.msra.mxu0 0
    %2780 = vmatprep.subr.bf16.mxu0 0
    %2781 = vmatpush1.bf16.msra.mxu0 0
    %2782 = vmatprep.subr.bf16.mxu0 0
    %2783 = vmatpush1.bf16.msra.mxu0 0
    %2784 = vmatprep.mubr.bf16.mxu0 0
    %2785 = vmatmul.mubr.bf16.gmra.mrb[0].mxu0 %v2751
    %v2786 = vpop.f32.mrb[0].mxu0
    %v2787 = vadd.f32 0.0, %v2786
    %v2788 = vpop.f32.mrb[0].mxu0
    %v2789 = vadd.f32 0.0, %v2788
    %v2790 = vpop.f32.mrb[0].mxu0
    %v2791 = vpop.f32.mrb[0].mxu0
    %2792 = vdwg.mxu0
    %2793 = vmatprep.subr.bf16.mxu0 0
    %2794 = vmatpush1.bf16.msra.mxu0 %v1957
    %2795 = vmatprep.subr.bf16.mxu0 0
    %2796 = vmatpush1.bf16.msra.mxu0 %v1960
    %2797 = vmatprep.subr.bf16.mxu0 0
    %2798 = vmatpush1.bf16.msra.mxu0 %v1963
    %2799 = vmatprep.subr.bf16.mxu0 0
    %2800 = vmatpush1.bf16.msra.mxu0 %v1966
    %2801 = vmatprep.subr.bf16.mxu0 0
    %2802 = vmatpush1.bf16.msra.mxu0 %v1969
    %2803 = vmatprep.subr.bf16.mxu0 0
    %2804 = vmatpush1.bf16.msra.mxu0 %v1972
    %2805 = vmatprep.subr.bf16.mxu0 0
    %2806 = vmatpush1.bf16.msra.mxu0 %v1975
    %2807 = vmatprep.subr.bf16.mxu0 0
    %2808 = vmatpush1.bf16.msra.mxu0 %v1978
    %2809 = vmatprep.subr.bf16.mxu0 0
    %2810 = vmatpush1.bf16.msra.mxu0 0
    %2811 = vmatprep.subr.bf16.mxu0 0
    %2812 = vmatpush1.bf16.msra.mxu0 0
    %2813 = vmatprep.subr.bf16.mxu0 0
    %2814 = vmatpush1.bf16.msra.mxu0 0
    %2815 = vmatprep.subr.bf16.mxu0 0
    %2816 = vmatpush1.bf16.msra.mxu0 0
    %2817 = vmatprep.subr.bf16.mxu0 0
    %2818 = vmatpush1.bf16.msra.mxu0 0
    %2819 = vmatprep.subr.bf16.mxu0 0
    %2820 = vmatpush1.bf16.msra.mxu0 0
    %2821 = vmatprep.subr.bf16.mxu0 0
    %2822 = vmatpush1.bf16.msra.mxu0 0
    %2823 = vmatprep.subr.bf16.mxu0 0
    %2824 = vmatpush1.bf16.msra.mxu0 0
    %2825 = vmatprep.mubr.bf16.mxu0 0
    %2826 = vmatmul.mubr.bf16.gmra.mrb[0].mxu0 %v2751
    %v2827 = vpop.f32.mrb[0].mxu0
    %v2828 = vadd.f32 0.0, %v2827
    %v2829 = vpop.f32.mrb[0].mxu0
    %v2830 = vpop.f32.mrb[0].mxu0
    %v2831 = vpop.f32.mrb[0].mxu0
    %2832 = vdwg.mxu0
    %v2833 = vadd.f32 %v2748, %v2787
    %v2834 = vxor.u32 %v2833, 2147483648
    %v2835 = vmul.f32 %v2834, 1.442695
    %v2836 = vpow.pop %v2835
    %v2837 = vadd.f32 %v2836, 1.0
    %v2838 = vrcp.pop %v2837
    %v2839 = vmul.f32 1.0, %v2838
    %v2840 = vadd.f32 %v2749, %v2789
    %v2841 = vxor.u32 %v2840, 2147483648
    %v2842 = vmul.f32 %v2841, 1.442695
    %v2843 = vpow.pop %v2842
    %v2844 = vadd.f32 %v2843, 1.0
    %v2845 = vrcp.pop %v2844
    %v2846 = vmul.f32 1.0, %v2845
    %v2847 = vadd.f32 %v2828, %v1870
    %v2848 = vmul.f32 %v2839, %v2847
    %v2849 = vadd.f32 %v2750, %v2848
    %v2850 = vtanh.pop %v2849
    %v2851 = vsub.f32 1.0, %v2846
    %v2852 = vmul.f32 %v2851, %v2850
    %v2853 = vmul.f32 %v2846, %v2747
    %v2854 = vadd.f32 %v2852, %v2853
    %v2855 = vpack.c.bf16 %v2854, %v2854
    %v2856 = vld [vmem:[#allocation10] sm:$0xf]
    %v2857 = vld [vmem:[#allocation10 + $0x4] sm:$0xf]
    %v2858 = vld [vmem:[#allocation10 + $0x8] sm:$0xf]
    %v2859 = vld [vmem:[#allocation10 + $0xc] sm:$0xf]
    %v2860 = vld [vmem:[#allocation10 + $0x10] sm:$0xf]
    %v2861 = vld [vmem:[#allocation10 + $0x14] sm:$0xf]
    %v2862 = vld [vmem:[#allocation10 + $0x18] sm:$0xf]
    %v2863 = vld [vmem:[#allocation10 + $0x1c] sm:$0xf]
    %v2864 = vld [vmem:[#allocation10 + $0x20] sm:$0xf]
    %v2865 = vld [vmem:[#allocation10 + $0x24] sm:$0xf]
    %v2866 = vld [vmem:[#allocation10 + $0x28] sm:$0xf]
    %v2867 = vld [vmem:[#allocation10 + $0x2c] sm:$0xf]
    %v2868 = vld [vmem:[#allocation10 + $0x30] sm:$0xf]
    %v2869 = vld [vmem:[#allocation10 + $0x34] sm:$0xf]
    %v2870 = vld [vmem:[#allocation10 + $0x38] sm:$0xf]
    %v2871 = vld [vmem:[#allocation10 + $0x3c] sm:$0xf]
    %v2872 = vld [vmem:[%s6] sm:$0x1]
    %v2874 = vlaneseq
    %v2875 = vshrl.u32 %v2874, 7
    %v2876 = vsub.s32 0, %v2875
    %v2877 = vrot.slane %v2872, %v2876
    %v2895 = vunpack.c.l.b16 %v2856
    %v2896 = vunpack.c.l.b16 %v2857
    %v2897 = vunpack.c.l.b16 %v2858
    %v2898 = vunpack.c.l.b16 %v2859
    %v2899 = vunpack.c.l.b16 %v2860
    %v2900 = vunpack.c.l.b16 %v2861
    %v2901 = vunpack.c.l.b16 %v2862
    %v2902 = vunpack.c.l.b16 %v2863
    %v2903 = vunpack.c.l.b16 %v2864
    %v2904 = vunpack.c.l.b16 %v2865
    %v2905 = vunpack.c.l.b16 %v2866
    %v2906 = vunpack.c.l.b16 %v2867
    %v2907 = vunpack.c.l.b16 %v2868
    %v2908 = vunpack.c.l.b16 %v2869
    %v2909 = vunpack.c.l.b16 %v2870
    %v2910 = vunpack.c.l.b16 %v2871
    %v2911 = vpack.c.b16 %v2896, %v2895
    %v2912 = vpack.c.b16 %v2898, %v2897
    %v2913 = vpack.c.b16 %v2900, %v2899
    %v2914 = vpack.c.b16 %v2902, %v2901
    %v2915 = vpack.c.b16 %v2904, %v2903
    %v2916 = vpack.c.b16 %v2906, %v2905
    %v2917 = vpack.c.b16 %v2908, %v2907
    %v2918 = vpack.c.b16 %v2910, %v2909
    %2927 = vmatprep.subr.bf16.mxu0 0
    %2928 = vmatpush1.bf16.msra.mxu0 %v2911
    %2929 = vmatprep.subr.bf16.mxu0 0
    %2930 = vmatpush1.bf16.msra.mxu0 %v2912
    %2931 = vmatprep.subr.bf16.mxu0 0
    %2932 = vmatpush1.bf16.msra.mxu0 %v2913
    %2933 = vmatprep.subr.bf16.mxu0 0
    %2934 = vmatpush1.bf16.msra.mxu0 %v2914
    %2935 = vmatprep.subr.bf16.mxu0 0
    %2936 = vmatpush1.bf16.msra.mxu0 %v2915
    %2937 = vmatprep.subr.bf16.mxu0 0
    %2938 = vmatpush1.bf16.msra.mxu0 %v2916
    %2939 = vmatprep.subr.bf16.mxu0 0
    %2940 = vmatpush1.bf16.msra.mxu0 %v2917
    %2941 = vmatprep.subr.bf16.mxu0 0
    %2942 = vmatpush1.bf16.msra.mxu0 %v2918
    %2943 = vmatprep.subr.bf16.mxu0 0
    %2944 = vmatpush1.bf16.msra.mxu0 0
    %2945 = vmatprep.subr.bf16.mxu0 0
    %2946 = vmatpush1.bf16.msra.mxu0 0
    %2947 = vmatprep.subr.bf16.mxu0 0
    %2948 = vmatpush1.bf16.msra.mxu0 0
    %2949 = vmatprep.subr.bf16.mxu0 0
    %2950 = vmatpush1.bf16.msra.mxu0 0
    %2951 = vmatprep.subr.bf16.mxu0 0
    %2952 = vmatpush1.bf16.msra.mxu0 0
    %2953 = vmatprep.subr.bf16.mxu0 0
    %2954 = vmatpush1.bf16.msra.mxu0 0
    %2955 = vmatprep.subr.bf16.mxu0 0
    %2956 = vmatpush1.bf16.msra.mxu0 0
    %2957 = vmatprep.subr.bf16.mxu0 0
    %2958 = vmatpush1.bf16.msra.mxu0 0
    %2959 = vmatprep.mubr.bf16.mxu0 0
    %2960 = vmatmul.mubr.bf16.gmra.mrb[0].mxu0 %v2855
    %v2961 = vpop.f32.mrb[0].mxu0
    %v2962 = vadd.f32 %v2877, %v2961
    %v2963 = vpop.f32.mrb[0].mxu0
    %v2964 = vpop.f32.mrb[0].mxu0
    %v2965 = vpop.f32.mrb[0].mxu0
    %2966 = vdwg.mxu0
    %v2967 = vlaneseq
    %v2968 = vshrl.u32 %v2967, 7
    %vm2969 = vcmp.lt.s32.totalorder %v2968, 2
    %v2970 = vsel %vm2969, %v2962, -inf
    %v2971 = vrot.slane %v2970, 4
    %v2972 = vmax.f32 %v2970, %v2971
    %v2973 = vrot.slane %v2972, 2
    %v2974 = vmax.f32 %v2972, %v2973
    %v2975 = vrot.slane %v2974, 1
    %v2976 = vmax.f32 %v2974, %v2975
    %v2977 = vsub.f32 %v2970, %v2976
    %v2978 = vmul.f32 %v2977, 1.442695
    %v2979 = vpow.pop %v2978
    %v2980 = vrot.slane %v2979, 4
    %v2981 = vadd.f32 %v2979, %v2980
    %v2982 = vrot.slane %v2981, 2
    %v2983 = vadd.f32 %v2981, %v2982
    %v2984 = vrot.slane %v2983, 1
    %v2985 = vadd.f32 %v2983, %v2984
    %v2986 = vlog2.pop %v2985
    %v2987 = vmul.f32 %v2986, 0.6931472
    %v2988 = vadd.f32 %v2987, %v2976
    %v2989 = vsub.f32 %v2962, %v2988
    %2990 = vst [vmem:[#allocation12] sm:$0xff] %v2989
    // Predicated region
    $region46: #{tpu_custom_call.1} parent=1 // pred_check
      _
    $region47: #{tpu_custom_call.1} parent=1 // pred_check_branch
      %2992 = sbr.rel (0) target = $region49
    $region48: #{tpu_custom_call.1} parent=1 // pred_region
      %s2994 = ssub.s32 128, 128
      %2995 = vsyncadd [#allocation6], %s2994
      %s2997 = sshll.u32 [#allocation12], 4
      %s2998 = int_to_ptr.vmem [resolvable:$true] %s2997
      %3000 = dma.vmem_to_hbm [thread:$0]  %s2998, 128, %s7, [#allocation6]
    $region49: #{tpu_custom_call.1} parent=1 // pred_fallthru
      _
    // Predicated region
    $region50: #{tpu_custom_call.1} parent=1 // pred_check
      _
    $region51: #{tpu_custom_call.1} parent=1 // pred_check_branch
      %3002 = sbr.rel (0) target = $region53
    $region52: #{tpu_custom_call.1} parent=1 // pred_region
      %3003 = dma.done [#allocation6], 128
    $region53: #{tpu_custom_call.1} parent=1 // pred_fallthru
      _
    %3004 = vsyncpa [#allocation5], 1
    %3005 = vsyncpa [#allocation8], 1
    %3006 = vsyncpa [#allocation11], 1
    %3007 = vsyncpa [#allocation6], 1

</llo_original>
